<compile_context>
chip_gen: v6e
topology: v6e:2x2x1
jax: 0.10.0
libtpu: 0.0.40
codegen_flags: <defaults>
</compile_context>

<pallas_src>
import jax
import jax.numpy as jnp
from jax.experimental import pallas as pl
from jax.experimental.pallas import tpu as pltpu

# Problem sizes (consistent with the module: Conv2d(3 -> 6, k=3, s=1, p=0))
N, CIN, H, W = 2, 3, 16, 16
COUT, KH, KW = 6, 3, 3
OH, OW = H - KH + 1, W - KW + 1      # 14, 14
KDIM = CIN * KH * KW                 # 27
SPATIAL = OH * OW                    # 196


def conv2d_kernel(x_ref, w_ref, b_ref, o_ref):
    """Fused im2col + single matmul, channels-on-sublanes / spatial-on-lanes.

    x_ref: (N, CIN, H, W)        float32   (NCHW, as given by PyTorch)
    w_ref: (COUT, CIN*KH*KW)     float32   (flattened OIHW weight, K order = (c, kh, kw))
    b_ref: (COUT, 1)             float32
    o_ref: (N, COUT, OH*OW)      float32
    """
    x = x_ref[...]
    w = w_ref[...]
    b = b_ref[...]

    # Build the im2col matrix once: row order (c, kh, kw) matches the weight
    # flatten order; each row is the spatially-flattened shifted patch.
    rows = []
    for c in range(CIN):
        for kh in range(KH):
            for kw in range(KW):
                rows.append(
                    x[:, c, kh:kh + OH, kw:kw + OW].reshape(N, 1, SPATIAL))
    xcol = jnp.concatenate(rows, axis=1)          # (N, KDIM, SPATIAL)

    # One lane-dense MXU matmul per batch image: (COUT, K) @ (K, SPATIAL).
    for n in range(N):
        o_ref[n] = jnp.dot(w, xcol[n],
                           preferred_element_type=jnp.float32) + b


def _pallas_conv(x_nchw, w_mat, bias_col):
    return pl.pallas_call(
        conv2d_kernel,
        out_shape=jax.ShapeDtypeStruct((N, COUT, SPATIAL), jnp.float32),
        in_specs=[
            pl.BlockSpec(memory_space=pltpu.MemorySpace.VMEM),
            pl.BlockSpec(memory_space=pltpu.MemorySpace.VMEM),
            pl.BlockSpec(memory_space=pltpu.MemorySpace.VMEM),
        ],
        out_specs=pl.BlockSpec(memory_space=pltpu.MemorySpace.VMEM),
    )(x_nchw, w_mat, bias_col)


def t_module_forward(x_nchw, w_oihw, bias):
    """Matches PyTorch T_module.forward: NCHW in, NCHW out. No transposes."""
    w_mat = w_oihw.reshape(COUT, KDIM)            # pure reshape (O, I*KH*KW)
    bias_col = bias.reshape(COUT, 1)
    out = _pallas_conv(x_nchw, w_mat, bias_col)   # (N, COUT, OH*OW)
    return out.reshape(N, COUT, OH, OW)           # pure reshape, no transpose


if __name__ == "__main__":
    key = jax.random.PRNGKey(0)
    kx, kw_, kb = jax.random.split(key, 3)

    # Deterministic parameter init, mimicking PyTorch's Conv2d default
    # (uniform in +-1/sqrt(fan_in), fan_in = CIN*KH*KW).
    fan_in = CIN * KH * KW
    bound = 1.0 / (fan_in ** 0.5)
    weight = jax.random.uniform(kw_, (COUT, CIN, KH, KW), jnp.float32, -bound, bound)
    bias = jax.random.uniform(kb, (COUT,), jnp.float32, -bound, bound)

    x = jax.random.normal(kx, (N, CIN, H, W), jnp.float32)

    out = t_module_forward(x, weight, bias)
    out = jax.block_until_ready(out)

    # Sanity check against XLA's conv (same semantics as torch Conv2d, valid padding).
    ref = jax.lax.conv_general_dilated(
        x, weight, window_strides=(1, 1), padding="VALID",
        dimension_numbers=("NCHW", "OIHW", "NCHW"),
    ) + bias.reshape(1, COUT, 1, 1)
    assert out.shape == (N, COUT, OH, OW)
    assert jnp.allclose(out, ref, atol=1e-4, rtol=1e-4)

    print("KERNEL_OK")
</pallas_src>

<mosaic_0001>
module attributes {stable_mosaic.version = 11 : i64} {
  func.func @conv2d_kernel(%arg0: memref<2x3x16x16xf32, #tpu.memory_space<vmem>>, %arg1: memref<6x27xf32, #tpu.memory_space<vmem>>, %arg2: memref<6x1xf32, #tpu.memory_space<vmem>>, %arg3: memref<2x6x196xf32, #tpu.memory_space<vmem>>) attributes {dimension_semantics = [], scalar_prefetch = 0 : i64, scratch_operands = 0 : i64, tpu.core_type = #tpu.core_type<tc>} {
    %c0 = arith.constant 0 : index
    %c0_0 = arith.constant 0 : index
    %c0_1 = arith.constant 0 : index
    %c0_2 = arith.constant 0 : index
    %0 = vector.load %arg0[%c0, %c0_0, %c0_1, %c0_2] : memref<2x3x16x16xf32, #tpu.memory_space<vmem>>, vector<2x3x16x16xf32>
    %c0_3 = arith.constant 0 : index
    %c0_4 = arith.constant 0 : index
    %1 = vector.load %arg1[%c0_3, %c0_4] : memref<6x27xf32, #tpu.memory_space<vmem>>, vector<6x27xf32>
    %c0_5 = arith.constant 0 : index
    %c0_6 = arith.constant 0 : index
    %2 = vector.load %arg2[%c0_5, %c0_6] : memref<6x1xf32, #tpu.memory_space<vmem>>, vector<6x1xf32>
    %3 = vector.extract_strided_slice %0 {offsets = [0, 0, 0, 0], sizes = [2, 1, 14, 14], strides = [1, 1, 1, 1]} : vector<2x3x16x16xf32> to vector<2x1x14x14xf32>
    %4 = vector.shape_cast %3 : vector<2x1x14x14xf32> to vector<2x14x14xf32>
    %5 = vector.shape_cast %4 : vector<2x14x14xf32> to vector<2x1x196xf32>
    %6 = vector.extract_strided_slice %0 {offsets = [0, 0, 0, 1], sizes = [2, 1, 14, 14], strides = [1, 1, 1, 1]} : vector<2x3x16x16xf32> to vector<2x1x14x14xf32>
    %7 = vector.shape_cast %6 : vector<2x1x14x14xf32> to vector<2x14x14xf32>
    %8 = vector.shape_cast %7 : vector<2x14x14xf32> to vector<2x1x196xf32>
    %9 = vector.extract_strided_slice %0 {offsets = [0, 0, 0, 2], sizes = [2, 1, 14, 14], strides = [1, 1, 1, 1]} : vector<2x3x16x16xf32> to vector<2x1x14x14xf32>
    %10 = vector.shape_cast %9 : vector<2x1x14x14xf32> to vector<2x14x14xf32>
    %11 = vector.shape_cast %10 : vector<2x14x14xf32> to vector<2x1x196xf32>
    %12 = vector.extract_strided_slice %0 {offsets = [0, 0, 1, 0], sizes = [2, 1, 14, 14], strides = [1, 1, 1, 1]} : vector<2x3x16x16xf32> to vector<2x1x14x14xf32>
    %13 = vector.shape_cast %12 : vector<2x1x14x14xf32> to vector<2x14x14xf32>
    %14 = vector.shape_cast %13 : vector<2x14x14xf32> to vector<2x1x196xf32>
    %15 = vector.extract_strided_slice %0 {offsets = [0, 0, 1, 1], sizes = [2, 1, 14, 14], strides = [1, 1, 1, 1]} : vector<2x3x16x16xf32> to vector<2x1x14x14xf32>
    %16 = vector.shape_cast %15 : vector<2x1x14x14xf32> to vector<2x14x14xf32>
    %17 = vector.shape_cast %16 : vector<2x14x14xf32> to vector<2x1x196xf32>
    %18 = vector.extract_strided_slice %0 {offsets = [0, 0, 1, 2], sizes = [2, 1, 14, 14], strides = [1, 1, 1, 1]} : vector<2x3x16x16xf32> to vector<2x1x14x14xf32>
    %19 = vector.shape_cast %18 : vector<2x1x14x14xf32> to vector<2x14x14xf32>
    %20 = vector.shape_cast %19 : vector<2x14x14xf32> to vector<2x1x196xf32>
    %21 = vector.extract_strided_slice %0 {offsets = [0, 0, 2, 0], sizes = [2, 1, 14, 14], strides = [1, 1, 1, 1]} : vector<2x3x16x16xf32> to vector<2x1x14x14xf32>
    %22 = vector.shape_cast %21 : vector<2x1x14x14xf32> to vector<2x14x14xf32>
    %23 = vector.shape_cast %22 : vector<2x14x14xf32> to vector<2x1x196xf32>
    %24 = vector.extract_strided_slice %0 {offsets = [0, 0, 2, 1], sizes = [2, 1, 14, 14], strides = [1, 1, 1, 1]} : vector<2x3x16x16xf32> to vector<2x1x14x14xf32>
    %25 = vector.shape_cast %24 : vector<2x1x14x14xf32> to vector<2x14x14xf32>
    %26 = vector.shape_cast %25 : vector<2x14x14xf32> to vector<2x1x196xf32>
    %27 = vector.extract_strided_slice %0 {offsets = [0, 0, 2, 2], sizes = [2, 1, 14, 14], strides = [1, 1, 1, 1]} : vector<2x3x16x16xf32> to vector<2x1x14x14xf32>
    %28 = vector.shape_cast %27 : vector<2x1x14x14xf32> to vector<2x14x14xf32>
    %29 = vector.shape_cast %28 : vector<2x14x14xf32> to vector<2x1x196xf32>
    %30 = vector.extract_strided_slice %0 {offsets = [0, 1, 0, 0], sizes = [2, 1, 14, 14], strides = [1, 1, 1, 1]} : vector<2x3x16x16xf32> to vector<2x1x14x14xf32>
    %31 = vector.shape_cast %30 : vector<2x1x14x14xf32> to vector<2x14x14xf32>
    %32 = vector.shape_cast %31 : vector<2x14x14xf32> to vector<2x1x196xf32>
    %33 = vector.extract_strided_slice %0 {offsets = [0, 1, 0, 1], sizes = [2, 1, 14, 14], strides = [1, 1, 1, 1]} : vector<2x3x16x16xf32> to vector<2x1x14x14xf32>
    %34 = vector.shape_cast %33 : vector<2x1x14x14xf32> to vector<2x14x14xf32>
    %35 = vector.shape_cast %34 : vector<2x14x14xf32> to vector<2x1x196xf32>
    %36 = vector.extract_strided_slice %0 {offsets = [0, 1, 0, 2], sizes = [2, 1, 14, 14], strides = [1, 1, 1, 1]} : vector<2x3x16x16xf32> to vector<2x1x14x14xf32>
    %37 = vector.shape_cast %36 : vector<2x1x14x14xf32> to vector<2x14x14xf32>
    %38 = vector.shape_cast %37 : vector<2x14x14xf32> to vector<2x1x196xf32>
    %39 = vector.extract_strided_slice %0 {offsets = [0, 1, 1, 0], sizes = [2, 1, 14, 14], strides = [1, 1, 1, 1]} : vector<2x3x16x16xf32> to vector<2x1x14x14xf32>
    %40 = vector.shape_cast %39 : vector<2x1x14x14xf32> to vector<2x14x14xf32>
    %41 = vector.shape_cast %40 : vector<2x14x14xf32> to vector<2x1x196xf32>
    %42 = vector.extract_strided_slice %0 {offsets = [0, 1, 1, 1], sizes = [2, 1, 14, 14], strides = [1, 1, 1, 1]} : vector<2x3x16x16xf32> to vector<2x1x14x14xf32>
    %43 = vector.shape_cast %42 : vector<2x1x14x14xf32> to vector<2x14x14xf32>
    %44 = vector.shape_cast %43 : vector<2x14x14xf32> to vector<2x1x196xf32>
    %45 = vector.extract_strided_slice %0 {offsets = [0, 1, 1, 2], sizes = [2, 1, 14, 14], strides = [1, 1, 1, 1]} : vector<2x3x16x16xf32> to vector<2x1x14x14xf32>
    %46 = vector.shape_cast %45 : vector<2x1x14x14xf32> to vector<2x14x14xf32>
    %47 = vector.shape_cast %46 : vector<2x14x14xf32> to vector<2x1x196xf32>
    %48 = vector.extract_strided_slice %0 {offsets = [0, 1, 2, 0], sizes = [2, 1, 14, 14], strides = [1, 1, 1, 1]} : vector<2x3x16x16xf32> to vector<2x1x14x14xf32>
    %49 = vector.shape_cast %48 : vector<2x1x14x14xf32> to vector<2x14x14xf32>
    %50 = vector.shape_cast %49 : vector<2x14x14xf32> to vector<2x1x196xf32>
    %51 = vector.extract_strided_slice %0 {offsets = [0, 1, 2, 1], sizes = [2, 1, 14, 14], strides = [1, 1, 1, 1]} : vector<2x3x16x16xf32> to vector<2x1x14x14xf32>
    %52 = vector.shape_cast %51 : vector<2x1x14x14xf32> to vector<2x14x14xf32>
    %53 = vector.shape_cast %52 : vector<2x14x14xf32> to vector<2x1x196xf32>
    %54 = vector.extract_strided_slice %0 {offsets = [0, 1, 2, 2], sizes = [2, 1, 14, 14], strides = [1, 1, 1, 1]} : vector<2x3x16x16xf32> to vector<2x1x14x14xf32>
    %55 = vector.shape_cast %54 : vector<2x1x14x14xf32> to vector<2x14x14xf32>
    %56 = vector.shape_cast %55 : vector<2x14x14xf32> to vector<2x1x196xf32>
    %57 = vector.extract_strided_slice %0 {offsets = [0, 2, 0, 0], sizes = [2, 1, 14, 14], strides = [1, 1, 1, 1]} : vector<2x3x16x16xf32> to vector<2x1x14x14xf32>
    %58 = vector.shape_cast %57 : vector<2x1x14x14xf32> to vector<2x14x14xf32>
    %59 = vector.shape_cast %58 : vector<2x14x14xf32> to vector<2x1x196xf32>
    %60 = vector.extract_strided_slice %0 {offsets = [0, 2, 0, 1], sizes = [2, 1, 14, 14], strides = [1, 1, 1, 1]} : vector<2x3x16x16xf32> to vector<2x1x14x14xf32>
    %61 = vector.shape_cast %60 : vector<2x1x14x14xf32> to vector<2x14x14xf32>
    %62 = vector.shape_cast %61 : vector<2x14x14xf32> to vector<2x1x196xf32>
    %63 = vector.extract_strided_slice %0 {offsets = [0, 2, 0, 2], sizes = [2, 1, 14, 14], strides = [1, 1, 1, 1]} : vector<2x3x16x16xf32> to vector<2x1x14x14xf32>
    %64 = vector.shape_cast %63 : vector<2x1x14x14xf32> to vector<2x14x14xf32>
    %65 = vector.shape_cast %64 : vector<2x14x14xf32> to vector<2x1x196xf32>
    %66 = vector.extract_strided_slice %0 {offsets = [0, 2, 1, 0], sizes = [2, 1, 14, 14], strides = [1, 1, 1, 1]} : vector<2x3x16x16xf32> to vector<2x1x14x14xf32>
    %67 = vector.shape_cast %66 : vector<2x1x14x14xf32> to vector<2x14x14xf32>
    %68 = vector.shape_cast %67 : vector<2x14x14xf32> to vector<2x1x196xf32>
    %69 = vector.extract_strided_slice %0 {offsets = [0, 2, 1, 1], sizes = [2, 1, 14, 14], strides = [1, 1, 1, 1]} : vector<2x3x16x16xf32> to vector<2x1x14x14xf32>
    %70 = vector.shape_cast %69 : vector<2x1x14x14xf32> to vector<2x14x14xf32>
    %71 = vector.shape_cast %70 : vector<2x14x14xf32> to vector<2x1x196xf32>
    %72 = vector.extract_strided_slice %0 {offsets = [0, 2, 1, 2], sizes = [2, 1, 14, 14], strides = [1, 1, 1, 1]} : vector<2x3x16x16xf32> to vector<2x1x14x14xf32>
    %73 = vector.shape_cast %72 : vector<2x1x14x14xf32> to vector<2x14x14xf32>
    %74 = vector.shape_cast %73 : vector<2x14x14xf32> to vector<2x1x196xf32>
    %75 = vector.extract_strided_slice %0 {offsets = [0, 2, 2, 0], sizes = [2, 1, 14, 14], strides = [1, 1, 1, 1]} : vector<2x3x16x16xf32> to vector<2x1x14x14xf32>
    %76 = vector.shape_cast %75 : vector<2x1x14x14xf32> to vector<2x14x14xf32>
    %77 = vector.shape_cast %76 : vector<2x14x14xf32> to vector<2x1x196xf32>
    %78 = vector.extract_strided_slice %0 {offsets = [0, 2, 2, 1], sizes = [2, 1, 14, 14], strides = [1, 1, 1, 1]} : vector<2x3x16x16xf32> to vector<2x1x14x14xf32>
    %79 = vector.shape_cast %78 : vector<2x1x14x14xf32> to vector<2x14x14xf32>
    %80 = vector.shape_cast %79 : vector<2x14x14xf32> to vector<2x1x196xf32>
    %81 = vector.extract_strided_slice %0 {offsets = [0, 2, 2, 2], sizes = [2, 1, 14, 14], strides = [1, 1, 1, 1]} : vector<2x3x16x16xf32> to vector<2x1x14x14xf32>
    %82 = vector.shape_cast %81 : vector<2x1x14x14xf32> to vector<2x14x14xf32>
    %83 = vector.shape_cast %82 : vector<2x14x14xf32> to vector<2x1x196xf32>
    %84 = tpu.concatenate %5, %8, %11, %14, %17, %20, %23, %26, %29, %32, %35, %38, %41, %44, %47, %50 in 1 : vector<2x1x196xf32>, vector<2x1x196xf32>, vector<2x1x196xf32>, vector<2x1x196xf32>, vector<2x1x196xf32>, vector<2x1x196xf32>, vector<2x1x196xf32>, vector<2x1x196xf32>, vector<2x1x196xf32>, vector<2x1x196xf32>, vector<2x1x196xf32>, vector<2x1x196xf32>, vector<2x1x196xf32>, vector<2x1x196xf32>, vector<2x1x196xf32>, vector<2x1x196xf32> -> vector<2x16x196xf32>
    %85 = tpu.concatenate %53, %56, %59, %62, %65, %68, %71, %74, %77, %80, %83 in 1 : vector<2x1x196xf32>, vector<2x1x196xf32>, vector<2x1x196xf32>, vector<2x1x196xf32>, vector<2x1x196xf32>, vector<2x1x196xf32>, vector<2x1x196xf32>, vector<2x1x196xf32>, vector<2x1x196xf32>, vector<2x1x196xf32>, vector<2x1x196xf32> -> vector<2x11x196xf32>
    %86 = tpu.concatenate %84, %85 in 1 : vector<2x16x196xf32>, vector<2x11x196xf32> -> vector<2x27x196xf32>
    %87 = vector.extract_strided_slice %86 {offsets = [0, 0, 0], sizes = [1, 27, 196], strides = [1, 1, 1]} : vector<2x27x196xf32> to vector<1x27x196xf32>
    %88 = vector.shape_cast %87 : vector<1x27x196xf32> to vector<27x196xf32>
    %cst = arith.constant dense<0.000000e+00> : vector<6x196xf32>
    %89 = tpu.matmul %1, %88, %cst {dimension_numbers = #tpu.dot_dimension_numbers<[1], [0], [0], [1], [0, 0, 1, 1], [], []>} : vector<6x27xf32>, vector<27x196xf32>, vector<6x196xf32> -> vector<6x196xf32>
    %90 = vector.broadcast %2 : vector<6x1xf32> to vector<6x196xf32>
    %91 = arith.addf %89, %90 : vector<6x196xf32>
    %c0_7 = arith.constant 0 : index
    %c0_8 = arith.constant 0 : index
    %c0_9 = arith.constant 0 : index
    %92 = vector.load %arg3[%c0_7, %c0_8, %c0_9] : memref<2x6x196xf32, #tpu.memory_space<vmem>>, vector<1x6x196xf32>
    %93 = vector.shape_cast %92 : vector<1x6x196xf32> to vector<6x196xf32>
    %94 = vector.shape_cast %91 : vector<6x196xf32> to vector<1x6x196xf32>
    tpu.vector_store %arg3[%c0_7, %c0_8, %c0_9], %94 {strides = array<i32>} : memref<2x6x196xf32, #tpu.memory_space<vmem>>, vector<1x6x196xf32>,
    %95 = vector.extract_strided_slice %86 {offsets = [1, 0, 0], sizes = [1, 27, 196], strides = [1, 1, 1]} : vector<2x27x196xf32> to vector<1x27x196xf32>
    %96 = vector.shape_cast %95 : vector<1x27x196xf32> to vector<27x196xf32>
    %cst_10 = arith.constant dense<0.000000e+00> : vector<6x196xf32>
    %97 = tpu.matmul %1, %96, %cst_10 {dimension_numbers = #tpu.dot_dimension_numbers<[1], [0], [0], [1], [0, 0, 1, 1], [], []>} : vector<6x27xf32>, vector<27x196xf32>, vector<6x196xf32> -> vector<6x196xf32>
    %98 = vector.broadcast %2 : vector<6x1xf32> to vector<6x196xf32>
    %99 = arith.addf %97, %98 : vector<6x196xf32>
    %c1 = arith.constant 1 : index
    %c0_11 = arith.constant 0 : index
    %c0_12 = arith.constant 0 : index
    %100 = vector.load %arg3[%c1, %c0_11, %c0_12] : memref<2x6x196xf32, #tpu.memory_space<vmem>>, vector<1x6x196xf32>
    %101 = vector.shape_cast %100 : vector<1x6x196xf32> to vector<6x196xf32>
    %102 = vector.shape_cast %99 : vector<6x196xf32> to vector<1x6x196xf32>
    tpu.vector_store %arg3[%c1, %c0_11, %c0_12], %102 {strides = array<i32>} : memref<2x6x196xf32, #tpu.memory_space<vmem>>, vector<1x6x196xf32>,
    return
  }
}

</mosaic_0001>

<llo_original>
// kernel: tpu_custom_call.1
$region0: #{tpu_custom_call.1}
  #allocation0 [shape = 'u32[]', space=smem, size = 0x4, offset = 0x4, fixed_abs, tag = 'smem constant byte address 0x4 - core index']
  #allocation1 [shape = 'u32[144,128]{1,0:T(1,128)}', space=vmem, size = 0x12000, scoped, tag = 'internal scratch']
  %s0 = inlined_call_operand.hbm [shape: f32[2,3,16,16], index: 0, kind: input, shape index: {}]
  %s1 = inlined_call_operand.vmem [shape: f32[6,27], index: 1, kind: input, shape index: {}]
  %s2 = inlined_call_operand.vmem [shape: f32[6,1], index: 2, kind: input, shape index: {}]
  %s3 = inlined_call_operand.vmem [shape: f32[2,6,196], index: 3, kind: output, shape index: {}]
  %s4 = sld [smem:[#allocation0]]
  $region26: #{tpu_custom_call.1} parent=0
    _
  %s6 = ssub.s32 1, %s4
  %s7 = scalar_select 0, %s6, %s4
  $region1: #{tpu_custom_call.1} parent=0
    #allocation2 [shape = 'u8[49152]{0}', space=vmem, size = 0xc000, scoped, tag = 'input window, operand 0, single buffered']
    #allocation3 [shape = 's32[1]{0}', space=sflag, size = 0x4, scoped, tag = 'scoped memory for tpu_custom_call.1']
    %8 = vsyncpa [#allocation3], 0
    // Predicated region
    $region2: #{tpu_custom_call.1} parent=1 // pred_check
      _
    $region3: #{tpu_custom_call.1} parent=1 // pred_check_branch
      %10 = sbr.rel (0) target = $region5
    $region4: #{tpu_custom_call.1} parent=1 // pred_region
      %s12 = ssub.s32 1536, 1536
      %13 = vsyncadd [#allocation3], %s12
      %s14 = sshll.u32 [#allocation2], 4
      %s15 = int_to_ptr.vmem [resolvable:$true] %s14
      %20 = dma.hbm_to_vmem [thread:$0]  %s0, 1536, %s15, [#allocation3], 128, 128, 8
    $region5: #{tpu_custom_call.1} parent=1 // pred_fallthru
      _
    // Predicated region
    $region6: #{tpu_custom_call.1} parent=1 // pred_check
      _
    $region7: #{tpu_custom_call.1} parent=1 // pred_check_branch
      %22 = sbr.rel (0) target = $region9
    $region8: #{tpu_custom_call.1} parent=1 // pred_region
      _
    $region9: #{tpu_custom_call.1} parent=1 // pred_fallthru
      _
    // Predicated region
    $region10: #{tpu_custom_call.1} parent=1 // pred_check
      _
    $region11: #{tpu_custom_call.1} parent=1 // pred_check_branch
      %24 = sbr.rel (0) target = $region13
    $region12: #{tpu_custom_call.1} parent=1 // pred_region
      _
    $region13: #{tpu_custom_call.1} parent=1 // pred_fallthru
      _
    // Predicated region
    $region14: #{tpu_custom_call.1} parent=1 // pred_check
      _
    $region15: #{tpu_custom_call.1} parent=1 // pred_check_branch
      %26 = sbr.rel (0) target = $region17
    $region16: #{tpu_custom_call.1} parent=1 // pred_region
      %27 = dma.done [#allocation3], 1536
    $region17: #{tpu_custom_call.1} parent=1 // pred_fallthru
      _
    %v28 = vld [vmem:[#allocation2] sm:$0xff]
    %v29 = vld [vmem:[#allocation2 + $0x8] sm:$0xff]
    %v30 = vld [vmem:[#allocation2 + $0x10] sm:$0xff]
    %v31 = vld [vmem:[#allocation2 + $0x18] sm:$0xff]
    %v32 = vld [vmem:[#allocation2 + $0x20] sm:$0xff]
    %v33 = vld [vmem:[#allocation2 + $0x28] sm:$0xff]
    %v34 = vld [vmem:[#allocation2 + $0x30] sm:$0xff]
    %v35 = vld [vmem:[#allocation2 + $0x38] sm:$0xff]
    %v36 = vld [vmem:[#allocation2 + $0x40] sm:$0xff]
    %v37 = vld [vmem:[#allocation2 + $0x48] sm:$0xff]
    %v38 = vld [vmem:[#allocation2 + $0x50] sm:$0xff]
    %v39 = vld [vmem:[#allocation2 + $0x58] sm:$0xff]
    %v40 = vld [vmem:[%s1] sm:$0x3f]
    %v41 = vld [vmem:[%s2] sm:$0x3f]
    %v42 = vcombine.high %v28, 0.0
    %v44 = vunpack.c.l.s4 1983009808
    %v45 = vunpack.c.0.s8 %v44
    %v46 = vlaneseq
    %v47 = vshrl.u32 %v46, 7
    %v48 = vsub.s32 %v45, %v47
    %v49 = vrot.slane %v28, %v48
    %v51 = vunpack.c.l.s4 1983009808
    %v52 = vunpack.c.0.s8 %v51
    %v53 = vlaneseq
    %v54 = vshrl.u32 %v53, 7
    %v55 = vsub.s32 %v52, %v54
    %v56 = vrot.slane %v42, %v55
    %v57 = vcombine.high %v49, 0.0
    %v59 = vunpack.c.l.s4 1934713408
    %v60 = vunpack.c.0.s8 %v59
    %v61 = vlaneseq
    %v62 = vshrl.u32 %v61, 7
    %v63 = vsub.s32 %v60, %v62
    %v64 = vrot.slane %v49, %v63
    %v66 = vunpack.c.l.s4 1934713408
    %v67 = vunpack.c.0.s8 %v66
    %v68 = vlaneseq
    %v69 = vshrl.u32 %v68, 7
    %v70 = vsub.s32 %v67, %v69
    %v71 = vrot.slane %v57, %v70
    %v72 = vcombine.high %v56, 0.0
    %v74 = vunpack.c.l.s4 1934713408
    %v75 = vunpack.c.0.s8 %v74
    %v76 = vlaneseq
    %v77 = vshrl.u32 %v76, 7
    %v78 = vsub.s32 %v75, %v77
    %v79 = vrot.slane %v56, %v78
    %v81 = vunpack.c.l.s4 1934713408
    %v82 = vunpack.c.0.s8 %v81
    %v83 = vlaneseq
    %v84 = vshrl.u32 %v83, 7
    %v85 = vsub.s32 %v82, %v84
    %v86 = vrot.slane %v72, %v85
    %v87 = vcombine.high %v64, 0.0
    %v88 = vcombine.high %v71, 0.0
    %v89 = vcombine.high %v79, 0.0
    %v90 = vcombine.high %v86, 0.0
    %v92 = vunpack.c.l.s4 1983009808
    %v93 = vunpack.c.0.s8 %v92
    %v94 = vlaneseq
    %v95 = vshrl.u32 %v94, 7
    %v96 = vsub.s32 %v93, %v95
    %v97 = vrot.slane %v29, %v96
    %v98 = vcombine.high %v97, 0.0
    %v100 = vunpack.c.l.s4 1934713408
    %v101 = vunpack.c.0.s8 %v100
    %v102 = vlaneseq
    %v103 = vshrl.u32 %v102, 7
    %v104 = vsub.s32 %v101, %v103
    %v105 = vrot.slane %v97, %v104
    %v107 = vunpack.c.l.s4 1934713408
    %v108 = vunpack.c.0.s8 %v107
    %v109 = vlaneseq
    %v110 = vshrl.u32 %v109, 7
    %v111 = vsub.s32 %v108, %v110
    %v112 = vrot.slane %v98, %v111
    %v113 = vcombine.high %v29, 0.0
    %v115 = vunpack.c.l.s4 1934713408
    %v116 = vunpack.c.0.s8 %v115
    %v117 = vlaneseq
    %v118 = vshrl.u32 %v117, 7
    %v119 = vsub.s32 %v116, %v118
    %v120 = vrot.slane %v113, %v119
    %v121 = vcombine.high %v105, 0.0
    %v122 = vcombine.high %v112, 0.0
    %v123 = vcombine.high %v120, 0.0
    %v124 = vcombine.high %v34, 0.0
    %v126 = vunpack.c.l.s4 1983009808
    %v127 = vunpack.c.0.s8 %v126
    %v128 = vlaneseq
    %v129 = vshrl.u32 %v128, 7
    %v130 = vsub.s32 %v127, %v129
    %v131 = vrot.slane %v34, %v130
    %v133 = vunpack.c.l.s4 1983009808
    %v134 = vunpack.c.0.s8 %v133
    %v135 = vlaneseq
    %v136 = vshrl.u32 %v135, 7
    %v137 = vsub.s32 %v134, %v136
    %v138 = vrot.slane %v124, %v137
    %v139 = vcombine.high %v131, 0.0
    %v141 = vunpack.c.l.s4 1934713408
    %v142 = vunpack.c.0.s8 %v141
    %v143 = vlaneseq
    %v144 = vshrl.u32 %v143, 7
    %v145 = vsub.s32 %v142, %v144
    %v146 = vrot.slane %v131, %v145
    %v148 = vunpack.c.l.s4 1934713408
    %v149 = vunpack.c.0.s8 %v148
    %v150 = vlaneseq
    %v151 = vshrl.u32 %v150, 7
    %v152 = vsub.s32 %v149, %v151
    %v153 = vrot.slane %v139, %v152
    %v154 = vcombine.high %v138, 0.0
    %v156 = vunpack.c.l.s4 1934713408
    %v157 = vunpack.c.0.s8 %v156
    %v158 = vlaneseq
    %v159 = vshrl.u32 %v158, 7
    %v160 = vsub.s32 %v157, %v159
    %v161 = vrot.slane %v138, %v160
    %v163 = vunpack.c.l.s4 1934713408
    %v164 = vunpack.c.0.s8 %v163
    %v165 = vlaneseq
    %v166 = vshrl.u32 %v165, 7
    %v167 = vsub.s32 %v164, %v166
    %v168 = vrot.slane %v154, %v167
    %v169 = vcombine.high %v146, 0.0
    %v170 = vcombine.high %v153, 0.0
    %v171 = vcombine.high %v161, 0.0
    %v172 = vcombine.high %v168, 0.0
    %v174 = vunpack.c.l.s4 1983009808
    %v175 = vunpack.c.0.s8 %v174
    %v176 = vlaneseq
    %v177 = vshrl.u32 %v176, 7
    %v178 = vsub.s32 %v175, %v177
    %v179 = vrot.slane %v35, %v178
    %v180 = vcombine.high %v179, 0.0
    %v182 = vunpack.c.l.s4 1934713408
    %v183 = vunpack.c.0.s8 %v182
    %v184 = vlaneseq
    %v185 = vshrl.u32 %v184, 7
    %v186 = vsub.s32 %v183, %v185
    %v187 = vrot.slane %v179, %v186
    %v189 = vunpack.c.l.s4 1934713408
    %v190 = vunpack.c.0.s8 %v189
    %v191 = vlaneseq
    %v192 = vshrl.u32 %v191, 7
    %v193 = vsub.s32 %v190, %v192
    %v194 = vrot.slane %v180, %v193
    %v195 = vcombine.high %v35, 0.0
    %v197 = vunpack.c.l.s4 1934713408
    %v198 = vunpack.c.0.s8 %v197
    %v199 = vlaneseq
    %v200 = vshrl.u32 %v199, 7
    %v201 = vsub.s32 %v198, %v200
    %v202 = vrot.slane %v195, %v201
    %v203 = vcombine.high %v187, 0.0
    %v204 = vcombine.high %v194, 0.0
    %v205 = vcombine.high %v202, 0.0
    %208 = vrot.lane.b32.xlu0 %v87, 14
    %v209 = vpop.permute.xlu0 %208
    %210 = vrot.lane.b32.xlu0 %v169, 14
    %v211 = vpop.permute.xlu0 %210
    %216 = vrot.lane.b32.xlu0 %v71, 28
    %v217 = vpop.permute.xlu0 %216
    %218 = vrot.lane.b32.xlu0 %v153, 28
    %v219 = vpop.permute.xlu0 %218
    %224 = vrot.lane.b32.xlu0 %v88, 42
    %v225 = vpop.permute.xlu0 %224
    %226 = vrot.lane.b32.xlu0 %v170, 42
    %v227 = vpop.permute.xlu0 %226
    %232 = vrot.lane.b32.xlu0 %v79, 56
    %v233 = vpop.permute.xlu0 %232
    %234 = vrot.lane.b32.xlu0 %v161, 56
    %v235 = vpop.permute.xlu0 %234
    %240 = vrot.lane.b32.xlu0 %v89, 70
    %v241 = vpop.permute.xlu0 %240
    %242 = vrot.lane.b32.xlu0 %v171, 70
    %v243 = vpop.permute.xlu0 %242
    %248 = vrot.lane.b32.xlu0 %v86, 84
    %v249 = vpop.permute.xlu0 %248
    %250 = vrot.lane.b32.xlu0 %v168, 84
    %v251 = vpop.permute.xlu0 %250
    %256 = vrot.lane.b32.xlu0 %v90, 98
    %v257 = vpop.permute.xlu0 %256
    %258 = vrot.lane.b32.xlu0 %v172, 98
    %v259 = vpop.permute.xlu0 %258
    %264 = vrot.lane.b32.xlu0 %v105, 112
    %v265 = vpop.permute.xlu0 %264
    %266 = vrot.lane.b32.xlu0 %v187, 112
    %v267 = vpop.permute.xlu0 %266
    %272 = vrot.lane.b32.xlu0 %v121, 126
    %v273 = vpop.permute.xlu0 %272
    %274 = vrot.lane.b32.xlu0 %v203, 126
    %v275 = vpop.permute.xlu0 %274
    %280 = vrot.lane.b32.xlu0 %v112, 12
    %v281 = vpop.permute.xlu0 %280
    %282 = vrot.lane.b32.xlu0 %v194, 12
    %v283 = vpop.permute.xlu0 %282
    %288 = vrot.lane.b32.xlu0 %v122, 26
    %v289 = vpop.permute.xlu0 %288
    %290 = vrot.lane.b32.xlu0 %v204, 26
    %v291 = vpop.permute.xlu0 %290
    %296 = vrot.lane.b32.xlu0 %v120, 40
    %v297 = vpop.permute.xlu0 %296
    %298 = vrot.lane.b32.xlu0 %v202, 40
    %v299 = vpop.permute.xlu0 %298
    %304 = vrot.lane.b32.xlu0 %v123, 54
    %v305 = vpop.permute.xlu0 %304
    %306 = vrot.lane.b32.xlu0 %v205, 54
    %v307 = vpop.permute.xlu0 %306
    %vm310 = vcmask 113664
    %v311 = vsel %vm310, %v64, %v209
    %v312 = vsel %vm310, %v146, %v211
    %vm313 = vcmask 228352
    %v314 = vsel %vm313, %v311, %v217
    %v315 = vsel %vm313, %v312, %v219
    %vm316 = vcmask 343040
    %v317 = vsel %vm316, %v314, %v225
    %v318 = vsel %vm316, %v315, %v227
    %vm319 = vcmask 457728
    %v320 = vsel %vm319, %v317, %v233
    %v321 = vsel %vm319, %v318, %v235
    %vm322 = vcmask 572416
    %v323 = vsel %vm322, %v320, %v241
    %v324 = vsel %vm322, %v321, %v243
    %vm325 = vcmask 687104
    %v326 = vsel %vm325, %v323, %v249
    %v327 = vsel %vm325, %v324, %v251
    %vm328 = vcmask 801792
    %v329 = vsel %vm328, %v326, %v257
    %v330 = vsel %vm328, %v327, %v259
    %vm331 = vcmask 916480
    %v332 = vsel %vm331, %v329, %v265
    %v333 = vsel %vm331, %v330, %v267
    %vm334 = vcmask 1031168
    %v335 = vsel %vm334, %v332, %v273
    %v336 = vsel %vm334, %v333, %v275
    %vm337 = vcmask 97280
    %v338 = vsel %vm337, %v273, %v281
    %v339 = vsel %vm337, %v275, %v283
    %vm340 = vcmask 211968
    %v341 = vsel %vm340, %v338, %v289
    %v342 = vsel %vm340, %v339, %v291
    %vm343 = vcmask 326656
    %v344 = vsel %vm343, %v341, %v297
    %v345 = vsel %vm343, %v342, %v299
    %vm346 = vcmask 441344
    %v347 = vsel %vm346, %v344, %v305
    %v348 = vsel %vm346, %v345, %v307
    %353 = vrot.lane.b32.xlu0 %v28, 127
    %v354 = vpop.permute.xlu0 %353
    %355 = vrot.lane.b32.xlu0 %v29, 127
    %v356 = vpop.permute.xlu0 %355
    %357 = vrot.lane.b32.xlu0 %v34, 127
    %v358 = vpop.permute.xlu0 %357
    %359 = vrot.lane.b32.xlu0 %v35, 127
    %v360 = vpop.permute.xlu0 %359
    %v365 = vcombine.high %v354, 0.0
    %v367 = vunpack.c.l.s4 1983009808
    %v368 = vunpack.c.0.s8 %v367
    %v369 = vlaneseq
    %v370 = vshrl.u32 %v369, 7
    %v371 = vsub.s32 %v368, %v370
    %v372 = vrot.slane %v354, %v371
    %v374 = vunpack.c.l.s4 1983009808
    %v375 = vunpack.c.0.s8 %v374
    %v376 = vlaneseq
    %v377 = vshrl.u32 %v376, 7
    %v378 = vsub.s32 %v375, %v377
    %v379 = vrot.slane %v365, %v378
    %v380 = vcombine.high %v372, 0.0
    %v382 = vunpack.c.l.s4 1934713408
    %v383 = vunpack.c.0.s8 %v382
    %v384 = vlaneseq
    %v385 = vshrl.u32 %v384, 7
    %v386 = vsub.s32 %v383, %v385
    %v387 = vrot.slane %v372, %v386
    %v389 = vunpack.c.l.s4 1934713408
    %v390 = vunpack.c.0.s8 %v389
    %v391 = vlaneseq
    %v392 = vshrl.u32 %v391, 7
    %v393 = vsub.s32 %v390, %v392
    %v394 = vrot.slane %v380, %v393
    %v395 = vcombine.high %v379, 0.0
    %v397 = vunpack.c.l.s4 1934713408
    %v398 = vunpack.c.0.s8 %v397
    %v399 = vlaneseq
    %v400 = vshrl.u32 %v399, 7
    %v401 = vsub.s32 %v398, %v400
    %v402 = vrot.slane %v379, %v401
    %v404 = vunpack.c.l.s4 1934713408
    %v405 = vunpack.c.0.s8 %v404
    %v406 = vlaneseq
    %v407 = vshrl.u32 %v406, 7
    %v408 = vsub.s32 %v405, %v407
    %v409 = vrot.slane %v395, %v408
    %v410 = vcombine.high %v387, 0.0
    %v411 = vcombine.high %v394, 0.0
    %v412 = vcombine.high %v402, 0.0
    %v413 = vcombine.high %v409, 0.0
    %v415 = vunpack.c.l.s4 1983009808
    %v416 = vunpack.c.0.s8 %v415
    %v417 = vlaneseq
    %v418 = vshrl.u32 %v417, 7
    %v419 = vsub.s32 %v416, %v418
    %v420 = vrot.slane %v356, %v419
    %v421 = vcombine.high %v420, 0.0
    %v423 = vunpack.c.l.s4 1934713408
    %v424 = vunpack.c.0.s8 %v423
    %v425 = vlaneseq
    %v426 = vshrl.u32 %v425, 7
    %v427 = vsub.s32 %v424, %v426
    %v428 = vrot.slane %v420, %v427
    %v430 = vunpack.c.l.s4 1934713408
    %v431 = vunpack.c.0.s8 %v430
    %v432 = vlaneseq
    %v433 = vshrl.u32 %v432, 7
    %v434 = vsub.s32 %v431, %v433
    %v435 = vrot.slane %v421, %v434
    %v436 = vcombine.high %v356, 0.0
    %v438 = vunpack.c.l.s4 1934713408
    %v439 = vunpack.c.0.s8 %v438
    %v440 = vlaneseq
    %v441 = vshrl.u32 %v440, 7
    %v442 = vsub.s32 %v439, %v441
    %v443 = vrot.slane %v436, %v442
    %v444 = vcombine.high %v428, 0.0
    %v445 = vcombine.high %v435, 0.0
    %v446 = vcombine.high %v443, 0.0
    %v447 = vcombine.high %v358, 0.0
    %v449 = vunpack.c.l.s4 1983009808
    %v450 = vunpack.c.0.s8 %v449
    %v451 = vlaneseq
    %v452 = vshrl.u32 %v451, 7
    %v453 = vsub.s32 %v450, %v452
    %v454 = vrot.slane %v358, %v453
    %v456 = vunpack.c.l.s4 1983009808
    %v457 = vunpack.c.0.s8 %v456
    %v458 = vlaneseq
    %v459 = vshrl.u32 %v458, 7
    %v460 = vsub.s32 %v457, %v459
    %v461 = vrot.slane %v447, %v460
    %v462 = vcombine.high %v454, 0.0
    %v464 = vunpack.c.l.s4 1934713408
    %v465 = vunpack.c.0.s8 %v464
    %v466 = vlaneseq
    %v467 = vshrl.u32 %v466, 7
    %v468 = vsub.s32 %v465, %v467
    %v469 = vrot.slane %v454, %v468
    %v471 = vunpack.c.l.s4 1934713408
    %v472 = vunpack.c.0.s8 %v471
    %v473 = vlaneseq
    %v474 = vshrl.u32 %v473, 7
    %v475 = vsub.s32 %v472, %v474
    %v476 = vrot.slane %v462, %v475
    %v477 = vcombine.high %v461, 0.0
    %v479 = vunpack.c.l.s4 1934713408
    %v480 = vunpack.c.0.s8 %v479
    %v481 = vlaneseq
    %v482 = vshrl.u32 %v481, 7
    %v483 = vsub.s32 %v480, %v482
    %v484 = vrot.slane %v461, %v483
    %v486 = vunpack.c.l.s4 1934713408
    %v487 = vunpack.c.0.s8 %v486
    %v488 = vlaneseq
    %v489 = vshrl.u32 %v488, 7
    %v490 = vsub.s32 %v487, %v489
    %v491 = vrot.slane %v477, %v490
    %v492 = vcombine.high %v469, 0.0
    %v493 = vcombine.high %v476, 0.0
    %v494 = vcombine.high %v484, 0.0
    %v495 = vcombine.high %v491, 0.0
    %v497 = vunpack.c.l.s4 1983009808
    %v498 = vunpack.c.0.s8 %v497
    %v499 = vlaneseq
    %v500 = vshrl.u32 %v499, 7
    %v501 = vsub.s32 %v498, %v500
    %v502 = vrot.slane %v360, %v501
    %v503 = vcombine.high %v502, 0.0
    %v505 = vunpack.c.l.s4 1934713408
    %v506 = vunpack.c.0.s8 %v505
    %v507 = vlaneseq
    %v508 = vshrl.u32 %v507, 7
    %v509 = vsub.s32 %v506, %v508
    %v510 = vrot.slane %v502, %v509
    %v512 = vunpack.c.l.s4 1934713408
    %v513 = vunpack.c.0.s8 %v512
    %v514 = vlaneseq
    %v515 = vshrl.u32 %v514, 7
    %v516 = vsub.s32 %v513, %v515
    %v517 = vrot.slane %v503, %v516
    %v518 = vcombine.high %v360, 0.0
    %v520 = vunpack.c.l.s4 1934713408
    %v521 = vunpack.c.0.s8 %v520
    %v522 = vlaneseq
    %v523 = vshrl.u32 %v522, 7
    %v524 = vsub.s32 %v521, %v523
    %v525 = vrot.slane %v518, %v524
    %v526 = vcombine.high %v510, 0.0
    %v527 = vcombine.high %v517, 0.0
    %v528 = vcombine.high %v525, 0.0
    %531 = vrot.lane.b32.xlu0 %v410, 14
    %v532 = vpop.permute.xlu0 %531
    %533 = vrot.lane.b32.xlu0 %v492, 14
    %v534 = vpop.permute.xlu0 %533
    %539 = vrot.lane.b32.xlu0 %v394, 28
    %v540 = vpop.permute.xlu0 %539
    %541 = vrot.lane.b32.xlu0 %v476, 28
    %v542 = vpop.permute.xlu0 %541
    %547 = vrot.lane.b32.xlu0 %v411, 42
    %v548 = vpop.permute.xlu0 %547
    %549 = vrot.lane.b32.xlu0 %v493, 42
    %v550 = vpop.permute.xlu0 %549
    %555 = vrot.lane.b32.xlu0 %v402, 56
    %v556 = vpop.permute.xlu0 %555
    %557 = vrot.lane.b32.xlu0 %v484, 56
    %v558 = vpop.permute.xlu0 %557
    %563 = vrot.lane.b32.xlu0 %v412, 70
    %v564 = vpop.permute.xlu0 %563
    %565 = vrot.lane.b32.xlu0 %v494, 70
    %v566 = vpop.permute.xlu0 %565
    %571 = vrot.lane.b32.xlu0 %v409, 84
    %v572 = vpop.permute.xlu0 %571
    %573 = vrot.lane.b32.xlu0 %v491, 84
    %v574 = vpop.permute.xlu0 %573
    %579 = vrot.lane.b32.xlu0 %v413, 98
    %v580 = vpop.permute.xlu0 %579
    %581 = vrot.lane.b32.xlu0 %v495, 98
    %v582 = vpop.permute.xlu0 %581
    %587 = vrot.lane.b32.xlu0 %v428, 112
    %v588 = vpop.permute.xlu0 %587
    %589 = vrot.lane.b32.xlu0 %v510, 112
    %v590 = vpop.permute.xlu0 %589
    %595 = vrot.lane.b32.xlu0 %v444, 126
    %v596 = vpop.permute.xlu0 %595
    %597 = vrot.lane.b32.xlu0 %v526, 126
    %v598 = vpop.permute.xlu0 %597
    %603 = vrot.lane.b32.xlu0 %v435, 12
    %v604 = vpop.permute.xlu0 %603
    %605 = vrot.lane.b32.xlu0 %v517, 12
    %v606 = vpop.permute.xlu0 %605
    %611 = vrot.lane.b32.xlu0 %v445, 26
    %v612 = vpop.permute.xlu0 %611
    %613 = vrot.lane.b32.xlu0 %v527, 26
    %v614 = vpop.permute.xlu0 %613
    %619 = vrot.lane.b32.xlu0 %v443, 40
    %v620 = vpop.permute.xlu0 %619
    %621 = vrot.lane.b32.xlu0 %v525, 40
    %v622 = vpop.permute.xlu0 %621
    %627 = vrot.lane.b32.xlu0 %v446, 54
    %v628 = vpop.permute.xlu0 %627
    %629 = vrot.lane.b32.xlu0 %v528, 54
    %v630 = vpop.permute.xlu0 %629
    %v633 = vsel %vm310, %v387, %v532
    %v634 = vsel %vm310, %v469, %v534
    %v635 = vsel %vm313, %v633, %v540
    %v636 = vsel %vm313, %v634, %v542
    %v637 = vsel %vm316, %v635, %v548
    %v638 = vsel %vm316, %v636, %v550
    %v639 = vsel %vm319, %v637, %v556
    %v640 = vsel %vm319, %v638, %v558
    %v641 = vsel %vm322, %v639, %v564
    %v642 = vsel %vm322, %v640, %v566
    %v643 = vsel %vm325, %v641, %v572
    %v644 = vsel %vm325, %v642, %v574
    %v645 = vsel %vm328, %v643, %v580
    %v646 = vsel %vm328, %v644, %v582
    %v647 = vsel %vm331, %v645, %v588
    %v648 = vsel %vm331, %v646, %v590
    %v649 = vsel %vm334, %v647, %v596
    %v650 = vsel %vm334, %v648, %v598
    %v651 = vsel %vm337, %v596, %v604
    %v652 = vsel %vm337, %v598, %v606
    %v653 = vsel %vm340, %v651, %v612
    %v654 = vsel %vm340, %v652, %v614
    %v655 = vsel %vm343, %v653, %v620
    %v656 = vsel %vm343, %v654, %v622
    %v657 = vsel %vm346, %v655, %v628
    %v658 = vsel %vm346, %v656, %v630
    %659 = vrot.lane.b32.xlu0 %v28, 126
    %v660 = vpop.permute.xlu0 %659
    %661 = vrot.lane.b32.xlu0 %v29, 126
    %v662 = vpop.permute.xlu0 %661
    %663 = vrot.lane.b32.xlu0 %v34, 126
    %v664 = vpop.permute.xlu0 %663
    %665 = vrot.lane.b32.xlu0 %v35, 126
    %v666 = vpop.permute.xlu0 %665
    %v671 = vcombine.high %v660, 0.0
    %v673 = vunpack.c.l.s4 1983009808
    %v674 = vunpack.c.0.s8 %v673
    %v675 = vlaneseq
    %v676 = vshrl.u32 %v675, 7
    %v677 = vsub.s32 %v674, %v676
    %v678 = vrot.slane %v660, %v677
    %v680 = vunpack.c.l.s4 1983009808
    %v681 = vunpack.c.0.s8 %v680
    %v682 = vlaneseq
    %v683 = vshrl.u32 %v682, 7
    %v684 = vsub.s32 %v681, %v683
    %v685 = vrot.slane %v671, %v684
    %v686 = vcombine.high %v678, 0.0
    %v688 = vunpack.c.l.s4 1934713408
    %v689 = vunpack.c.0.s8 %v688
    %v690 = vlaneseq
    %v691 = vshrl.u32 %v690, 7
    %v692 = vsub.s32 %v689, %v691
    %v693 = vrot.slane %v678, %v692
    %v695 = vunpack.c.l.s4 1934713408
    %v696 = vunpack.c.0.s8 %v695
    %v697 = vlaneseq
    %v698 = vshrl.u32 %v697, 7
    %v699 = vsub.s32 %v696, %v698
    %v700 = vrot.slane %v686, %v699
    %v701 = vcombine.high %v685, 0.0
    %v703 = vunpack.c.l.s4 1934713408
    %v704 = vunpack.c.0.s8 %v703
    %v705 = vlaneseq
    %v706 = vshrl.u32 %v705, 7
    %v707 = vsub.s32 %v704, %v706
    %v708 = vrot.slane %v685, %v707
    %v710 = vunpack.c.l.s4 1934713408
    %v711 = vunpack.c.0.s8 %v710
    %v712 = vlaneseq
    %v713 = vshrl.u32 %v712, 7
    %v714 = vsub.s32 %v711, %v713
    %v715 = vrot.slane %v701, %v714
    %v716 = vcombine.high %v693, 0.0
    %v717 = vcombine.high %v700, 0.0
    %v718 = vcombine.high %v708, 0.0
    %v719 = vcombine.high %v715, 0.0
    %v721 = vunpack.c.l.s4 1983009808
    %v722 = vunpack.c.0.s8 %v721
    %v723 = vlaneseq
    %v724 = vshrl.u32 %v723, 7
    %v725 = vsub.s32 %v722, %v724
    %v726 = vrot.slane %v662, %v725
    %v727 = vcombine.high %v726, 0.0
    %v729 = vunpack.c.l.s4 1934713408
    %v730 = vunpack.c.0.s8 %v729
    %v731 = vlaneseq
    %v732 = vshrl.u32 %v731, 7
    %v733 = vsub.s32 %v730, %v732
    %v734 = vrot.slane %v726, %v733
    %v736 = vunpack.c.l.s4 1934713408
    %v737 = vunpack.c.0.s8 %v736
    %v738 = vlaneseq
    %v739 = vshrl.u32 %v738, 7
    %v740 = vsub.s32 %v737, %v739
    %v741 = vrot.slane %v727, %v740
    %v742 = vcombine.high %v662, 0.0
    %v744 = vunpack.c.l.s4 1934713408
    %v745 = vunpack.c.0.s8 %v744
    %v746 = vlaneseq
    %v747 = vshrl.u32 %v746, 7
    %v748 = vsub.s32 %v745, %v747
    %v749 = vrot.slane %v742, %v748
    %v750 = vcombine.high %v734, 0.0
    %v751 = vcombine.high %v741, 0.0
    %v752 = vcombine.high %v749, 0.0
    %v753 = vcombine.high %v664, 0.0
    %v755 = vunpack.c.l.s4 1983009808
    %v756 = vunpack.c.0.s8 %v755
    %v757 = vlaneseq
    %v758 = vshrl.u32 %v757, 7
    %v759 = vsub.s32 %v756, %v758
    %v760 = vrot.slane %v664, %v759
    %v762 = vunpack.c.l.s4 1983009808
    %v763 = vunpack.c.0.s8 %v762
    %v764 = vlaneseq
    %v765 = vshrl.u32 %v764, 7
    %v766 = vsub.s32 %v763, %v765
    %v767 = vrot.slane %v753, %v766
    %v768 = vcombine.high %v760, 0.0
    %v770 = vunpack.c.l.s4 1934713408
    %v771 = vunpack.c.0.s8 %v770
    %v772 = vlaneseq
    %v773 = vshrl.u32 %v772, 7
    %v774 = vsub.s32 %v771, %v773
    %v775 = vrot.slane %v760, %v774
    %v777 = vunpack.c.l.s4 1934713408
    %v778 = vunpack.c.0.s8 %v777
    %v779 = vlaneseq
    %v780 = vshrl.u32 %v779, 7
    %v781 = vsub.s32 %v778, %v780
    %v782 = vrot.slane %v768, %v781
    %v783 = vcombine.high %v767, 0.0
    %v785 = vunpack.c.l.s4 1934713408
    %v786 = vunpack.c.0.s8 %v785
    %v787 = vlaneseq
    %v788 = vshrl.u32 %v787, 7
    %v789 = vsub.s32 %v786, %v788
    %v790 = vrot.slane %v767, %v789
    %v792 = vunpack.c.l.s4 1934713408
    %v793 = vunpack.c.0.s8 %v792
    %v794 = vlaneseq
    %v795 = vshrl.u32 %v794, 7
    %v796 = vsub.s32 %v793, %v795
    %v797 = vrot.slane %v783, %v796
    %v798 = vcombine.high %v775, 0.0
    %v799 = vcombine.high %v782, 0.0
    %v800 = vcombine.high %v790, 0.0
    %v801 = vcombine.high %v797, 0.0
    %v803 = vunpack.c.l.s4 1983009808
    %v804 = vunpack.c.0.s8 %v803
    %v805 = vlaneseq
    %v806 = vshrl.u32 %v805, 7
    %v807 = vsub.s32 %v804, %v806
    %v808 = vrot.slane %v666, %v807
    %v809 = vcombine.high %v808, 0.0
    %v811 = vunpack.c.l.s4 1934713408
    %v812 = vunpack.c.0.s8 %v811
    %v813 = vlaneseq
    %v814 = vshrl.u32 %v813, 7
    %v815 = vsub.s32 %v812, %v814
    %v816 = vrot.slane %v808, %v815
    %v818 = vunpack.c.l.s4 1934713408
    %v819 = vunpack.c.0.s8 %v818
    %v820 = vlaneseq
    %v821 = vshrl.u32 %v820, 7
    %v822 = vsub.s32 %v819, %v821
    %v823 = vrot.slane %v809, %v822
    %v824 = vcombine.high %v666, 0.0
    %v826 = vunpack.c.l.s4 1934713408
    %v827 = vunpack.c.0.s8 %v826
    %v828 = vlaneseq
    %v829 = vshrl.u32 %v828, 7
    %v830 = vsub.s32 %v827, %v829
    %v831 = vrot.slane %v824, %v830
    %v832 = vcombine.high %v816, 0.0
    %v833 = vcombine.high %v823, 0.0
    %v834 = vcombine.high %v831, 0.0
    %837 = vrot.lane.b32.xlu0 %v716, 14
    %v838 = vpop.permute.xlu0 %837
    %839 = vrot.lane.b32.xlu0 %v798, 14
    %v840 = vpop.permute.xlu0 %839
    %845 = vrot.lane.b32.xlu0 %v700, 28
    %v846 = vpop.permute.xlu0 %845
    %847 = vrot.lane.b32.xlu0 %v782, 28
    %v848 = vpop.permute.xlu0 %847
    %853 = vrot.lane.b32.xlu0 %v717, 42
    %v854 = vpop.permute.xlu0 %853
    %855 = vrot.lane.b32.xlu0 %v799, 42
    %v856 = vpop.permute.xlu0 %855
    %861 = vrot.lane.b32.xlu0 %v708, 56
    %v862 = vpop.permute.xlu0 %861
    %863 = vrot.lane.b32.xlu0 %v790, 56
    %v864 = vpop.permute.xlu0 %863
    %869 = vrot.lane.b32.xlu0 %v718, 70
    %v870 = vpop.permute.xlu0 %869
    %871 = vrot.lane.b32.xlu0 %v800, 70
    %v872 = vpop.permute.xlu0 %871
    %877 = vrot.lane.b32.xlu0 %v715, 84
    %v878 = vpop.permute.xlu0 %877
    %879 = vrot.lane.b32.xlu0 %v797, 84
    %v880 = vpop.permute.xlu0 %879
    %885 = vrot.lane.b32.xlu0 %v719, 98
    %v886 = vpop.permute.xlu0 %885
    %887 = vrot.lane.b32.xlu0 %v801, 98
    %v888 = vpop.permute.xlu0 %887
    %893 = vrot.lane.b32.xlu0 %v734, 112
    %v894 = vpop.permute.xlu0 %893
    %895 = vrot.lane.b32.xlu0 %v816, 112
    %v896 = vpop.permute.xlu0 %895
    %901 = vrot.lane.b32.xlu0 %v750, 126
    %v902 = vpop.permute.xlu0 %901
    %903 = vrot.lane.b32.xlu0 %v832, 126
    %v904 = vpop.permute.xlu0 %903
    %909 = vrot.lane.b32.xlu0 %v741, 12
    %v910 = vpop.permute.xlu0 %909
    %911 = vrot.lane.b32.xlu0 %v823, 12
    %v912 = vpop.permute.xlu0 %911
    %917 = vrot.lane.b32.xlu0 %v751, 26
    %v918 = vpop.permute.xlu0 %917
    %919 = vrot.lane.b32.xlu0 %v833, 26
    %v920 = vpop.permute.xlu0 %919
    %925 = vrot.lane.b32.xlu0 %v749, 40
    %v926 = vpop.permute.xlu0 %925
    %927 = vrot.lane.b32.xlu0 %v831, 40
    %v928 = vpop.permute.xlu0 %927
    %933 = vrot.lane.b32.xlu0 %v752, 54
    %v934 = vpop.permute.xlu0 %933
    %935 = vrot.lane.b32.xlu0 %v834, 54
    %v936 = vpop.permute.xlu0 %935
    %v939 = vsel %vm310, %v693, %v838
    %v940 = vsel %vm310, %v775, %v840
    %v941 = vsel %vm313, %v939, %v846
    %v942 = vsel %vm313, %v940, %v848
    %v943 = vsel %vm316, %v941, %v854
    %v944 = vsel %vm316, %v942, %v856
    %v945 = vsel %vm319, %v943, %v862
    %v946 = vsel %vm319, %v944, %v864
    %v947 = vsel %vm322, %v945, %v870
    %v948 = vsel %vm322, %v946, %v872
    %v949 = vsel %vm325, %v947, %v878
    %v950 = vsel %vm325, %v948, %v880
    %v951 = vsel %vm328, %v949, %v886
    %v952 = vsel %vm328, %v950, %v888
    %v953 = vsel %vm331, %v951, %v894
    %v954 = vsel %vm331, %v952, %v896
    %v955 = vsel %vm334, %v953, %v902
    %v956 = vsel %vm334, %v954, %v904
    %v957 = vsel %vm337, %v902, %v910
    %v958 = vsel %vm337, %v904, %v912
    %v959 = vsel %vm340, %v957, %v918
    %v960 = vsel %vm340, %v958, %v920
    %v961 = vsel %vm343, %v959, %v926
    %v962 = vsel %vm343, %v960, %v928
    %v963 = vsel %vm346, %v961, %v934
    %v964 = vsel %vm346, %v962, %v936
    %vm965 = vcmask 1046528
    %v966 = vrot.slane %v28, 1
    %v967 = vrot.slane %v29, 1
    %v968 = vsel %vm965, %v966, %v967
    %v969 = vrot.slane %v34, 1
    %v970 = vrot.slane %v35, 1
    %v971 = vsel %vm965, %v969, %v970
    %v976 = vcombine.high %v968, 0.0
    %v978 = vunpack.c.l.s4 1983009808
    %v979 = vunpack.c.0.s8 %v978
    %v980 = vlaneseq
    %v981 = vshrl.u32 %v980, 7
    %v982 = vsub.s32 %v979, %v981
    %v983 = vrot.slane %v968, %v982
    %v985 = vunpack.c.l.s4 1983009808
    %v986 = vunpack.c.0.s8 %v985
    %v987 = vlaneseq
    %v988 = vshrl.u32 %v987, 7
    %v989 = vsub.s32 %v986, %v988
    %v990 = vrot.slane %v976, %v989
    %v991 = vcombine.high %v983, 0.0
    %v993 = vunpack.c.l.s4 1934713408
    %v994 = vunpack.c.0.s8 %v993
    %v995 = vlaneseq
    %v996 = vshrl.u32 %v995, 7
    %v997 = vsub.s32 %v994, %v996
    %v998 = vrot.slane %v983, %v997
    %v1000 = vunpack.c.l.s4 1934713408
    %v1001 = vunpack.c.0.s8 %v1000
    %v1002 = vlaneseq
    %v1003 = vshrl.u32 %v1002, 7
    %v1004 = vsub.s32 %v1001, %v1003
    %v1005 = vrot.slane %v991, %v1004
    %v1006 = vcombine.high %v990, 0.0
    %v1008 = vunpack.c.l.s4 1934713408
    %v1009 = vunpack.c.0.s8 %v1008
    %v1010 = vlaneseq
    %v1011 = vshrl.u32 %v1010, 7
    %v1012 = vsub.s32 %v1009, %v1011
    %v1013 = vrot.slane %v990, %v1012
    %v1015 = vunpack.c.l.s4 1934713408
    %v1016 = vunpack.c.0.s8 %v1015
    %v1017 = vlaneseq
    %v1018 = vshrl.u32 %v1017, 7
    %v1019 = vsub.s32 %v1016, %v1018
    %v1020 = vrot.slane %v1006, %v1019
    %v1021 = vcombine.high %v998, 0.0
    %v1022 = vcombine.high %v1005, 0.0
    %v1023 = vcombine.high %v1013, 0.0
    %v1024 = vcombine.high %v1020, 0.0
    %v1026 = vunpack.c.l.s4 1983009808
    %v1027 = vunpack.c.0.s8 %v1026
    %v1028 = vlaneseq
    %v1029 = vshrl.u32 %v1028, 7
    %v1030 = vsub.s32 %v1027, %v1029
    %v1031 = vrot.slane %v967, %v1030
    %v1032 = vcombine.high %v1031, 0.0
    %v1034 = vunpack.c.l.s4 1934713408
    %v1035 = vunpack.c.0.s8 %v1034
    %v1036 = vlaneseq
    %v1037 = vshrl.u32 %v1036, 7
    %v1038 = vsub.s32 %v1035, %v1037
    %v1039 = vrot.slane %v1031, %v1038
    %v1041 = vunpack.c.l.s4 1934713408
    %v1042 = vunpack.c.0.s8 %v1041
    %v1043 = vlaneseq
    %v1044 = vshrl.u32 %v1043, 7
    %v1045 = vsub.s32 %v1042, %v1044
    %v1046 = vrot.slane %v1032, %v1045
    %v1047 = vcombine.high %v967, 0.0
    %v1049 = vunpack.c.l.s4 1934713408
    %v1050 = vunpack.c.0.s8 %v1049
    %v1051 = vlaneseq
    %v1052 = vshrl.u32 %v1051, 7
    %v1053 = vsub.s32 %v1050, %v1052
    %v1054 = vrot.slane %v1047, %v1053
    %v1055 = vcombine.high %v1039, 0.0
    %v1056 = vcombine.high %v1046, 0.0
    %v1057 = vcombine.high %v1054, 0.0
    %v1058 = vcombine.high %v971, 0.0
    %v1060 = vunpack.c.l.s4 1983009808
    %v1061 = vunpack.c.0.s8 %v1060
    %v1062 = vlaneseq
    %v1063 = vshrl.u32 %v1062, 7
    %v1064 = vsub.s32 %v1061, %v1063
    %v1065 = vrot.slane %v971, %v1064
    %v1067 = vunpack.c.l.s4 1983009808
    %v1068 = vunpack.c.0.s8 %v1067
    %v1069 = vlaneseq
    %v1070 = vshrl.u32 %v1069, 7
    %v1071 = vsub.s32 %v1068, %v1070
    %v1072 = vrot.slane %v1058, %v1071
    %v1073 = vcombine.high %v1065, 0.0
    %v1075 = vunpack.c.l.s4 1934713408
    %v1076 = vunpack.c.0.s8 %v1075
    %v1077 = vlaneseq
    %v1078 = vshrl.u32 %v1077, 7
    %v1079 = vsub.s32 %v1076, %v1078
    %v1080 = vrot.slane %v1065, %v1079
    %v1082 = vunpack.c.l.s4 1934713408
    %v1083 = vunpack.c.0.s8 %v1082
    %v1084 = vlaneseq
    %v1085 = vshrl.u32 %v1084, 7
    %v1086 = vsub.s32 %v1083, %v1085
    %v1087 = vrot.slane %v1073, %v1086
    %v1088 = vcombine.high %v1072, 0.0
    %v1090 = vunpack.c.l.s4 1934713408
    %v1091 = vunpack.c.0.s8 %v1090
    %v1092 = vlaneseq
    %v1093 = vshrl.u32 %v1092, 7
    %v1094 = vsub.s32 %v1091, %v1093
    %v1095 = vrot.slane %v1072, %v1094
    %v1097 = vunpack.c.l.s4 1934713408
    %v1098 = vunpack.c.0.s8 %v1097
    %v1099 = vlaneseq
    %v1100 = vshrl.u32 %v1099, 7
    %v1101 = vsub.s32 %v1098, %v1100
    %v1102 = vrot.slane %v1088, %v1101
    %v1103 = vcombine.high %v1080, 0.0
    %v1104 = vcombine.high %v1087, 0.0
    %v1105 = vcombine.high %v1095, 0.0
    %v1106 = vcombine.high %v1102, 0.0
    %v1108 = vunpack.c.l.s4 1983009808
    %v1109 = vunpack.c.0.s8 %v1108
    %v1110 = vlaneseq
    %v1111 = vshrl.u32 %v1110, 7
    %v1112 = vsub.s32 %v1109, %v1111
    %v1113 = vrot.slane %v970, %v1112
    %v1114 = vcombine.high %v1113, 0.0
    %v1116 = vunpack.c.l.s4 1934713408
    %v1117 = vunpack.c.0.s8 %v1116
    %v1118 = vlaneseq
    %v1119 = vshrl.u32 %v1118, 7
    %v1120 = vsub.s32 %v1117, %v1119
    %v1121 = vrot.slane %v1113, %v1120
    %v1123 = vunpack.c.l.s4 1934713408
    %v1124 = vunpack.c.0.s8 %v1123
    %v1125 = vlaneseq
    %v1126 = vshrl.u32 %v1125, 7
    %v1127 = vsub.s32 %v1124, %v1126
    %v1128 = vrot.slane %v1114, %v1127
    %v1129 = vcombine.high %v970, 0.0
    %v1131 = vunpack.c.l.s4 1934713408
    %v1132 = vunpack.c.0.s8 %v1131
    %v1133 = vlaneseq
    %v1134 = vshrl.u32 %v1133, 7
    %v1135 = vsub.s32 %v1132, %v1134
    %v1136 = vrot.slane %v1129, %v1135
    %v1137 = vcombine.high %v1121, 0.0
    %v1138 = vcombine.high %v1128, 0.0
    %v1139 = vcombine.high %v1136, 0.0
    %1142 = vrot.lane.b32.xlu0 %v1021, 14
    %v1143 = vpop.permute.xlu0 %1142
    %1144 = vrot.lane.b32.xlu0 %v1103, 14
    %v1145 = vpop.permute.xlu0 %1144
    %1150 = vrot.lane.b32.xlu0 %v1005, 28
    %v1151 = vpop.permute.xlu0 %1150
    %1152 = vrot.lane.b32.xlu0 %v1087, 28
    %v1153 = vpop.permute.xlu0 %1152
    %1158 = vrot.lane.b32.xlu0 %v1022, 42
    %v1159 = vpop.permute.xlu0 %1158
    %1160 = vrot.lane.b32.xlu0 %v1104, 42
    %v1161 = vpop.permute.xlu0 %1160
    %1166 = vrot.lane.b32.xlu0 %v1013, 56
    %v1167 = vpop.permute.xlu0 %1166
    %1168 = vrot.lane.b32.xlu0 %v1095, 56
    %v1169 = vpop.permute.xlu0 %1168
    %1174 = vrot.lane.b32.xlu0 %v1023, 70
    %v1175 = vpop.permute.xlu0 %1174
    %1176 = vrot.lane.b32.xlu0 %v1105, 70
    %v1177 = vpop.permute.xlu0 %1176
    %1182 = vrot.lane.b32.xlu0 %v1020, 84
    %v1183 = vpop.permute.xlu0 %1182
    %1184 = vrot.lane.b32.xlu0 %v1102, 84
    %v1185 = vpop.permute.xlu0 %1184
    %1190 = vrot.lane.b32.xlu0 %v1024, 98
    %v1191 = vpop.permute.xlu0 %1190
    %1192 = vrot.lane.b32.xlu0 %v1106, 98
    %v1193 = vpop.permute.xlu0 %1192
    %1198 = vrot.lane.b32.xlu0 %v1039, 112
    %v1199 = vpop.permute.xlu0 %1198
    %1200 = vrot.lane.b32.xlu0 %v1121, 112
    %v1201 = vpop.permute.xlu0 %1200
    %1206 = vrot.lane.b32.xlu0 %v1055, 126
    %v1207 = vpop.permute.xlu0 %1206
    %1208 = vrot.lane.b32.xlu0 %v1137, 126
    %v1209 = vpop.permute.xlu0 %1208
    %1214 = vrot.lane.b32.xlu0 %v1046, 12
    %v1215 = vpop.permute.xlu0 %1214
    %1216 = vrot.lane.b32.xlu0 %v1128, 12
    %v1217 = vpop.permute.xlu0 %1216
    %1222 = vrot.lane.b32.xlu0 %v1056, 26
    %v1223 = vpop.permute.xlu0 %1222
    %1224 = vrot.lane.b32.xlu0 %v1138, 26
    %v1225 = vpop.permute.xlu0 %1224
    %1230 = vrot.lane.b32.xlu0 %v1054, 40
    %v1231 = vpop.permute.xlu0 %1230
    %1232 = vrot.lane.b32.xlu0 %v1136, 40
    %v1233 = vpop.permute.xlu0 %1232
    %1238 = vrot.lane.b32.xlu0 %v1057, 54
    %v1239 = vpop.permute.xlu0 %1238
    %1240 = vrot.lane.b32.xlu0 %v1139, 54
    %v1241 = vpop.permute.xlu0 %1240
    %v1244 = vsel %vm310, %v998, %v1143
    %v1245 = vsel %vm310, %v1080, %v1145
    %v1246 = vsel %vm313, %v1244, %v1151
    %v1247 = vsel %vm313, %v1245, %v1153
    %v1248 = vsel %vm316, %v1246, %v1159
    %v1249 = vsel %vm316, %v1247, %v1161
    %v1250 = vsel %vm319, %v1248, %v1167
    %v1251 = vsel %vm319, %v1249, %v1169
    %v1252 = vsel %vm322, %v1250, %v1175
    %v1253 = vsel %vm322, %v1251, %v1177
    %v1254 = vsel %vm325, %v1252, %v1183
    %v1255 = vsel %vm325, %v1253, %v1185
    %v1256 = vsel %vm328, %v1254, %v1191
    %v1257 = vsel %vm328, %v1255, %v1193
    %v1258 = vsel %vm331, %v1256, %v1199
    %v1259 = vsel %vm331, %v1257, %v1201
    %v1260 = vsel %vm334, %v1258, %v1207
    %v1261 = vsel %vm334, %v1259, %v1209
    %v1262 = vsel %vm337, %v1207, %v1215
    %v1263 = vsel %vm337, %v1209, %v1217
    %v1264 = vsel %vm340, %v1262, %v1223
    %v1265 = vsel %vm340, %v1263, %v1225
    %v1266 = vsel %vm343, %v1264, %v1231
    %v1267 = vsel %vm343, %v1265, %v1233
    %v1268 = vsel %vm346, %v1266, %v1239
    %v1269 = vsel %vm346, %v1267, %v1241
    %1270 = vrot.lane.b32.xlu0 %v968, 127
    %v1271 = vpop.permute.xlu0 %1270
    %1272 = vrot.lane.b32.xlu0 %v967, 127
    %v1273 = vpop.permute.xlu0 %1272
    %1274 = vrot.lane.b32.xlu0 %v971, 127
    %v1275 = vpop.permute.xlu0 %1274
    %1276 = vrot.lane.b32.xlu0 %v970, 127
    %v1277 = vpop.permute.xlu0 %1276
    %v1282 = vcombine.high %v1271, 0.0
    %v1284 = vunpack.c.l.s4 1983009808
    %v1285 = vunpack.c.0.s8 %v1284
    %v1286 = vlaneseq
    %v1287 = vshrl.u32 %v1286, 7
    %v1288 = vsub.s32 %v1285, %v1287
    %v1289 = vrot.slane %v1271, %v1288
    %v1291 = vunpack.c.l.s4 1983009808
    %v1292 = vunpack.c.0.s8 %v1291
    %v1293 = vlaneseq
    %v1294 = vshrl.u32 %v1293, 7
    %v1295 = vsub.s32 %v1292, %v1294
    %v1296 = vrot.slane %v1282, %v1295
    %v1297 = vcombine.high %v1289, 0.0
    %v1299 = vunpack.c.l.s4 1934713408
    %v1300 = vunpack.c.0.s8 %v1299
    %v1301 = vlaneseq
    %v1302 = vshrl.u32 %v1301, 7
    %v1303 = vsub.s32 %v1300, %v1302
    %v1304 = vrot.slane %v1289, %v1303
    %v1306 = vunpack.c.l.s4 1934713408
    %v1307 = vunpack.c.0.s8 %v1306
    %v1308 = vlaneseq
    %v1309 = vshrl.u32 %v1308, 7
    %v1310 = vsub.s32 %v1307, %v1309
    %v1311 = vrot.slane %v1297, %v1310
    %v1312 = vcombine.high %v1296, 0.0
    %v1314 = vunpack.c.l.s4 1934713408
    %v1315 = vunpack.c.0.s8 %v1314
    %v1316 = vlaneseq
    %v1317 = vshrl.u32 %v1316, 7
    %v1318 = vsub.s32 %v1315, %v1317
    %v1319 = vrot.slane %v1296, %v1318
    %v1321 = vunpack.c.l.s4 1934713408
    %v1322 = vunpack.c.0.s8 %v1321
    %v1323 = vlaneseq
    %v1324 = vshrl.u32 %v1323, 7
    %v1325 = vsub.s32 %v1322, %v1324
    %v1326 = vrot.slane %v1312, %v1325
    %v1327 = vcombine.high %v1304, 0.0
    %v1328 = vcombine.high %v1311, 0.0
    %v1329 = vcombine.high %v1319, 0.0
    %v1330 = vcombine.high %v1326, 0.0
    %v1332 = vunpack.c.l.s4 1983009808
    %v1333 = vunpack.c.0.s8 %v1332
    %v1334 = vlaneseq
    %v1335 = vshrl.u32 %v1334, 7
    %v1336 = vsub.s32 %v1333, %v1335
    %v1337 = vrot.slane %v1273, %v1336
    %v1338 = vcombine.high %v1337, 0.0
    %v1340 = vunpack.c.l.s4 1934713408
    %v1341 = vunpack.c.0.s8 %v1340
    %v1342 = vlaneseq
    %v1343 = vshrl.u32 %v1342, 7
    %v1344 = vsub.s32 %v1341, %v1343
    %v1345 = vrot.slane %v1337, %v1344
    %v1347 = vunpack.c.l.s4 1934713408
    %v1348 = vunpack.c.0.s8 %v1347
    %v1349 = vlaneseq
    %v1350 = vshrl.u32 %v1349, 7
    %v1351 = vsub.s32 %v1348, %v1350
    %v1352 = vrot.slane %v1338, %v1351
    %v1353 = vcombine.high %v1273, 0.0
    %v1355 = vunpack.c.l.s4 1934713408
    %v1356 = vunpack.c.0.s8 %v1355
    %v1357 = vlaneseq
    %v1358 = vshrl.u32 %v1357, 7
    %v1359 = vsub.s32 %v1356, %v1358
    %v1360 = vrot.slane %v1353, %v1359
    %v1361 = vcombine.high %v1345, 0.0
    %v1362 = vcombine.high %v1352, 0.0
    %v1363 = vcombine.high %v1360, 0.0
    %v1364 = vcombine.high %v1275, 0.0
    %v1366 = vunpack.c.l.s4 1983009808
    %v1367 = vunpack.c.0.s8 %v1366
    %v1368 = vlaneseq
    %v1369 = vshrl.u32 %v1368, 7
    %v1370 = vsub.s32 %v1367, %v1369
    %v1371 = vrot.slane %v1275, %v1370
    %v1373 = vunpack.c.l.s4 1983009808
    %v1374 = vunpack.c.0.s8 %v1373
    %v1375 = vlaneseq
    %v1376 = vshrl.u32 %v1375, 7
    %v1377 = vsub.s32 %v1374, %v1376
    %v1378 = vrot.slane %v1364, %v1377
    %v1379 = vcombine.high %v1371, 0.0
    %v1381 = vunpack.c.l.s4 1934713408
    %v1382 = vunpack.c.0.s8 %v1381
    %v1383 = vlaneseq
    %v1384 = vshrl.u32 %v1383, 7
    %v1385 = vsub.s32 %v1382, %v1384
    %v1386 = vrot.slane %v1371, %v1385
    %v1388 = vunpack.c.l.s4 1934713408
    %v1389 = vunpack.c.0.s8 %v1388
    %v1390 = vlaneseq
    %v1391 = vshrl.u32 %v1390, 7
    %v1392 = vsub.s32 %v1389, %v1391
    %v1393 = vrot.slane %v1379, %v1392
    %v1394 = vcombine.high %v1378, 0.0
    %v1396 = vunpack.c.l.s4 1934713408
    %v1397 = vunpack.c.0.s8 %v1396
    %v1398 = vlaneseq
    %v1399 = vshrl.u32 %v1398, 7
    %v1400 = vsub.s32 %v1397, %v1399
    %v1401 = vrot.slane %v1378, %v1400
    %v1403 = vunpack.c.l.s4 1934713408
    %v1404 = vunpack.c.0.s8 %v1403
    %v1405 = vlaneseq
    %v1406 = vshrl.u32 %v1405, 7
    %v1407 = vsub.s32 %v1404, %v1406
    %v1408 = vrot.slane %v1394, %v1407
    %v1409 = vcombine.high %v1386, 0.0
    %v1410 = vcombine.high %v1393, 0.0
    %v1411 = vcombine.high %v1401, 0.0
    %v1412 = vcombine.high %v1408, 0.0
    %v1414 = vunpack.c.l.s4 1983009808
    %v1415 = vunpack.c.0.s8 %v1414
    %v1416 = vlaneseq
    %v1417 = vshrl.u32 %v1416, 7
    %v1418 = vsub.s32 %v1415, %v1417
    %v1419 = vrot.slane %v1277, %v1418
    %v1420 = vcombine.high %v1419, 0.0
    %v1422 = vunpack.c.l.s4 1934713408
    %v1423 = vunpack.c.0.s8 %v1422
    %v1424 = vlaneseq
    %v1425 = vshrl.u32 %v1424, 7
    %v1426 = vsub.s32 %v1423, %v1425
    %v1427 = vrot.slane %v1419, %v1426
    %v1429 = vunpack.c.l.s4 1934713408
    %v1430 = vunpack.c.0.s8 %v1429
    %v1431 = vlaneseq
    %v1432 = vshrl.u32 %v1431, 7
    %v1433 = vsub.s32 %v1430, %v1432
    %v1434 = vrot.slane %v1420, %v1433
    %v1435 = vcombine.high %v1277, 0.0
    %v1437 = vunpack.c.l.s4 1934713408
    %v1438 = vunpack.c.0.s8 %v1437
    %v1439 = vlaneseq
    %v1440 = vshrl.u32 %v1439, 7
    %v1441 = vsub.s32 %v1438, %v1440
    %v1442 = vrot.slane %v1435, %v1441
    %v1443 = vcombine.high %v1427, 0.0
    %v1444 = vcombine.high %v1434, 0.0
    %v1445 = vcombine.high %v1442, 0.0
    %1448 = vrot.lane.b32.xlu0 %v1327, 14
    %v1449 = vpop.permute.xlu0 %1448
    %1450 = vrot.lane.b32.xlu0 %v1409, 14
    %v1451 = vpop.permute.xlu0 %1450
    %1456 = vrot.lane.b32.xlu0 %v1311, 28
    %v1457 = vpop.permute.xlu0 %1456
    %1458 = vrot.lane.b32.xlu0 %v1393, 28
    %v1459 = vpop.permute.xlu0 %1458
    %1464 = vrot.lane.b32.xlu0 %v1328, 42
    %v1465 = vpop.permute.xlu0 %1464
    %1466 = vrot.lane.b32.xlu0 %v1410, 42
    %v1467 = vpop.permute.xlu0 %1466
    %1472 = vrot.lane.b32.xlu0 %v1319, 56
    %v1473 = vpop.permute.xlu0 %1472
    %1474 = vrot.lane.b32.xlu0 %v1401, 56
    %v1475 = vpop.permute.xlu0 %1474
    %1480 = vrot.lane.b32.xlu0 %v1329, 70
    %v1481 = vpop.permute.xlu0 %1480
    %1482 = vrot.lane.b32.xlu0 %v1411, 70
    %v1483 = vpop.permute.xlu0 %1482
    %1488 = vrot.lane.b32.xlu0 %v1326, 84
    %v1489 = vpop.permute.xlu0 %1488
    %1490 = vrot.lane.b32.xlu0 %v1408, 84
    %v1491 = vpop.permute.xlu0 %1490
    %1496 = vrot.lane.b32.xlu0 %v1330, 98
    %v1497 = vpop.permute.xlu0 %1496
    %1498 = vrot.lane.b32.xlu0 %v1412, 98
    %v1499 = vpop.permute.xlu0 %1498
    %1504 = vrot.lane.b32.xlu0 %v1345, 112
    %v1505 = vpop.permute.xlu0 %1504
    %1506 = vrot.lane.b32.xlu0 %v1427, 112
    %v1507 = vpop.permute.xlu0 %1506
    %1512 = vrot.lane.b32.xlu0 %v1361, 126
    %v1513 = vpop.permute.xlu0 %1512
    %1514 = vrot.lane.b32.xlu0 %v1443, 126
    %v1515 = vpop.permute.xlu0 %1514
    %1520 = vrot.lane.b32.xlu0 %v1352, 12
    %v1521 = vpop.permute.xlu0 %1520
    %1522 = vrot.lane.b32.xlu0 %v1434, 12
    %v1523 = vpop.permute.xlu0 %1522
    %1528 = vrot.lane.b32.xlu0 %v1362, 26
    %v1529 = vpop.permute.xlu0 %1528
    %1530 = vrot.lane.b32.xlu0 %v1444, 26
    %v1531 = vpop.permute.xlu0 %1530
    %1536 = vrot.lane.b32.xlu0 %v1360, 40
    %v1537 = vpop.permute.xlu0 %1536
    %1538 = vrot.lane.b32.xlu0 %v1442, 40
    %v1539 = vpop.permute.xlu0 %1538
    %1544 = vrot.lane.b32.xlu0 %v1363, 54
    %v1545 = vpop.permute.xlu0 %1544
    %1546 = vrot.lane.b32.xlu0 %v1445, 54
    %v1547 = vpop.permute.xlu0 %1546
    %v1550 = vsel %vm310, %v1304, %v1449
    %v1551 = vsel %vm310, %v1386, %v1451
    %v1552 = vsel %vm313, %v1550, %v1457
    %v1553 = vsel %vm313, %v1551, %v1459
    %v1554 = vsel %vm316, %v1552, %v1465
    %v1555 = vsel %vm316, %v1553, %v1467
    %v1556 = vsel %vm319, %v1554, %v1473
    %v1557 = vsel %vm319, %v1555, %v1475
    %v1558 = vsel %vm322, %v1556, %v1481
    %v1559 = vsel %vm322, %v1557, %v1483
    %v1560 = vsel %vm325, %v1558, %v1489
    %v1561 = vsel %vm325, %v1559, %v1491
    %v1562 = vsel %vm328, %v1560, %v1497
    %v1563 = vsel %vm328, %v1561, %v1499
    %v1564 = vsel %vm331, %v1562, %v1505
    %v1565 = vsel %vm331, %v1563, %v1507
    %v1566 = vsel %vm334, %v1564, %v1513
    %v1567 = vsel %vm334, %v1565, %v1515
    %v1568 = vsel %vm337, %v1513, %v1521
    %v1569 = vsel %vm337, %v1515, %v1523
    %v1570 = vsel %vm340, %v1568, %v1529
    %v1571 = vsel %vm340, %v1569, %v1531
    %v1572 = vsel %vm343, %v1570, %v1537
    %v1573 = vsel %vm343, %v1571, %v1539
    %v1574 = vsel %vm346, %v1572, %v1545
    %v1575 = vsel %vm346, %v1573, %v1547
    %1576 = vrot.lane.b32.xlu0 %v968, 126
    %v1577 = vpop.permute.xlu0 %1576
    %1578 = vrot.lane.b32.xlu0 %v967, 126
    %v1579 = vpop.permute.xlu0 %1578
    %1580 = vrot.lane.b32.xlu0 %v971, 126
    %v1581 = vpop.permute.xlu0 %1580
    %1582 = vrot.lane.b32.xlu0 %v970, 126
    %v1583 = vpop.permute.xlu0 %1582
    %v1588 = vcombine.high %v1577, 0.0
    %v1590 = vunpack.c.l.s4 1983009808
    %v1591 = vunpack.c.0.s8 %v1590
    %v1592 = vlaneseq
    %v1593 = vshrl.u32 %v1592, 7
    %v1594 = vsub.s32 %v1591, %v1593
    %v1595 = vrot.slane %v1577, %v1594
    %v1597 = vunpack.c.l.s4 1983009808
    %v1598 = vunpack.c.0.s8 %v1597
    %v1599 = vlaneseq
    %v1600 = vshrl.u32 %v1599, 7
    %v1601 = vsub.s32 %v1598, %v1600
    %v1602 = vrot.slane %v1588, %v1601
    %v1603 = vcombine.high %v1595, 0.0
    %v1605 = vunpack.c.l.s4 1934713408
    %v1606 = vunpack.c.0.s8 %v1605
    %v1607 = vlaneseq
    %v1608 = vshrl.u32 %v1607, 7
    %v1609 = vsub.s32 %v1606, %v1608
    %v1610 = vrot.slane %v1595, %v1609
    %v1612 = vunpack.c.l.s4 1934713408
    %v1613 = vunpack.c.0.s8 %v1612
    %v1614 = vlaneseq
    %v1615 = vshrl.u32 %v1614, 7
    %v1616 = vsub.s32 %v1613, %v1615
    %v1617 = vrot.slane %v1603, %v1616
    %v1618 = vcombine.high %v1602, 0.0
    %v1620 = vunpack.c.l.s4 1934713408
    %v1621 = vunpack.c.0.s8 %v1620
    %v1622 = vlaneseq
    %v1623 = vshrl.u32 %v1622, 7
    %v1624 = vsub.s32 %v1621, %v1623
    %v1625 = vrot.slane %v1602, %v1624
    %v1627 = vunpack.c.l.s4 1934713408
    %v1628 = vunpack.c.0.s8 %v1627
    %v1629 = vlaneseq
    %v1630 = vshrl.u32 %v1629, 7
    %v1631 = vsub.s32 %v1628, %v1630
    %v1632 = vrot.slane %v1618, %v1631
    %v1633 = vcombine.high %v1610, 0.0
    %v1634 = vcombine.high %v1617, 0.0
    %v1635 = vcombine.high %v1625, 0.0
    %v1636 = vcombine.high %v1632, 0.0
    %v1638 = vunpack.c.l.s4 1983009808
    %v1639 = vunpack.c.0.s8 %v1638
    %v1640 = vlaneseq
    %v1641 = vshrl.u32 %v1640, 7
    %v1642 = vsub.s32 %v1639, %v1641
    %v1643 = vrot.slane %v1579, %v1642
    %v1644 = vcombine.high %v1643, 0.0
    %v1646 = vunpack.c.l.s4 1934713408
    %v1647 = vunpack.c.0.s8 %v1646
    %v1648 = vlaneseq
    %v1649 = vshrl.u32 %v1648, 7
    %v1650 = vsub.s32 %v1647, %v1649
    %v1651 = vrot.slane %v1643, %v1650
    %v1653 = vunpack.c.l.s4 1934713408
    %v1654 = vunpack.c.0.s8 %v1653
    %v1655 = vlaneseq
    %v1656 = vshrl.u32 %v1655, 7
    %v1657 = vsub.s32 %v1654, %v1656
    %v1658 = vrot.slane %v1644, %v1657
    %v1659 = vcombine.high %v1579, 0.0
    %v1661 = vunpack.c.l.s4 1934713408
    %v1662 = vunpack.c.0.s8 %v1661
    %v1663 = vlaneseq
    %v1664 = vshrl.u32 %v1663, 7
    %v1665 = vsub.s32 %v1662, %v1664
    %v1666 = vrot.slane %v1659, %v1665
    %v1667 = vcombine.high %v1651, 0.0
    %v1668 = vcombine.high %v1658, 0.0
    %v1669 = vcombine.high %v1666, 0.0
    %v1670 = vcombine.high %v1581, 0.0
    %v1672 = vunpack.c.l.s4 1983009808
    %v1673 = vunpack.c.0.s8 %v1672
    %v1674 = vlaneseq
    %v1675 = vshrl.u32 %v1674, 7
    %v1676 = vsub.s32 %v1673, %v1675
    %v1677 = vrot.slane %v1581, %v1676
    %v1679 = vunpack.c.l.s4 1983009808
    %v1680 = vunpack.c.0.s8 %v1679
    %v1681 = vlaneseq
    %v1682 = vshrl.u32 %v1681, 7
    %v1683 = vsub.s32 %v1680, %v1682
    %v1684 = vrot.slane %v1670, %v1683
    %v1685 = vcombine.high %v1677, 0.0
    %v1687 = vunpack.c.l.s4 1934713408
    %v1688 = vunpack.c.0.s8 %v1687
    %v1689 = vlaneseq
    %v1690 = vshrl.u32 %v1689, 7
    %v1691 = vsub.s32 %v1688, %v1690
    %v1692 = vrot.slane %v1677, %v1691
    %v1694 = vunpack.c.l.s4 1934713408
    %v1695 = vunpack.c.0.s8 %v1694
    %v1696 = vlaneseq
    %v1697 = vshrl.u32 %v1696, 7
    %v1698 = vsub.s32 %v1695, %v1697
    %v1699 = vrot.slane %v1685, %v1698
    %v1700 = vcombine.high %v1684, 0.0
    %v1702 = vunpack.c.l.s4 1934713408
    %v1703 = vunpack.c.0.s8 %v1702
    %v1704 = vlaneseq
    %v1705 = vshrl.u32 %v1704, 7
    %v1706 = vsub.s32 %v1703, %v1705
    %v1707 = vrot.slane %v1684, %v1706
    %v1709 = vunpack.c.l.s4 1934713408
    %v1710 = vunpack.c.0.s8 %v1709
    %v1711 = vlaneseq
    %v1712 = vshrl.u32 %v1711, 7
    %v1713 = vsub.s32 %v1710, %v1712
    %v1714 = vrot.slane %v1700, %v1713
    %v1715 = vcombine.high %v1692, 0.0
    %v1716 = vcombine.high %v1699, 0.0
    %v1717 = vcombine.high %v1707, 0.0
    %v1718 = vcombine.high %v1714, 0.0
    %v1720 = vunpack.c.l.s4 1983009808
    %v1721 = vunpack.c.0.s8 %v1720
    %v1722 = vlaneseq
    %v1723 = vshrl.u32 %v1722, 7
    %v1724 = vsub.s32 %v1721, %v1723
    %v1725 = vrot.slane %v1583, %v1724
    %v1726 = vcombine.high %v1725, 0.0
    %v1728 = vunpack.c.l.s4 1934713408
    %v1729 = vunpack.c.0.s8 %v1728
    %v1730 = vlaneseq
    %v1731 = vshrl.u32 %v1730, 7
    %v1732 = vsub.s32 %v1729, %v1731
    %v1733 = vrot.slane %v1725, %v1732
    %v1735 = vunpack.c.l.s4 1934713408
    %v1736 = vunpack.c.0.s8 %v1735
    %v1737 = vlaneseq
    %v1738 = vshrl.u32 %v1737, 7
    %v1739 = vsub.s32 %v1736, %v1738
    %v1740 = vrot.slane %v1726, %v1739
    %v1741 = vcombine.high %v1583, 0.0
    %v1743 = vunpack.c.l.s4 1934713408
    %v1744 = vunpack.c.0.s8 %v1743
    %v1745 = vlaneseq
    %v1746 = vshrl.u32 %v1745, 7
    %v1747 = vsub.s32 %v1744, %v1746
    %v1748 = vrot.slane %v1741, %v1747
    %v1749 = vcombine.high %v1733, 0.0
    %v1750 = vcombine.high %v1740, 0.0
    %v1751 = vcombine.high %v1748, 0.0
    %1754 = vrot.lane.b32.xlu0 %v1633, 14
    %v1755 = vpop.permute.xlu0 %1754
    %1756 = vrot.lane.b32.xlu0 %v1715, 14
    %v1757 = vpop.permute.xlu0 %1756
    %1762 = vrot.lane.b32.xlu0 %v1617, 28
    %v1763 = vpop.permute.xlu0 %1762
    %1764 = vrot.lane.b32.xlu0 %v1699, 28
    %v1765 = vpop.permute.xlu0 %1764
    %1770 = vrot.lane.b32.xlu0 %v1634, 42
    %v1771 = vpop.permute.xlu0 %1770
    %1772 = vrot.lane.b32.xlu0 %v1716, 42
    %v1773 = vpop.permute.xlu0 %1772
    %1778 = vrot.lane.b32.xlu0 %v1625, 56
    %v1779 = vpop.permute.xlu0 %1778
    %1780 = vrot.lane.b32.xlu0 %v1707, 56
    %v1781 = vpop.permute.xlu0 %1780
    %1786 = vrot.lane.b32.xlu0 %v1635, 70
    %v1787 = vpop.permute.xlu0 %1786
    %1788 = vrot.lane.b32.xlu0 %v1717, 70
    %v1789 = vpop.permute.xlu0 %1788
    %1794 = vrot.lane.b32.xlu0 %v1632, 84
    %v1795 = vpop.permute.xlu0 %1794
    %1796 = vrot.lane.b32.xlu0 %v1714, 84
    %v1797 = vpop.permute.xlu0 %1796
    %1802 = vrot.lane.b32.xlu0 %v1636, 98
    %v1803 = vpop.permute.xlu0 %1802
    %1804 = vrot.lane.b32.xlu0 %v1718, 98
    %v1805 = vpop.permute.xlu0 %1804
    %1810 = vrot.lane.b32.xlu0 %v1651, 112
    %v1811 = vpop.permute.xlu0 %1810
    %1812 = vrot.lane.b32.xlu0 %v1733, 112
    %v1813 = vpop.permute.xlu0 %1812
    %1818 = vrot.lane.b32.xlu0 %v1667, 126
    %v1819 = vpop.permute.xlu0 %1818
    %1820 = vrot.lane.b32.xlu0 %v1749, 126
    %v1821 = vpop.permute.xlu0 %1820
    %1826 = vrot.lane.b32.xlu0 %v1658, 12
    %v1827 = vpop.permute.xlu0 %1826
    %1828 = vrot.lane.b32.xlu0 %v1740, 12
    %v1829 = vpop.permute.xlu0 %1828
    %1834 = vrot.lane.b32.xlu0 %v1668, 26
    %v1835 = vpop.permute.xlu0 %1834
    %1836 = vrot.lane.b32.xlu0 %v1750, 26
    %v1837 = vpop.permute.xlu0 %1836
    %1842 = vrot.lane.b32.xlu0 %v1666, 40
    %v1843 = vpop.permute.xlu0 %1842
    %1844 = vrot.lane.b32.xlu0 %v1748, 40
    %v1845 = vpop.permute.xlu0 %1844
    %1850 = vrot.lane.b32.xlu0 %v1669, 54
    %v1851 = vpop.permute.xlu0 %1850
    %1852 = vrot.lane.b32.xlu0 %v1751, 54
    %v1853 = vpop.permute.xlu0 %1852
    %v1856 = vsel %vm310, %v1610, %v1755
    %v1857 = vsel %vm310, %v1692, %v1757
    %v1858 = vsel %vm313, %v1856, %v1763
    %v1859 = vsel %vm313, %v1857, %v1765
    %v1860 = vsel %vm316, %v1858, %v1771
    %v1861 = vsel %vm316, %v1859, %v1773
    %v1862 = vsel %vm319, %v1860, %v1779
    %v1863 = vsel %vm319, %v1861, %v1781
    %v1864 = vsel %vm322, %v1862, %v1787
    %v1865 = vsel %vm322, %v1863, %v1789
    %v1866 = vsel %vm325, %v1864, %v1795
    %v1867 = vsel %vm325, %v1865, %v1797
    %v1868 = vsel %vm328, %v1866, %v1803
    %v1869 = vsel %vm328, %v1867, %v1805
    %v1870 = vsel %vm331, %v1868, %v1811
    %v1871 = vsel %vm331, %v1869, %v1813
    %v1872 = vsel %vm334, %v1870, %v1819
    %v1873 = vsel %vm334, %v1871, %v1821
    %v1874 = vsel %vm337, %v1819, %v1827
    %v1875 = vsel %vm337, %v1821, %v1829
    %v1876 = vsel %vm340, %v1874, %v1835
    %v1877 = vsel %vm340, %v1875, %v1837
    %v1878 = vsel %vm343, %v1876, %v1843
    %v1879 = vsel %vm343, %v1877, %v1845
    %v1880 = vsel %vm346, %v1878, %v1851
    %v1881 = vsel %vm346, %v1879, %v1853
    %vm1882 = vcmask 1045504
    %v1883 = vrot.slane %v28, 2
    %v1884 = vrot.slane %v29, 2
    %v1885 = vsel %vm1882, %v1883, %v1884
    %v1886 = vrot.slane %v34, 2
    %v1887 = vrot.slane %v35, 2
    %v1888 = vsel %vm1882, %v1886, %v1887
    %v1893 = vcombine.high %v1885, 0.0
    %v1895 = vunpack.c.l.s4 1983009808
    %v1896 = vunpack.c.0.s8 %v1895
    %v1897 = vlaneseq
    %v1898 = vshrl.u32 %v1897, 7
    %v1899 = vsub.s32 %v1896, %v1898
    %v1900 = vrot.slane %v1885, %v1899
    %v1902 = vunpack.c.l.s4 1983009808
    %v1903 = vunpack.c.0.s8 %v1902
    %v1904 = vlaneseq
    %v1905 = vshrl.u32 %v1904, 7
    %v1906 = vsub.s32 %v1903, %v1905
    %v1907 = vrot.slane %v1893, %v1906
    %v1908 = vcombine.high %v1900, 0.0
    %v1910 = vunpack.c.l.s4 1934713408
    %v1911 = vunpack.c.0.s8 %v1910
    %v1912 = vlaneseq
    %v1913 = vshrl.u32 %v1912, 7
    %v1914 = vsub.s32 %v1911, %v1913
    %v1915 = vrot.slane %v1900, %v1914
    %v1917 = vunpack.c.l.s4 1934713408
    %v1918 = vunpack.c.0.s8 %v1917
    %v1919 = vlaneseq
    %v1920 = vshrl.u32 %v1919, 7
    %v1921 = vsub.s32 %v1918, %v1920
    %v1922 = vrot.slane %v1908, %v1921
    %v1923 = vcombine.high %v1907, 0.0
    %v1925 = vunpack.c.l.s4 1934713408
    %v1926 = vunpack.c.0.s8 %v1925
    %v1927 = vlaneseq
    %v1928 = vshrl.u32 %v1927, 7
    %v1929 = vsub.s32 %v1926, %v1928
    %v1930 = vrot.slane %v1907, %v1929
    %v1932 = vunpack.c.l.s4 1934713408
    %v1933 = vunpack.c.0.s8 %v1932
    %v1934 = vlaneseq
    %v1935 = vshrl.u32 %v1934, 7
    %v1936 = vsub.s32 %v1933, %v1935
    %v1937 = vrot.slane %v1923, %v1936
    %v1938 = vcombine.high %v1915, 0.0
    %v1939 = vcombine.high %v1922, 0.0
    %v1940 = vcombine.high %v1930, 0.0
    %v1941 = vcombine.high %v1937, 0.0
    %v1943 = vunpack.c.l.s4 1983009808
    %v1944 = vunpack.c.0.s8 %v1943
    %v1945 = vlaneseq
    %v1946 = vshrl.u32 %v1945, 7
    %v1947 = vsub.s32 %v1944, %v1946
    %v1948 = vrot.slane %v1884, %v1947
    %v1949 = vcombine.high %v1948, 0.0
    %v1951 = vunpack.c.l.s4 1934713408
    %v1952 = vunpack.c.0.s8 %v1951
    %v1953 = vlaneseq
    %v1954 = vshrl.u32 %v1953, 7
    %v1955 = vsub.s32 %v1952, %v1954
    %v1956 = vrot.slane %v1948, %v1955
    %v1958 = vunpack.c.l.s4 1934713408
    %v1959 = vunpack.c.0.s8 %v1958
    %v1960 = vlaneseq
    %v1961 = vshrl.u32 %v1960, 7
    %v1962 = vsub.s32 %v1959, %v1961
    %v1963 = vrot.slane %v1949, %v1962
    %v1964 = vcombine.high %v1884, 0.0
    %v1966 = vunpack.c.l.s4 1934713408
    %v1967 = vunpack.c.0.s8 %v1966
    %v1968 = vlaneseq
    %v1969 = vshrl.u32 %v1968, 7
    %v1970 = vsub.s32 %v1967, %v1969
    %v1971 = vrot.slane %v1964, %v1970
    %v1972 = vcombine.high %v1956, 0.0
    %v1973 = vcombine.high %v1963, 0.0
    %v1974 = vcombine.high %v1971, 0.0
    %v1975 = vcombine.high %v1888, 0.0
    %v1977 = vunpack.c.l.s4 1983009808
    %v1978 = vunpack.c.0.s8 %v1977
    %v1979 = vlaneseq
    %v1980 = vshrl.u32 %v1979, 7
    %v1981 = vsub.s32 %v1978, %v1980
    %v1982 = vrot.slane %v1888, %v1981
    %v1984 = vunpack.c.l.s4 1983009808
    %v1985 = vunpack.c.0.s8 %v1984
    %v1986 = vlaneseq
    %v1987 = vshrl.u32 %v1986, 7
    %v1988 = vsub.s32 %v1985, %v1987
    %v1989 = vrot.slane %v1975, %v1988
    %v1990 = vcombine.high %v1982, 0.0
    %v1992 = vunpack.c.l.s4 1934713408
    %v1993 = vunpack.c.0.s8 %v1992
    %v1994 = vlaneseq
    %v1995 = vshrl.u32 %v1994, 7
    %v1996 = vsub.s32 %v1993, %v1995
    %v1997 = vrot.slane %v1982, %v1996
    %v1999 = vunpack.c.l.s4 1934713408
    %v2000 = vunpack.c.0.s8 %v1999
    %v2001 = vlaneseq
    %v2002 = vshrl.u32 %v2001, 7
    %v2003 = vsub.s32 %v2000, %v2002
    %v2004 = vrot.slane %v1990, %v2003
    %v2005 = vcombine.high %v1989, 0.0
    %v2007 = vunpack.c.l.s4 1934713408
    %v2008 = vunpack.c.0.s8 %v2007
    %v2009 = vlaneseq
    %v2010 = vshrl.u32 %v2009, 7
    %v2011 = vsub.s32 %v2008, %v2010
    %v2012 = vrot.slane %v1989, %v2011
    %v2014 = vunpack.c.l.s4 1934713408
    %v2015 = vunpack.c.0.s8 %v2014
    %v2016 = vlaneseq
    %v2017 = vshrl.u32 %v2016, 7
    %v2018 = vsub.s32 %v2015, %v2017
    %v2019 = vrot.slane %v2005, %v2018
    %v2020 = vcombine.high %v1997, 0.0
    %v2021 = vcombine.high %v2004, 0.0
    %v2022 = vcombine.high %v2012, 0.0
    %v2023 = vcombine.high %v2019, 0.0
    %v2025 = vunpack.c.l.s4 1983009808
    %v2026 = vunpack.c.0.s8 %v2025
    %v2027 = vlaneseq
    %v2028 = vshrl.u32 %v2027, 7
    %v2029 = vsub.s32 %v2026, %v2028
    %v2030 = vrot.slane %v1887, %v2029
    %v2031 = vcombine.high %v2030, 0.0
    %v2033 = vunpack.c.l.s4 1934713408
    %v2034 = vunpack.c.0.s8 %v2033
    %v2035 = vlaneseq
    %v2036 = vshrl.u32 %v2035, 7
    %v2037 = vsub.s32 %v2034, %v2036
    %v2038 = vrot.slane %v2030, %v2037
    %v2040 = vunpack.c.l.s4 1934713408
    %v2041 = vunpack.c.0.s8 %v2040
    %v2042 = vlaneseq
    %v2043 = vshrl.u32 %v2042, 7
    %v2044 = vsub.s32 %v2041, %v2043
    %v2045 = vrot.slane %v2031, %v2044
    %v2046 = vcombine.high %v1887, 0.0
    %v2048 = vunpack.c.l.s4 1934713408
    %v2049 = vunpack.c.0.s8 %v2048
    %v2050 = vlaneseq
    %v2051 = vshrl.u32 %v2050, 7
    %v2052 = vsub.s32 %v2049, %v2051
    %v2053 = vrot.slane %v2046, %v2052
    %v2054 = vcombine.high %v2038, 0.0
    %v2055 = vcombine.high %v2045, 0.0
    %v2056 = vcombine.high %v2053, 0.0
    %2059 = vrot.lane.b32.xlu0 %v1938, 14
    %v2060 = vpop.permute.xlu0 %2059
    %2061 = vrot.lane.b32.xlu0 %v2020, 14
    %v2062 = vpop.permute.xlu0 %2061
    %2067 = vrot.lane.b32.xlu0 %v1922, 28
    %v2068 = vpop.permute.xlu0 %2067
    %2069 = vrot.lane.b32.xlu0 %v2004, 28
    %v2070 = vpop.permute.xlu0 %2069
    %2075 = vrot.lane.b32.xlu0 %v1939, 42
    %v2076 = vpop.permute.xlu0 %2075
    %2077 = vrot.lane.b32.xlu0 %v2021, 42
    %v2078 = vpop.permute.xlu0 %2077
    %2083 = vrot.lane.b32.xlu0 %v1930, 56
    %v2084 = vpop.permute.xlu0 %2083
    %2085 = vrot.lane.b32.xlu0 %v2012, 56
    %v2086 = vpop.permute.xlu0 %2085
    %2091 = vrot.lane.b32.xlu0 %v1940, 70
    %v2092 = vpop.permute.xlu0 %2091
    %2093 = vrot.lane.b32.xlu0 %v2022, 70
    %v2094 = vpop.permute.xlu0 %2093
    %2099 = vrot.lane.b32.xlu0 %v1937, 84
    %v2100 = vpop.permute.xlu0 %2099
    %2101 = vrot.lane.b32.xlu0 %v2019, 84
    %v2102 = vpop.permute.xlu0 %2101
    %2107 = vrot.lane.b32.xlu0 %v1941, 98
    %v2108 = vpop.permute.xlu0 %2107
    %2109 = vrot.lane.b32.xlu0 %v2023, 98
    %v2110 = vpop.permute.xlu0 %2109
    %2115 = vrot.lane.b32.xlu0 %v1956, 112
    %v2116 = vpop.permute.xlu0 %2115
    %2117 = vrot.lane.b32.xlu0 %v2038, 112
    %v2118 = vpop.permute.xlu0 %2117
    %2123 = vrot.lane.b32.xlu0 %v1972, 126
    %v2124 = vpop.permute.xlu0 %2123
    %2125 = vrot.lane.b32.xlu0 %v2054, 126
    %v2126 = vpop.permute.xlu0 %2125
    %2131 = vrot.lane.b32.xlu0 %v1963, 12
    %v2132 = vpop.permute.xlu0 %2131
    %2133 = vrot.lane.b32.xlu0 %v2045, 12
    %v2134 = vpop.permute.xlu0 %2133
    %2139 = vrot.lane.b32.xlu0 %v1973, 26
    %v2140 = vpop.permute.xlu0 %2139
    %2141 = vrot.lane.b32.xlu0 %v2055, 26
    %v2142 = vpop.permute.xlu0 %2141
    %2147 = vrot.lane.b32.xlu0 %v1971, 40
    %v2148 = vpop.permute.xlu0 %2147
    %2149 = vrot.lane.b32.xlu0 %v2053, 40
    %v2150 = vpop.permute.xlu0 %2149
    %2155 = vrot.lane.b32.xlu0 %v1974, 54
    %v2156 = vpop.permute.xlu0 %2155
    %2157 = vrot.lane.b32.xlu0 %v2056, 54
    %v2158 = vpop.permute.xlu0 %2157
    %v2161 = vsel %vm310, %v1915, %v2060
    %v2162 = vsel %vm310, %v1997, %v2062
    %v2163 = vsel %vm313, %v2161, %v2068
    %v2164 = vsel %vm313, %v2162, %v2070
    %v2165 = vsel %vm316, %v2163, %v2076
    %v2166 = vsel %vm316, %v2164, %v2078
    %v2167 = vsel %vm319, %v2165, %v2084
    %v2168 = vsel %vm319, %v2166, %v2086
    %v2169 = vsel %vm322, %v2167, %v2092
    %v2170 = vsel %vm322, %v2168, %v2094
    %v2171 = vsel %vm325, %v2169, %v2100
    %v2172 = vsel %vm325, %v2170, %v2102
    %v2173 = vsel %vm328, %v2171, %v2108
    %v2174 = vsel %vm328, %v2172, %v2110
    %v2175 = vsel %vm331, %v2173, %v2116
    %v2176 = vsel %vm331, %v2174, %v2118
    %v2177 = vsel %vm334, %v2175, %v2124
    %v2178 = vsel %vm334, %v2176, %v2126
    %v2179 = vsel %vm337, %v2124, %v2132
    %v2180 = vsel %vm337, %v2126, %v2134
    %v2181 = vsel %vm340, %v2179, %v2140
    %v2182 = vsel %vm340, %v2180, %v2142
    %v2183 = vsel %vm343, %v2181, %v2148
    %v2184 = vsel %vm343, %v2182, %v2150
    %v2185 = vsel %vm346, %v2183, %v2156
    %v2186 = vsel %vm346, %v2184, %v2158
    %2187 = vrot.lane.b32.xlu0 %v1885, 127
    %v2188 = vpop.permute.xlu0 %2187
    %2189 = vrot.lane.b32.xlu0 %v1884, 127
    %v2190 = vpop.permute.xlu0 %2189
    %2191 = vrot.lane.b32.xlu0 %v1888, 127
    %v2192 = vpop.permute.xlu0 %2191
    %2193 = vrot.lane.b32.xlu0 %v1887, 127
    %v2194 = vpop.permute.xlu0 %2193
    %v2199 = vcombine.high %v2188, 0.0
    %v2201 = vunpack.c.l.s4 1983009808
    %v2202 = vunpack.c.0.s8 %v2201
    %v2203 = vlaneseq
    %v2204 = vshrl.u32 %v2203, 7
    %v2205 = vsub.s32 %v2202, %v2204
    %v2206 = vrot.slane %v2188, %v2205
    %v2208 = vunpack.c.l.s4 1983009808
    %v2209 = vunpack.c.0.s8 %v2208
    %v2210 = vlaneseq
    %v2211 = vshrl.u32 %v2210, 7
    %v2212 = vsub.s32 %v2209, %v2211
    %v2213 = vrot.slane %v2199, %v2212
    %v2214 = vcombine.high %v2206, 0.0
    %v2216 = vunpack.c.l.s4 1934713408
    %v2217 = vunpack.c.0.s8 %v2216
    %v2218 = vlaneseq
    %v2219 = vshrl.u32 %v2218, 7
    %v2220 = vsub.s32 %v2217, %v2219
    %v2221 = vrot.slane %v2206, %v2220
    %v2223 = vunpack.c.l.s4 1934713408
    %v2224 = vunpack.c.0.s8 %v2223
    %v2225 = vlaneseq
    %v2226 = vshrl.u32 %v2225, 7
    %v2227 = vsub.s32 %v2224, %v2226
    %v2228 = vrot.slane %v2214, %v2227
    %v2229 = vcombine.high %v2213, 0.0
    %v2231 = vunpack.c.l.s4 1934713408
    %v2232 = vunpack.c.0.s8 %v2231
    %v2233 = vlaneseq
    %v2234 = vshrl.u32 %v2233, 7
    %v2235 = vsub.s32 %v2232, %v2234
    %v2236 = vrot.slane %v2213, %v2235
    %v2238 = vunpack.c.l.s4 1934713408
    %v2239 = vunpack.c.0.s8 %v2238
    %v2240 = vlaneseq
    %v2241 = vshrl.u32 %v2240, 7
    %v2242 = vsub.s32 %v2239, %v2241
    %v2243 = vrot.slane %v2229, %v2242
    %v2244 = vcombine.high %v2221, 0.0
    %v2245 = vcombine.high %v2228, 0.0
    %v2246 = vcombine.high %v2236, 0.0
    %v2247 = vcombine.high %v2243, 0.0
    %v2249 = vunpack.c.l.s4 1983009808
    %v2250 = vunpack.c.0.s8 %v2249
    %v2251 = vlaneseq
    %v2252 = vshrl.u32 %v2251, 7
    %v2253 = vsub.s32 %v2250, %v2252
    %v2254 = vrot.slane %v2190, %v2253
    %v2255 = vcombine.high %v2254, 0.0
    %v2257 = vunpack.c.l.s4 1934713408
    %v2258 = vunpack.c.0.s8 %v2257
    %v2259 = vlaneseq
    %v2260 = vshrl.u32 %v2259, 7
    %v2261 = vsub.s32 %v2258, %v2260
    %v2262 = vrot.slane %v2254, %v2261
    %v2264 = vunpack.c.l.s4 1934713408
    %v2265 = vunpack.c.0.s8 %v2264
    %v2266 = vlaneseq
    %v2267 = vshrl.u32 %v2266, 7
    %v2268 = vsub.s32 %v2265, %v2267
    %v2269 = vrot.slane %v2255, %v2268
    %v2270 = vcombine.high %v2190, 0.0
    %v2272 = vunpack.c.l.s4 1934713408
    %v2273 = vunpack.c.0.s8 %v2272
    %v2274 = vlaneseq
    %v2275 = vshrl.u32 %v2274, 7
    %v2276 = vsub.s32 %v2273, %v2275
    %v2277 = vrot.slane %v2270, %v2276
    %v2278 = vcombine.high %v2262, 0.0
    %v2279 = vcombine.high %v2269, 0.0
    %v2280 = vcombine.high %v2277, 0.0
    %v2281 = vcombine.high %v2192, 0.0
    %v2283 = vunpack.c.l.s4 1983009808
    %v2284 = vunpack.c.0.s8 %v2283
    %v2285 = vlaneseq
    %v2286 = vshrl.u32 %v2285, 7
    %v2287 = vsub.s32 %v2284, %v2286
    %v2288 = vrot.slane %v2192, %v2287
    %v2290 = vunpack.c.l.s4 1983009808
    %v2291 = vunpack.c.0.s8 %v2290
    %v2292 = vlaneseq
    %v2293 = vshrl.u32 %v2292, 7
    %v2294 = vsub.s32 %v2291, %v2293
    %v2295 = vrot.slane %v2281, %v2294
    %v2296 = vcombine.high %v2288, 0.0
    %v2298 = vunpack.c.l.s4 1934713408
    %v2299 = vunpack.c.0.s8 %v2298
    %v2300 = vlaneseq
    %v2301 = vshrl.u32 %v2300, 7
    %v2302 = vsub.s32 %v2299, %v2301
    %v2303 = vrot.slane %v2288, %v2302
    %v2305 = vunpack.c.l.s4 1934713408
    %v2306 = vunpack.c.0.s8 %v2305
    %v2307 = vlaneseq
    %v2308 = vshrl.u32 %v2307, 7
    %v2309 = vsub.s32 %v2306, %v2308
    %v2310 = vrot.slane %v2296, %v2309
    %v2311 = vcombine.high %v2295, 0.0
    %v2313 = vunpack.c.l.s4 1934713408
    %v2314 = vunpack.c.0.s8 %v2313
    %v2315 = vlaneseq
    %v2316 = vshrl.u32 %v2315, 7
    %v2317 = vsub.s32 %v2314, %v2316
    %v2318 = vrot.slane %v2295, %v2317
    %v2320 = vunpack.c.l.s4 1934713408
    %v2321 = vunpack.c.0.s8 %v2320
    %v2322 = vlaneseq
    %v2323 = vshrl.u32 %v2322, 7
    %v2324 = vsub.s32 %v2321, %v2323
    %v2325 = vrot.slane %v2311, %v2324
    %v2326 = vcombine.high %v2303, 0.0
    %v2327 = vcombine.high %v2310, 0.0
    %v2328 = vcombine.high %v2318, 0.0
    %v2329 = vcombine.high %v2325, 0.0
    %v2331 = vunpack.c.l.s4 1983009808
    %v2332 = vunpack.c.0.s8 %v2331
    %v2333 = vlaneseq
    %v2334 = vshrl.u32 %v2333, 7
    %v2335 = vsub.s32 %v2332, %v2334
    %v2336 = vrot.slane %v2194, %v2335
    %v2337 = vcombine.high %v2336, 0.0
    %v2339 = vunpack.c.l.s4 1934713408
    %v2340 = vunpack.c.0.s8 %v2339
    %v2341 = vlaneseq
    %v2342 = vshrl.u32 %v2341, 7
    %v2343 = vsub.s32 %v2340, %v2342
    %v2344 = vrot.slane %v2336, %v2343
    %v2346 = vunpack.c.l.s4 1934713408
    %v2347 = vunpack.c.0.s8 %v2346
    %v2348 = vlaneseq
    %v2349 = vshrl.u32 %v2348, 7
    %v2350 = vsub.s32 %v2347, %v2349
    %v2351 = vrot.slane %v2337, %v2350
    %v2352 = vcombine.high %v2194, 0.0
    %v2354 = vunpack.c.l.s4 1934713408
    %v2355 = vunpack.c.0.s8 %v2354
    %v2356 = vlaneseq
    %v2357 = vshrl.u32 %v2356, 7
    %v2358 = vsub.s32 %v2355, %v2357
    %v2359 = vrot.slane %v2352, %v2358
    %v2360 = vcombine.high %v2344, 0.0
    %v2361 = vcombine.high %v2351, 0.0
    %v2362 = vcombine.high %v2359, 0.0
    %2365 = vrot.lane.b32.xlu0 %v2244, 14
    %v2366 = vpop.permute.xlu0 %2365
    %2367 = vrot.lane.b32.xlu0 %v2326, 14
    %v2368 = vpop.permute.xlu0 %2367
    %2373 = vrot.lane.b32.xlu0 %v2228, 28
    %v2374 = vpop.permute.xlu0 %2373
    %2375 = vrot.lane.b32.xlu0 %v2310, 28
    %v2376 = vpop.permute.xlu0 %2375
    %2381 = vrot.lane.b32.xlu0 %v2245, 42
    %v2382 = vpop.permute.xlu0 %2381
    %2383 = vrot.lane.b32.xlu0 %v2327, 42
    %v2384 = vpop.permute.xlu0 %2383
    %2389 = vrot.lane.b32.xlu0 %v2236, 56
    %v2390 = vpop.permute.xlu0 %2389
    %2391 = vrot.lane.b32.xlu0 %v2318, 56
    %v2392 = vpop.permute.xlu0 %2391
    %2397 = vrot.lane.b32.xlu0 %v2246, 70
    %v2398 = vpop.permute.xlu0 %2397
    %2399 = vrot.lane.b32.xlu0 %v2328, 70
    %v2400 = vpop.permute.xlu0 %2399
    %2405 = vrot.lane.b32.xlu0 %v2243, 84
    %v2406 = vpop.permute.xlu0 %2405
    %2407 = vrot.lane.b32.xlu0 %v2325, 84
    %v2408 = vpop.permute.xlu0 %2407
    %2413 = vrot.lane.b32.xlu0 %v2247, 98
    %v2414 = vpop.permute.xlu0 %2413
    %2415 = vrot.lane.b32.xlu0 %v2329, 98
    %v2416 = vpop.permute.xlu0 %2415
    %2421 = vrot.lane.b32.xlu0 %v2262, 112
    %v2422 = vpop.permute.xlu0 %2421
    %2423 = vrot.lane.b32.xlu0 %v2344, 112
    %v2424 = vpop.permute.xlu0 %2423
    %2429 = vrot.lane.b32.xlu0 %v2278, 126
    %v2430 = vpop.permute.xlu0 %2429
    %2431 = vrot.lane.b32.xlu0 %v2360, 126
    %v2432 = vpop.permute.xlu0 %2431
    %2437 = vrot.lane.b32.xlu0 %v2269, 12
    %v2438 = vpop.permute.xlu0 %2437
    %2439 = vrot.lane.b32.xlu0 %v2351, 12
    %v2440 = vpop.permute.xlu0 %2439
    %2445 = vrot.lane.b32.xlu0 %v2279, 26
    %v2446 = vpop.permute.xlu0 %2445
    %2447 = vrot.lane.b32.xlu0 %v2361, 26
    %v2448 = vpop.permute.xlu0 %2447
    %2453 = vrot.lane.b32.xlu0 %v2277, 40
    %v2454 = vpop.permute.xlu0 %2453
    %2455 = vrot.lane.b32.xlu0 %v2359, 40
    %v2456 = vpop.permute.xlu0 %2455
    %2461 = vrot.lane.b32.xlu0 %v2280, 54
    %v2462 = vpop.permute.xlu0 %2461
    %2463 = vrot.lane.b32.xlu0 %v2362, 54
    %v2464 = vpop.permute.xlu0 %2463
    %v2467 = vsel %vm310, %v2221, %v2366
    %v2468 = vsel %vm310, %v2303, %v2368
    %v2469 = vsel %vm313, %v2467, %v2374
    %v2470 = vsel %vm313, %v2468, %v2376
    %v2471 = vsel %vm316, %v2469, %v2382
    %v2472 = vsel %vm316, %v2470, %v2384
    %v2473 = vsel %vm319, %v2471, %v2390
    %v2474 = vsel %vm319, %v2472, %v2392
    %v2475 = vsel %vm322, %v2473, %v2398
    %v2476 = vsel %vm322, %v2474, %v2400
    %v2477 = vsel %vm325, %v2475, %v2406
    %v2478 = vsel %vm325, %v2476, %v2408
    %v2479 = vsel %vm328, %v2477, %v2414
    %v2480 = vsel %vm328, %v2478, %v2416
    %v2481 = vsel %vm331, %v2479, %v2422
    %v2482 = vsel %vm331, %v2480, %v2424
    %v2483 = vsel %vm334, %v2481, %v2430
    %v2484 = vsel %vm334, %v2482, %v2432
    %v2485 = vsel %vm337, %v2430, %v2438
    %v2486 = vsel %vm337, %v2432, %v2440
    %v2487 = vsel %vm340, %v2485, %v2446
    %v2488 = vsel %vm340, %v2486, %v2448
    %v2489 = vsel %vm343, %v2487, %v2454
    %v2490 = vsel %vm343, %v2488, %v2456
    %v2491 = vsel %vm346, %v2489, %v2462
    %v2492 = vsel %vm346, %v2490, %v2464
    %2493 = vrot.lane.b32.xlu0 %v1885, 126
    %v2494 = vpop.permute.xlu0 %2493
    %2495 = vrot.lane.b32.xlu0 %v1884, 126
    %v2496 = vpop.permute.xlu0 %2495
    %2497 = vrot.lane.b32.xlu0 %v1888, 126
    %v2498 = vpop.permute.xlu0 %2497
    %2499 = vrot.lane.b32.xlu0 %v1887, 126
    %v2500 = vpop.permute.xlu0 %2499
    %v2505 = vcombine.high %v2494, 0.0
    %v2507 = vunpack.c.l.s4 1983009808
    %v2508 = vunpack.c.0.s8 %v2507
    %v2509 = vlaneseq
    %v2510 = vshrl.u32 %v2509, 7
    %v2511 = vsub.s32 %v2508, %v2510
    %v2512 = vrot.slane %v2494, %v2511
    %v2514 = vunpack.c.l.s4 1983009808
    %v2515 = vunpack.c.0.s8 %v2514
    %v2516 = vlaneseq
    %v2517 = vshrl.u32 %v2516, 7
    %v2518 = vsub.s32 %v2515, %v2517
    %v2519 = vrot.slane %v2505, %v2518
    %v2520 = vcombine.high %v2512, 0.0
    %v2522 = vunpack.c.l.s4 1934713408
    %v2523 = vunpack.c.0.s8 %v2522
    %v2524 = vlaneseq
    %v2525 = vshrl.u32 %v2524, 7
    %v2526 = vsub.s32 %v2523, %v2525
    %v2527 = vrot.slane %v2512, %v2526
    %v2529 = vunpack.c.l.s4 1934713408
    %v2530 = vunpack.c.0.s8 %v2529
    %v2531 = vlaneseq
    %v2532 = vshrl.u32 %v2531, 7
    %v2533 = vsub.s32 %v2530, %v2532
    %v2534 = vrot.slane %v2520, %v2533
    %v2535 = vcombine.high %v2519, 0.0
    %v2537 = vunpack.c.l.s4 1934713408
    %v2538 = vunpack.c.0.s8 %v2537
    %v2539 = vlaneseq
    %v2540 = vshrl.u32 %v2539, 7
    %v2541 = vsub.s32 %v2538, %v2540
    %v2542 = vrot.slane %v2519, %v2541
    %v2544 = vunpack.c.l.s4 1934713408
    %v2545 = vunpack.c.0.s8 %v2544
    %v2546 = vlaneseq
    %v2547 = vshrl.u32 %v2546, 7
    %v2548 = vsub.s32 %v2545, %v2547
    %v2549 = vrot.slane %v2535, %v2548
    %v2550 = vcombine.high %v2527, 0.0
    %v2551 = vcombine.high %v2534, 0.0
    %v2552 = vcombine.high %v2542, 0.0
    %v2553 = vcombine.high %v2549, 0.0
    %v2555 = vunpack.c.l.s4 1983009808
    %v2556 = vunpack.c.0.s8 %v2555
    %v2557 = vlaneseq
    %v2558 = vshrl.u32 %v2557, 7
    %v2559 = vsub.s32 %v2556, %v2558
    %v2560 = vrot.slane %v2496, %v2559
    %v2561 = vcombine.high %v2560, 0.0
    %v2563 = vunpack.c.l.s4 1934713408
    %v2564 = vunpack.c.0.s8 %v2563
    %v2565 = vlaneseq
    %v2566 = vshrl.u32 %v2565, 7
    %v2567 = vsub.s32 %v2564, %v2566
    %v2568 = vrot.slane %v2560, %v2567
    %v2570 = vunpack.c.l.s4 1934713408
    %v2571 = vunpack.c.0.s8 %v2570
    %v2572 = vlaneseq
    %v2573 = vshrl.u32 %v2572, 7
    %v2574 = vsub.s32 %v2571, %v2573
    %v2575 = vrot.slane %v2561, %v2574
    %v2576 = vcombine.high %v2496, 0.0
    %v2578 = vunpack.c.l.s4 1934713408
    %v2579 = vunpack.c.0.s8 %v2578
    %v2580 = vlaneseq
    %v2581 = vshrl.u32 %v2580, 7
    %v2582 = vsub.s32 %v2579, %v2581
    %v2583 = vrot.slane %v2576, %v2582
    %v2584 = vcombine.high %v2568, 0.0
    %v2585 = vcombine.high %v2575, 0.0
    %v2586 = vcombine.high %v2583, 0.0
    %v2587 = vcombine.high %v2498, 0.0
    %v2589 = vunpack.c.l.s4 1983009808
    %v2590 = vunpack.c.0.s8 %v2589
    %v2591 = vlaneseq
    %v2592 = vshrl.u32 %v2591, 7
    %v2593 = vsub.s32 %v2590, %v2592
    %v2594 = vrot.slane %v2498, %v2593
    %v2596 = vunpack.c.l.s4 1983009808
    %v2597 = vunpack.c.0.s8 %v2596
    %v2598 = vlaneseq
    %v2599 = vshrl.u32 %v2598, 7
    %v2600 = vsub.s32 %v2597, %v2599
    %v2601 = vrot.slane %v2587, %v2600
    %v2602 = vcombine.high %v2594, 0.0
    %v2604 = vunpack.c.l.s4 1934713408
    %v2605 = vunpack.c.0.s8 %v2604
    %v2606 = vlaneseq
    %v2607 = vshrl.u32 %v2606, 7
    %v2608 = vsub.s32 %v2605, %v2607
    %v2609 = vrot.slane %v2594, %v2608
    %v2611 = vunpack.c.l.s4 1934713408
    %v2612 = vunpack.c.0.s8 %v2611
    %v2613 = vlaneseq
    %v2614 = vshrl.u32 %v2613, 7
    %v2615 = vsub.s32 %v2612, %v2614
    %v2616 = vrot.slane %v2602, %v2615
    %v2617 = vcombine.high %v2601, 0.0
    %v2619 = vunpack.c.l.s4 1934713408
    %v2620 = vunpack.c.0.s8 %v2619
    %v2621 = vlaneseq
    %v2622 = vshrl.u32 %v2621, 7
    %v2623 = vsub.s32 %v2620, %v2622
    %v2624 = vrot.slane %v2601, %v2623
    %v2626 = vunpack.c.l.s4 1934713408
    %v2627 = vunpack.c.0.s8 %v2626
    %v2628 = vlaneseq
    %v2629 = vshrl.u32 %v2628, 7
    %v2630 = vsub.s32 %v2627, %v2629
    %v2631 = vrot.slane %v2617, %v2630
    %v2632 = vcombine.high %v2609, 0.0
    %v2633 = vcombine.high %v2616, 0.0
    %v2634 = vcombine.high %v2624, 0.0
    %v2635 = vcombine.high %v2631, 0.0
    %v2637 = vunpack.c.l.s4 1983009808
    %v2638 = vunpack.c.0.s8 %v2637
    %v2639 = vlaneseq
    %v2640 = vshrl.u32 %v2639, 7
    %v2641 = vsub.s32 %v2638, %v2640
    %v2642 = vrot.slane %v2500, %v2641
    %v2643 = vcombine.high %v2642, 0.0
    %v2645 = vunpack.c.l.s4 1934713408
    %v2646 = vunpack.c.0.s8 %v2645
    %v2647 = vlaneseq
    %v2648 = vshrl.u32 %v2647, 7
    %v2649 = vsub.s32 %v2646, %v2648
    %v2650 = vrot.slane %v2642, %v2649
    %v2652 = vunpack.c.l.s4 1934713408
    %v2653 = vunpack.c.0.s8 %v2652
    %v2654 = vlaneseq
    %v2655 = vshrl.u32 %v2654, 7
    %v2656 = vsub.s32 %v2653, %v2655
    %v2657 = vrot.slane %v2643, %v2656
    %v2658 = vcombine.high %v2500, 0.0
    %v2660 = vunpack.c.l.s4 1934713408
    %v2661 = vunpack.c.0.s8 %v2660
    %v2662 = vlaneseq
    %v2663 = vshrl.u32 %v2662, 7
    %v2664 = vsub.s32 %v2661, %v2663
    %v2665 = vrot.slane %v2658, %v2664
    %v2666 = vcombine.high %v2650, 0.0
    %v2667 = vcombine.high %v2657, 0.0
    %v2668 = vcombine.high %v2665, 0.0
    %2671 = vrot.lane.b32.xlu0 %v2550, 14
    %v2672 = vpop.permute.xlu0 %2671
    %2673 = vrot.lane.b32.xlu0 %v2632, 14
    %v2674 = vpop.permute.xlu0 %2673
    %2679 = vrot.lane.b32.xlu0 %v2534, 28
    %v2680 = vpop.permute.xlu0 %2679
    %2681 = vrot.lane.b32.xlu0 %v2616, 28
    %v2682 = vpop.permute.xlu0 %2681
    %2687 = vrot.lane.b32.xlu0 %v2551, 42
    %v2688 = vpop.permute.xlu0 %2687
    %2689 = vrot.lane.b32.xlu0 %v2633, 42
    %v2690 = vpop.permute.xlu0 %2689
    %2695 = vrot.lane.b32.xlu0 %v2542, 56
    %v2696 = vpop.permute.xlu0 %2695
    %2697 = vrot.lane.b32.xlu0 %v2624, 56
    %v2698 = vpop.permute.xlu0 %2697
    %2703 = vrot.lane.b32.xlu0 %v2552, 70
    %v2704 = vpop.permute.xlu0 %2703
    %2705 = vrot.lane.b32.xlu0 %v2634, 70
    %v2706 = vpop.permute.xlu0 %2705
    %2711 = vrot.lane.b32.xlu0 %v2549, 84
    %v2712 = vpop.permute.xlu0 %2711
    %2713 = vrot.lane.b32.xlu0 %v2631, 84
    %v2714 = vpop.permute.xlu0 %2713
    %2719 = vrot.lane.b32.xlu0 %v2553, 98
    %v2720 = vpop.permute.xlu0 %2719
    %2721 = vrot.lane.b32.xlu0 %v2635, 98
    %v2722 = vpop.permute.xlu0 %2721
    %2727 = vrot.lane.b32.xlu0 %v2568, 112
    %v2728 = vpop.permute.xlu0 %2727
    %2729 = vrot.lane.b32.xlu0 %v2650, 112
    %v2730 = vpop.permute.xlu0 %2729
    %2735 = vrot.lane.b32.xlu0 %v2584, 126
    %v2736 = vpop.permute.xlu0 %2735
    %2737 = vrot.lane.b32.xlu0 %v2666, 126
    %v2738 = vpop.permute.xlu0 %2737
    %2743 = vrot.lane.b32.xlu0 %v2575, 12
    %v2744 = vpop.permute.xlu0 %2743
    %2745 = vrot.lane.b32.xlu0 %v2657, 12
    %v2746 = vpop.permute.xlu0 %2745
    %2751 = vrot.lane.b32.xlu0 %v2585, 26
    %v2752 = vpop.permute.xlu0 %2751
    %2753 = vrot.lane.b32.xlu0 %v2667, 26
    %v2754 = vpop.permute.xlu0 %2753
    %2759 = vrot.lane.b32.xlu0 %v2583, 40
    %v2760 = vpop.permute.xlu0 %2759
    %2761 = vrot.lane.b32.xlu0 %v2665, 40
    %v2762 = vpop.permute.xlu0 %2761
    %2767 = vrot.lane.b32.xlu0 %v2586, 54
    %v2768 = vpop.permute.xlu0 %2767
    %2769 = vrot.lane.b32.xlu0 %v2668, 54
    %v2770 = vpop.permute.xlu0 %2769
    %v2773 = vsel %vm310, %v2527, %v2672
    %v2774 = vsel %vm310, %v2609, %v2674
    %v2775 = vsel %vm313, %v2773, %v2680
    %v2776 = vsel %vm313, %v2774, %v2682
    %v2777 = vsel %vm316, %v2775, %v2688
    %v2778 = vsel %vm316, %v2776, %v2690
    %v2779 = vsel %vm319, %v2777, %v2696
    %v2780 = vsel %vm319, %v2778, %v2698
    %v2781 = vsel %vm322, %v2779, %v2704
    %v2782 = vsel %vm322, %v2780, %v2706
    %v2783 = vsel %vm325, %v2781, %v2712
    %v2784 = vsel %vm325, %v2782, %v2714
    %v2785 = vsel %vm328, %v2783, %v2720
    %v2786 = vsel %vm328, %v2784, %v2722
    %v2787 = vsel %vm331, %v2785, %v2728
    %v2788 = vsel %vm331, %v2786, %v2730
    %v2789 = vsel %vm334, %v2787, %v2736
    %v2790 = vsel %vm334, %v2788, %v2738
    %v2791 = vsel %vm337, %v2736, %v2744
    %v2792 = vsel %vm337, %v2738, %v2746
    %v2793 = vsel %vm340, %v2791, %v2752
    %v2794 = vsel %vm340, %v2792, %v2754
    %v2795 = vsel %vm343, %v2793, %v2760
    %v2796 = vsel %vm343, %v2794, %v2762
    %v2797 = vsel %vm346, %v2795, %v2768
    %v2798 = vsel %vm346, %v2796, %v2770
    %v2799 = vcombine.high %v30, 0.0
    %v2801 = vunpack.c.l.s4 1983009808
    %v2802 = vunpack.c.0.s8 %v2801
    %v2803 = vlaneseq
    %v2804 = vshrl.u32 %v2803, 7
    %v2805 = vsub.s32 %v2802, %v2804
    %v2806 = vrot.slane %v30, %v2805
    %v2808 = vunpack.c.l.s4 1983009808
    %v2809 = vunpack.c.0.s8 %v2808
    %v2810 = vlaneseq
    %v2811 = vshrl.u32 %v2810, 7
    %v2812 = vsub.s32 %v2809, %v2811
    %v2813 = vrot.slane %v2799, %v2812
    %v2814 = vcombine.high %v2806, 0.0
    %v2816 = vunpack.c.l.s4 1934713408
    %v2817 = vunpack.c.0.s8 %v2816
    %v2818 = vlaneseq
    %v2819 = vshrl.u32 %v2818, 7
    %v2820 = vsub.s32 %v2817, %v2819
    %v2821 = vrot.slane %v2806, %v2820
    %v2823 = vunpack.c.l.s4 1934713408
    %v2824 = vunpack.c.0.s8 %v2823
    %v2825 = vlaneseq
    %v2826 = vshrl.u32 %v2825, 7
    %v2827 = vsub.s32 %v2824, %v2826
    %v2828 = vrot.slane %v2814, %v2827
    %v2829 = vcombine.high %v2813, 0.0
    %v2831 = vunpack.c.l.s4 1934713408
    %v2832 = vunpack.c.0.s8 %v2831
    %v2833 = vlaneseq
    %v2834 = vshrl.u32 %v2833, 7
    %v2835 = vsub.s32 %v2832, %v2834
    %v2836 = vrot.slane %v2813, %v2835
    %v2838 = vunpack.c.l.s4 1934713408
    %v2839 = vunpack.c.0.s8 %v2838
    %v2840 = vlaneseq
    %v2841 = vshrl.u32 %v2840, 7
    %v2842 = vsub.s32 %v2839, %v2841
    %v2843 = vrot.slane %v2829, %v2842
    %v2844 = vcombine.high %v2821, 0.0
    %v2845 = vcombine.high %v2828, 0.0
    %v2846 = vcombine.high %v2836, 0.0
    %v2847 = vcombine.high %v2843, 0.0
    %v2849 = vunpack.c.l.s4 1983009808
    %v2850 = vunpack.c.0.s8 %v2849
    %v2851 = vlaneseq
    %v2852 = vshrl.u32 %v2851, 7
    %v2853 = vsub.s32 %v2850, %v2852
    %v2854 = vrot.slane %v31, %v2853
    %v2855 = vcombine.high %v2854, 0.0
    %v2857 = vunpack.c.l.s4 1934713408
    %v2858 = vunpack.c.0.s8 %v2857
    %v2859 = vlaneseq
    %v2860 = vshrl.u32 %v2859, 7
    %v2861 = vsub.s32 %v2858, %v2860
    %v2862 = vrot.slane %v2854, %v2861
    %v2864 = vunpack.c.l.s4 1934713408
    %v2865 = vunpack.c.0.s8 %v2864
    %v2866 = vlaneseq
    %v2867 = vshrl.u32 %v2866, 7
    %v2868 = vsub.s32 %v2865, %v2867
    %v2869 = vrot.slane %v2855, %v2868
    %v2870 = vcombine.high %v31, 0.0
    %v2872 = vunpack.c.l.s4 1934713408
    %v2873 = vunpack.c.0.s8 %v2872
    %v2874 = vlaneseq
    %v2875 = vshrl.u32 %v2874, 7
    %v2876 = vsub.s32 %v2873, %v2875
    %v2877 = vrot.slane %v2870, %v2876
    %v2878 = vcombine.high %v2862, 0.0
    %v2879 = vcombine.high %v2869, 0.0
    %v2880 = vcombine.high %v2877, 0.0
    %v2881 = vcombine.high %v36, 0.0
    %v2883 = vunpack.c.l.s4 1983009808
    %v2884 = vunpack.c.0.s8 %v2883
    %v2885 = vlaneseq
    %v2886 = vshrl.u32 %v2885, 7
    %v2887 = vsub.s32 %v2884, %v2886
    %v2888 = vrot.slane %v36, %v2887
    %v2890 = vunpack.c.l.s4 1983009808
    %v2891 = vunpack.c.0.s8 %v2890
    %v2892 = vlaneseq
    %v2893 = vshrl.u32 %v2892, 7
    %v2894 = vsub.s32 %v2891, %v2893
    %v2895 = vrot.slane %v2881, %v2894
    %v2896 = vcombine.high %v2888, 0.0
    %v2898 = vunpack.c.l.s4 1934713408
    %v2899 = vunpack.c.0.s8 %v2898
    %v2900 = vlaneseq
    %v2901 = vshrl.u32 %v2900, 7
    %v2902 = vsub.s32 %v2899, %v2901
    %v2903 = vrot.slane %v2888, %v2902
    %v2905 = vunpack.c.l.s4 1934713408
    %v2906 = vunpack.c.0.s8 %v2905
    %v2907 = vlaneseq
    %v2908 = vshrl.u32 %v2907, 7
    %v2909 = vsub.s32 %v2906, %v2908
    %v2910 = vrot.slane %v2896, %v2909
    %v2911 = vcombine.high %v2895, 0.0
    %v2913 = vunpack.c.l.s4 1934713408
    %v2914 = vunpack.c.0.s8 %v2913
    %v2915 = vlaneseq
    %v2916 = vshrl.u32 %v2915, 7
    %v2917 = vsub.s32 %v2914, %v2916
    %v2918 = vrot.slane %v2895, %v2917
    %v2920 = vunpack.c.l.s4 1934713408
    %v2921 = vunpack.c.0.s8 %v2920
    %v2922 = vlaneseq
    %v2923 = vshrl.u32 %v2922, 7
    %v2924 = vsub.s32 %v2921, %v2923
    %v2925 = vrot.slane %v2911, %v2924
    %v2926 = vcombine.high %v2903, 0.0
    %v2927 = vcombine.high %v2910, 0.0
    %v2928 = vcombine.high %v2918, 0.0
    %v2929 = vcombine.high %v2925, 0.0
    %v2931 = vunpack.c.l.s4 1983009808
    %v2932 = vunpack.c.0.s8 %v2931
    %v2933 = vlaneseq
    %v2934 = vshrl.u32 %v2933, 7
    %v2935 = vsub.s32 %v2932, %v2934
    %v2936 = vrot.slane %v37, %v2935
    %v2937 = vcombine.high %v2936, 0.0
    %v2939 = vunpack.c.l.s4 1934713408
    %v2940 = vunpack.c.0.s8 %v2939
    %v2941 = vlaneseq
    %v2942 = vshrl.u32 %v2941, 7
    %v2943 = vsub.s32 %v2940, %v2942
    %v2944 = vrot.slane %v2936, %v2943
    %v2946 = vunpack.c.l.s4 1934713408
    %v2947 = vunpack.c.0.s8 %v2946
    %v2948 = vlaneseq
    %v2949 = vshrl.u32 %v2948, 7
    %v2950 = vsub.s32 %v2947, %v2949
    %v2951 = vrot.slane %v2937, %v2950
    %v2952 = vcombine.high %v37, 0.0
    %v2954 = vunpack.c.l.s4 1934713408
    %v2955 = vunpack.c.0.s8 %v2954
    %v2956 = vlaneseq
    %v2957 = vshrl.u32 %v2956, 7
    %v2958 = vsub.s32 %v2955, %v2957
    %v2959 = vrot.slane %v2952, %v2958
    %v2960 = vcombine.high %v2944, 0.0
    %v2961 = vcombine.high %v2951, 0.0
    %v2962 = vcombine.high %v2959, 0.0
    %2965 = vrot.lane.b32.xlu0 %v2844, 14
    %v2966 = vpop.permute.xlu0 %2965
    %2967 = vrot.lane.b32.xlu0 %v2926, 14
    %v2968 = vpop.permute.xlu0 %2967
    %2973 = vrot.lane.b32.xlu0 %v2828, 28
    %v2974 = vpop.permute.xlu0 %2973
    %2975 = vrot.lane.b32.xlu0 %v2910, 28
    %v2976 = vpop.permute.xlu0 %2975
    %2981 = vrot.lane.b32.xlu0 %v2845, 42
    %v2982 = vpop.permute.xlu0 %2981
    %2983 = vrot.lane.b32.xlu0 %v2927, 42
    %v2984 = vpop.permute.xlu0 %2983
    %2989 = vrot.lane.b32.xlu0 %v2836, 56
    %v2990 = vpop.permute.xlu0 %2989
    %2991 = vrot.lane.b32.xlu0 %v2918, 56
    %v2992 = vpop.permute.xlu0 %2991
    %2997 = vrot.lane.b32.xlu0 %v2846, 70
    %v2998 = vpop.permute.xlu0 %2997
    %2999 = vrot.lane.b32.xlu0 %v2928, 70
    %v3000 = vpop.permute.xlu0 %2999
    %3005 = vrot.lane.b32.xlu0 %v2843, 84
    %v3006 = vpop.permute.xlu0 %3005
    %3007 = vrot.lane.b32.xlu0 %v2925, 84
    %v3008 = vpop.permute.xlu0 %3007
    %3013 = vrot.lane.b32.xlu0 %v2847, 98
    %v3014 = vpop.permute.xlu0 %3013
    %3015 = vrot.lane.b32.xlu0 %v2929, 98
    %v3016 = vpop.permute.xlu0 %3015
    %3021 = vrot.lane.b32.xlu0 %v2862, 112
    %v3022 = vpop.permute.xlu0 %3021
    %3023 = vrot.lane.b32.xlu0 %v2944, 112
    %v3024 = vpop.permute.xlu0 %3023
    %3029 = vrot.lane.b32.xlu0 %v2878, 126
    %v3030 = vpop.permute.xlu0 %3029
    %3031 = vrot.lane.b32.xlu0 %v2960, 126
    %v3032 = vpop.permute.xlu0 %3031
    %3037 = vrot.lane.b32.xlu0 %v2869, 12
    %v3038 = vpop.permute.xlu0 %3037
    %3039 = vrot.lane.b32.xlu0 %v2951, 12
    %v3040 = vpop.permute.xlu0 %3039
    %3045 = vrot.lane.b32.xlu0 %v2879, 26
    %v3046 = vpop.permute.xlu0 %3045
    %3047 = vrot.lane.b32.xlu0 %v2961, 26
    %v3048 = vpop.permute.xlu0 %3047
    %3053 = vrot.lane.b32.xlu0 %v2877, 40
    %v3054 = vpop.permute.xlu0 %3053
    %3055 = vrot.lane.b32.xlu0 %v2959, 40
    %v3056 = vpop.permute.xlu0 %3055
    %3061 = vrot.lane.b32.xlu0 %v2880, 54
    %v3062 = vpop.permute.xlu0 %3061
    %3063 = vrot.lane.b32.xlu0 %v2962, 54
    %v3064 = vpop.permute.xlu0 %3063
    %v3067 = vsel %vm310, %v2821, %v2966
    %v3068 = vsel %vm310, %v2903, %v2968
    %v3069 = vsel %vm313, %v3067, %v2974
    %v3070 = vsel %vm313, %v3068, %v2976
    %v3071 = vsel %vm316, %v3069, %v2982
    %v3072 = vsel %vm316, %v3070, %v2984
    %v3073 = vsel %vm319, %v3071, %v2990
    %v3074 = vsel %vm319, %v3072, %v2992
    %v3075 = vsel %vm322, %v3073, %v2998
    %v3076 = vsel %vm322, %v3074, %v3000
    %v3077 = vsel %vm325, %v3075, %v3006
    %v3078 = vsel %vm325, %v3076, %v3008
    %v3079 = vsel %vm328, %v3077, %v3014
    %v3080 = vsel %vm328, %v3078, %v3016
    %v3081 = vsel %vm331, %v3079, %v3022
    %v3082 = vsel %vm331, %v3080, %v3024
    %v3083 = vsel %vm334, %v3081, %v3030
    %v3084 = vsel %vm334, %v3082, %v3032
    %v3085 = vsel %vm337, %v3030, %v3038
    %v3086 = vsel %vm337, %v3032, %v3040
    %v3087 = vsel %vm340, %v3085, %v3046
    %v3088 = vsel %vm340, %v3086, %v3048
    %v3089 = vsel %vm343, %v3087, %v3054
    %v3090 = vsel %vm343, %v3088, %v3056
    %v3091 = vsel %vm346, %v3089, %v3062
    %v3092 = vsel %vm346, %v3090, %v3064
    %3097 = vrot.lane.b32.xlu0 %v30, 127
    %v3098 = vpop.permute.xlu0 %3097
    %3099 = vrot.lane.b32.xlu0 %v31, 127
    %v3100 = vpop.permute.xlu0 %3099
    %3101 = vrot.lane.b32.xlu0 %v36, 127
    %v3102 = vpop.permute.xlu0 %3101
    %3103 = vrot.lane.b32.xlu0 %v37, 127
    %v3104 = vpop.permute.xlu0 %3103
    %v3109 = vcombine.high %v3098, 0.0
    %v3111 = vunpack.c.l.s4 1983009808
    %v3112 = vunpack.c.0.s8 %v3111
    %v3113 = vlaneseq
    %v3114 = vshrl.u32 %v3113, 7
    %v3115 = vsub.s32 %v3112, %v3114
    %v3116 = vrot.slane %v3098, %v3115
    %v3118 = vunpack.c.l.s4 1983009808
    %v3119 = vunpack.c.0.s8 %v3118
    %v3120 = vlaneseq
    %v3121 = vshrl.u32 %v3120, 7
    %v3122 = vsub.s32 %v3119, %v3121
    %v3123 = vrot.slane %v3109, %v3122
    %v3124 = vcombine.high %v3116, 0.0
    %v3126 = vunpack.c.l.s4 1934713408
    %v3127 = vunpack.c.0.s8 %v3126
    %v3128 = vlaneseq
    %v3129 = vshrl.u32 %v3128, 7
    %v3130 = vsub.s32 %v3127, %v3129
    %v3131 = vrot.slane %v3116, %v3130
    %v3133 = vunpack.c.l.s4 1934713408
    %v3134 = vunpack.c.0.s8 %v3133
    %v3135 = vlaneseq
    %v3136 = vshrl.u32 %v3135, 7
    %v3137 = vsub.s32 %v3134, %v3136
    %v3138 = vrot.slane %v3124, %v3137
    %v3139 = vcombine.high %v3123, 0.0
    %v3141 = vunpack.c.l.s4 1934713408
    %v3142 = vunpack.c.0.s8 %v3141
    %v3143 = vlaneseq
    %v3144 = vshrl.u32 %v3143, 7
    %v3145 = vsub.s32 %v3142, %v3144
    %v3146 = vrot.slane %v3123, %v3145
    %v3148 = vunpack.c.l.s4 1934713408
    %v3149 = vunpack.c.0.s8 %v3148
    %v3150 = vlaneseq
    %v3151 = vshrl.u32 %v3150, 7
    %v3152 = vsub.s32 %v3149, %v3151
    %v3153 = vrot.slane %v3139, %v3152
    %v3154 = vcombine.high %v3131, 0.0
    %v3155 = vcombine.high %v3138, 0.0
    %v3156 = vcombine.high %v3146, 0.0
    %v3157 = vcombine.high %v3153, 0.0
    %v3159 = vunpack.c.l.s4 1983009808
    %v3160 = vunpack.c.0.s8 %v3159
    %v3161 = vlaneseq
    %v3162 = vshrl.u32 %v3161, 7
    %v3163 = vsub.s32 %v3160, %v3162
    %v3164 = vrot.slane %v3100, %v3163
    %v3165 = vcombine.high %v3164, 0.0
    %v3167 = vunpack.c.l.s4 1934713408
    %v3168 = vunpack.c.0.s8 %v3167
    %v3169 = vlaneseq
    %v3170 = vshrl.u32 %v3169, 7
    %v3171 = vsub.s32 %v3168, %v3170
    %v3172 = vrot.slane %v3164, %v3171
    %v3174 = vunpack.c.l.s4 1934713408
    %v3175 = vunpack.c.0.s8 %v3174
    %v3176 = vlaneseq
    %v3177 = vshrl.u32 %v3176, 7
    %v3178 = vsub.s32 %v3175, %v3177
    %v3179 = vrot.slane %v3165, %v3178
    %v3180 = vcombine.high %v3100, 0.0
    %v3182 = vunpack.c.l.s4 1934713408
    %v3183 = vunpack.c.0.s8 %v3182
    %v3184 = vlaneseq
    %v3185 = vshrl.u32 %v3184, 7
    %v3186 = vsub.s32 %v3183, %v3185
    %v3187 = vrot.slane %v3180, %v3186
    %v3188 = vcombine.high %v3172, 0.0
    %v3189 = vcombine.high %v3179, 0.0
    %v3190 = vcombine.high %v3187, 0.0
    %v3191 = vcombine.high %v3102, 0.0
    %v3193 = vunpack.c.l.s4 1983009808
    %v3194 = vunpack.c.0.s8 %v3193
    %v3195 = vlaneseq
    %v3196 = vshrl.u32 %v3195, 7
    %v3197 = vsub.s32 %v3194, %v3196
    %v3198 = vrot.slane %v3102, %v3197
    %v3200 = vunpack.c.l.s4 1983009808
    %v3201 = vunpack.c.0.s8 %v3200
    %v3202 = vlaneseq
    %v3203 = vshrl.u32 %v3202, 7
    %v3204 = vsub.s32 %v3201, %v3203
    %v3205 = vrot.slane %v3191, %v3204
    %v3206 = vcombine.high %v3198, 0.0
    %v3208 = vunpack.c.l.s4 1934713408
    %v3209 = vunpack.c.0.s8 %v3208
    %v3210 = vlaneseq
    %v3211 = vshrl.u32 %v3210, 7
    %v3212 = vsub.s32 %v3209, %v3211
    %v3213 = vrot.slane %v3198, %v3212
    %v3215 = vunpack.c.l.s4 1934713408
    %v3216 = vunpack.c.0.s8 %v3215
    %v3217 = vlaneseq
    %v3218 = vshrl.u32 %v3217, 7
    %v3219 = vsub.s32 %v3216, %v3218
    %v3220 = vrot.slane %v3206, %v3219
    %v3221 = vcombine.high %v3205, 0.0
    %v3223 = vunpack.c.l.s4 1934713408
    %v3224 = vunpack.c.0.s8 %v3223
    %v3225 = vlaneseq
    %v3226 = vshrl.u32 %v3225, 7
    %v3227 = vsub.s32 %v3224, %v3226
    %v3228 = vrot.slane %v3205, %v3227
    %v3230 = vunpack.c.l.s4 1934713408
    %v3231 = vunpack.c.0.s8 %v3230
    %v3232 = vlaneseq
    %v3233 = vshrl.u32 %v3232, 7
    %v3234 = vsub.s32 %v3231, %v3233
    %v3235 = vrot.slane %v3221, %v3234
    %v3236 = vcombine.high %v3213, 0.0
    %v3237 = vcombine.high %v3220, 0.0
    %v3238 = vcombine.high %v3228, 0.0
    %v3239 = vcombine.high %v3235, 0.0
    %v3241 = vunpack.c.l.s4 1983009808
    %v3242 = vunpack.c.0.s8 %v3241
    %v3243 = vlaneseq
    %v3244 = vshrl.u32 %v3243, 7
    %v3245 = vsub.s32 %v3242, %v3244
    %v3246 = vrot.slane %v3104, %v3245
    %v3247 = vcombine.high %v3246, 0.0
    %v3249 = vunpack.c.l.s4 1934713408
    %v3250 = vunpack.c.0.s8 %v3249
    %v3251 = vlaneseq
    %v3252 = vshrl.u32 %v3251, 7
    %v3253 = vsub.s32 %v3250, %v3252
    %v3254 = vrot.slane %v3246, %v3253
    %v3256 = vunpack.c.l.s4 1934713408
    %v3257 = vunpack.c.0.s8 %v3256
    %v3258 = vlaneseq
    %v3259 = vshrl.u32 %v3258, 7
    %v3260 = vsub.s32 %v3257, %v3259
    %v3261 = vrot.slane %v3247, %v3260
    %v3262 = vcombine.high %v3104, 0.0
    %v3264 = vunpack.c.l.s4 1934713408
    %v3265 = vunpack.c.0.s8 %v3264
    %v3266 = vlaneseq
    %v3267 = vshrl.u32 %v3266, 7
    %v3268 = vsub.s32 %v3265, %v3267
    %v3269 = vrot.slane %v3262, %v3268
    %v3270 = vcombine.high %v3254, 0.0
    %v3271 = vcombine.high %v3261, 0.0
    %v3272 = vcombine.high %v3269, 0.0
    %3275 = vrot.lane.b32.xlu0 %v3154, 14
    %v3276 = vpop.permute.xlu0 %3275
    %3277 = vrot.lane.b32.xlu0 %v3236, 14
    %v3278 = vpop.permute.xlu0 %3277
    %3283 = vrot.lane.b32.xlu0 %v3138, 28
    %v3284 = vpop.permute.xlu0 %3283
    %3285 = vrot.lane.b32.xlu0 %v3220, 28
    %v3286 = vpop.permute.xlu0 %3285
    %3291 = vrot.lane.b32.xlu0 %v3155, 42
    %v3292 = vpop.permute.xlu0 %3291
    %3293 = vrot.lane.b32.xlu0 %v3237, 42
    %v3294 = vpop.permute.xlu0 %3293
    %3299 = vrot.lane.b32.xlu0 %v3146, 56
    %v3300 = vpop.permute.xlu0 %3299
    %3301 = vrot.lane.b32.xlu0 %v3228, 56
    %v3302 = vpop.permute.xlu0 %3301
    %3307 = vrot.lane.b32.xlu0 %v3156, 70
    %v3308 = vpop.permute.xlu0 %3307
    %3309 = vrot.lane.b32.xlu0 %v3238, 70
    %v3310 = vpop.permute.xlu0 %3309
    %3315 = vrot.lane.b32.xlu0 %v3153, 84
    %v3316 = vpop.permute.xlu0 %3315
    %3317 = vrot.lane.b32.xlu0 %v3235, 84
    %v3318 = vpop.permute.xlu0 %3317
    %3323 = vrot.lane.b32.xlu0 %v3157, 98
    %v3324 = vpop.permute.xlu0 %3323
    %3325 = vrot.lane.b32.xlu0 %v3239, 98
    %v3326 = vpop.permute.xlu0 %3325
    %3331 = vrot.lane.b32.xlu0 %v3172, 112
    %v3332 = vpop.permute.xlu0 %3331
    %3333 = vrot.lane.b32.xlu0 %v3254, 112
    %v3334 = vpop.permute.xlu0 %3333
    %3339 = vrot.lane.b32.xlu0 %v3188, 126
    %v3340 = vpop.permute.xlu0 %3339
    %3341 = vrot.lane.b32.xlu0 %v3270, 126
    %v3342 = vpop.permute.xlu0 %3341
    %3347 = vrot.lane.b32.xlu0 %v3179, 12
    %v3348 = vpop.permute.xlu0 %3347
    %3349 = vrot.lane.b32.xlu0 %v3261, 12
    %v3350 = vpop.permute.xlu0 %3349
    %3355 = vrot.lane.b32.xlu0 %v3189, 26
    %v3356 = vpop.permute.xlu0 %3355
    %3357 = vrot.lane.b32.xlu0 %v3271, 26
    %v3358 = vpop.permute.xlu0 %3357
    %3363 = vrot.lane.b32.xlu0 %v3187, 40
    %v3364 = vpop.permute.xlu0 %3363
    %3365 = vrot.lane.b32.xlu0 %v3269, 40
    %v3366 = vpop.permute.xlu0 %3365
    %3371 = vrot.lane.b32.xlu0 %v3190, 54
    %v3372 = vpop.permute.xlu0 %3371
    %3373 = vrot.lane.b32.xlu0 %v3272, 54
    %v3374 = vpop.permute.xlu0 %3373
    %v3377 = vsel %vm310, %v3131, %v3276
    %v3378 = vsel %vm310, %v3213, %v3278
    %v3379 = vsel %vm313, %v3377, %v3284
    %v3380 = vsel %vm313, %v3378, %v3286
    %v3381 = vsel %vm316, %v3379, %v3292
    %v3382 = vsel %vm316, %v3380, %v3294
    %v3383 = vsel %vm319, %v3381, %v3300
    %v3384 = vsel %vm319, %v3382, %v3302
    %v3385 = vsel %vm322, %v3383, %v3308
    %v3386 = vsel %vm322, %v3384, %v3310
    %v3387 = vsel %vm325, %v3385, %v3316
    %v3388 = vsel %vm325, %v3386, %v3318
    %v3389 = vsel %vm328, %v3387, %v3324
    %v3390 = vsel %vm328, %v3388, %v3326
    %v3391 = vsel %vm331, %v3389, %v3332
    %v3392 = vsel %vm331, %v3390, %v3334
    %v3393 = vsel %vm334, %v3391, %v3340
    %v3394 = vsel %vm334, %v3392, %v3342
    %v3395 = vsel %vm337, %v3340, %v3348
    %v3396 = vsel %vm337, %v3342, %v3350
    %v3397 = vsel %vm340, %v3395, %v3356
    %v3398 = vsel %vm340, %v3396, %v3358
    %v3399 = vsel %vm343, %v3397, %v3364
    %v3400 = vsel %vm343, %v3398, %v3366
    %v3401 = vsel %vm346, %v3399, %v3372
    %v3402 = vsel %vm346, %v3400, %v3374
    %3403 = vrot.lane.b32.xlu0 %v30, 126
    %v3404 = vpop.permute.xlu0 %3403
    %3405 = vrot.lane.b32.xlu0 %v31, 126
    %v3406 = vpop.permute.xlu0 %3405
    %3407 = vrot.lane.b32.xlu0 %v36, 126
    %v3408 = vpop.permute.xlu0 %3407
    %3409 = vrot.lane.b32.xlu0 %v37, 126
    %v3410 = vpop.permute.xlu0 %3409
    %v3415 = vcombine.high %v3404, 0.0
    %v3417 = vunpack.c.l.s4 1983009808
    %v3418 = vunpack.c.0.s8 %v3417
    %v3419 = vlaneseq
    %v3420 = vshrl.u32 %v3419, 7
    %v3421 = vsub.s32 %v3418, %v3420
    %v3422 = vrot.slane %v3404, %v3421
    %v3424 = vunpack.c.l.s4 1983009808
    %v3425 = vunpack.c.0.s8 %v3424
    %v3426 = vlaneseq
    %v3427 = vshrl.u32 %v3426, 7
    %v3428 = vsub.s32 %v3425, %v3427
    %v3429 = vrot.slane %v3415, %v3428
    %v3430 = vcombine.high %v3422, 0.0
    %v3432 = vunpack.c.l.s4 1934713408
    %v3433 = vunpack.c.0.s8 %v3432
    %v3434 = vlaneseq
    %v3435 = vshrl.u32 %v3434, 7
    %v3436 = vsub.s32 %v3433, %v3435
    %v3437 = vrot.slane %v3422, %v3436
    %v3439 = vunpack.c.l.s4 1934713408
    %v3440 = vunpack.c.0.s8 %v3439
    %v3441 = vlaneseq
    %v3442 = vshrl.u32 %v3441, 7
    %v3443 = vsub.s32 %v3440, %v3442
    %v3444 = vrot.slane %v3430, %v3443
    %v3445 = vcombine.high %v3429, 0.0
    %v3447 = vunpack.c.l.s4 1934713408
    %v3448 = vunpack.c.0.s8 %v3447
    %v3449 = vlaneseq
    %v3450 = vshrl.u32 %v3449, 7
    %v3451 = vsub.s32 %v3448, %v3450
    %v3452 = vrot.slane %v3429, %v3451
    %v3454 = vunpack.c.l.s4 1934713408
    %v3455 = vunpack.c.0.s8 %v3454
    %v3456 = vlaneseq
    %v3457 = vshrl.u32 %v3456, 7
    %v3458 = vsub.s32 %v3455, %v3457
    %v3459 = vrot.slane %v3445, %v3458
    %v3460 = vcombine.high %v3437, 0.0
    %v3461 = vcombine.high %v3444, 0.0
    %v3462 = vcombine.high %v3452, 0.0
    %v3463 = vcombine.high %v3459, 0.0
    %v3465 = vunpack.c.l.s4 1983009808
    %v3466 = vunpack.c.0.s8 %v3465
    %v3467 = vlaneseq
    %v3468 = vshrl.u32 %v3467, 7
    %v3469 = vsub.s32 %v3466, %v3468
    %v3470 = vrot.slane %v3406, %v3469
    %v3471 = vcombine.high %v3470, 0.0
    %v3473 = vunpack.c.l.s4 1934713408
    %v3474 = vunpack.c.0.s8 %v3473
    %v3475 = vlaneseq
    %v3476 = vshrl.u32 %v3475, 7
    %v3477 = vsub.s32 %v3474, %v3476
    %v3478 = vrot.slane %v3470, %v3477
    %v3480 = vunpack.c.l.s4 1934713408
    %v3481 = vunpack.c.0.s8 %v3480
    %v3482 = vlaneseq
    %v3483 = vshrl.u32 %v3482, 7
    %v3484 = vsub.s32 %v3481, %v3483
    %v3485 = vrot.slane %v3471, %v3484
    %v3486 = vcombine.high %v3406, 0.0
    %v3488 = vunpack.c.l.s4 1934713408
    %v3489 = vunpack.c.0.s8 %v3488
    %v3490 = vlaneseq
    %v3491 = vshrl.u32 %v3490, 7
    %v3492 = vsub.s32 %v3489, %v3491
    %v3493 = vrot.slane %v3486, %v3492
    %v3494 = vcombine.high %v3478, 0.0
    %v3495 = vcombine.high %v3485, 0.0
    %v3496 = vcombine.high %v3493, 0.0
    %v3497 = vcombine.high %v3408, 0.0
    %v3499 = vunpack.c.l.s4 1983009808
    %v3500 = vunpack.c.0.s8 %v3499
    %v3501 = vlaneseq
    %v3502 = vshrl.u32 %v3501, 7
    %v3503 = vsub.s32 %v3500, %v3502
    %v3504 = vrot.slane %v3408, %v3503
    %v3506 = vunpack.c.l.s4 1983009808
    %v3507 = vunpack.c.0.s8 %v3506
    %v3508 = vlaneseq
    %v3509 = vshrl.u32 %v3508, 7
    %v3510 = vsub.s32 %v3507, %v3509
    %v3511 = vrot.slane %v3497, %v3510
    %v3512 = vcombine.high %v3504, 0.0
    %v3514 = vunpack.c.l.s4 1934713408
    %v3515 = vunpack.c.0.s8 %v3514
    %v3516 = vlaneseq
    %v3517 = vshrl.u32 %v3516, 7
    %v3518 = vsub.s32 %v3515, %v3517
    %v3519 = vrot.slane %v3504, %v3518
    %v3521 = vunpack.c.l.s4 1934713408
    %v3522 = vunpack.c.0.s8 %v3521
    %v3523 = vlaneseq
    %v3524 = vshrl.u32 %v3523, 7
    %v3525 = vsub.s32 %v3522, %v3524
    %v3526 = vrot.slane %v3512, %v3525
    %v3527 = vcombine.high %v3511, 0.0
    %v3529 = vunpack.c.l.s4 1934713408
    %v3530 = vunpack.c.0.s8 %v3529
    %v3531 = vlaneseq
    %v3532 = vshrl.u32 %v3531, 7
    %v3533 = vsub.s32 %v3530, %v3532
    %v3534 = vrot.slane %v3511, %v3533
    %v3536 = vunpack.c.l.s4 1934713408
    %v3537 = vunpack.c.0.s8 %v3536
    %v3538 = vlaneseq
    %v3539 = vshrl.u32 %v3538, 7
    %v3540 = vsub.s32 %v3537, %v3539
    %v3541 = vrot.slane %v3527, %v3540
    %v3542 = vcombine.high %v3519, 0.0
    %v3543 = vcombine.high %v3526, 0.0
    %v3544 = vcombine.high %v3534, 0.0
    %v3545 = vcombine.high %v3541, 0.0
    %v3547 = vunpack.c.l.s4 1983009808
    %v3548 = vunpack.c.0.s8 %v3547
    %v3549 = vlaneseq
    %v3550 = vshrl.u32 %v3549, 7
    %v3551 = vsub.s32 %v3548, %v3550
    %v3552 = vrot.slane %v3410, %v3551
    %v3553 = vcombine.high %v3552, 0.0
    %v3555 = vunpack.c.l.s4 1934713408
    %v3556 = vunpack.c.0.s8 %v3555
    %v3557 = vlaneseq
    %v3558 = vshrl.u32 %v3557, 7
    %v3559 = vsub.s32 %v3556, %v3558
    %v3560 = vrot.slane %v3552, %v3559
    %v3562 = vunpack.c.l.s4 1934713408
    %v3563 = vunpack.c.0.s8 %v3562
    %v3564 = vlaneseq
    %v3565 = vshrl.u32 %v3564, 7
    %v3566 = vsub.s32 %v3563, %v3565
    %v3567 = vrot.slane %v3553, %v3566
    %v3568 = vcombine.high %v3410, 0.0
    %v3570 = vunpack.c.l.s4 1934713408
    %v3571 = vunpack.c.0.s8 %v3570
    %v3572 = vlaneseq
    %v3573 = vshrl.u32 %v3572, 7
    %v3574 = vsub.s32 %v3571, %v3573
    %v3575 = vrot.slane %v3568, %v3574
    %v3576 = vcombine.high %v3560, 0.0
    %v3577 = vcombine.high %v3567, 0.0
    %v3578 = vcombine.high %v3575, 0.0
    %3581 = vrot.lane.b32.xlu0 %v3460, 14
    %v3582 = vpop.permute.xlu0 %3581
    %3583 = vrot.lane.b32.xlu0 %v3542, 14
    %v3584 = vpop.permute.xlu0 %3583
    %3589 = vrot.lane.b32.xlu0 %v3444, 28
    %v3590 = vpop.permute.xlu0 %3589
    %3591 = vrot.lane.b32.xlu0 %v3526, 28
    %v3592 = vpop.permute.xlu0 %3591
    %3597 = vrot.lane.b32.xlu0 %v3461, 42
    %v3598 = vpop.permute.xlu0 %3597
    %3599 = vrot.lane.b32.xlu0 %v3543, 42
    %v3600 = vpop.permute.xlu0 %3599
    %3605 = vrot.lane.b32.xlu0 %v3452, 56
    %v3606 = vpop.permute.xlu0 %3605
    %3607 = vrot.lane.b32.xlu0 %v3534, 56
    %v3608 = vpop.permute.xlu0 %3607
    %3613 = vrot.lane.b32.xlu0 %v3462, 70
    %v3614 = vpop.permute.xlu0 %3613
    %3615 = vrot.lane.b32.xlu0 %v3544, 70
    %v3616 = vpop.permute.xlu0 %3615
    %3621 = vrot.lane.b32.xlu0 %v3459, 84
    %v3622 = vpop.permute.xlu0 %3621
    %3623 = vrot.lane.b32.xlu0 %v3541, 84
    %v3624 = vpop.permute.xlu0 %3623
    %3629 = vrot.lane.b32.xlu0 %v3463, 98
    %v3630 = vpop.permute.xlu0 %3629
    %3631 = vrot.lane.b32.xlu0 %v3545, 98
    %v3632 = vpop.permute.xlu0 %3631
    %3637 = vrot.lane.b32.xlu0 %v3478, 112
    %v3638 = vpop.permute.xlu0 %3637
    %3639 = vrot.lane.b32.xlu0 %v3560, 112
    %v3640 = vpop.permute.xlu0 %3639
    %3645 = vrot.lane.b32.xlu0 %v3494, 126
    %v3646 = vpop.permute.xlu0 %3645
    %3647 = vrot.lane.b32.xlu0 %v3576, 126
    %v3648 = vpop.permute.xlu0 %3647
    %3653 = vrot.lane.b32.xlu0 %v3485, 12
    %v3654 = vpop.permute.xlu0 %3653
    %3655 = vrot.lane.b32.xlu0 %v3567, 12
    %v3656 = vpop.permute.xlu0 %3655
    %3661 = vrot.lane.b32.xlu0 %v3495, 26
    %v3662 = vpop.permute.xlu0 %3661
    %3663 = vrot.lane.b32.xlu0 %v3577, 26
    %v3664 = vpop.permute.xlu0 %3663
    %3669 = vrot.lane.b32.xlu0 %v3493, 40
    %v3670 = vpop.permute.xlu0 %3669
    %3671 = vrot.lane.b32.xlu0 %v3575, 40
    %v3672 = vpop.permute.xlu0 %3671
    %3677 = vrot.lane.b32.xlu0 %v3496, 54
    %v3678 = vpop.permute.xlu0 %3677
    %3679 = vrot.lane.b32.xlu0 %v3578, 54
    %v3680 = vpop.permute.xlu0 %3679
    %v3683 = vsel %vm310, %v3437, %v3582
    %v3684 = vsel %vm310, %v3519, %v3584
    %v3685 = vsel %vm313, %v3683, %v3590
    %v3686 = vsel %vm313, %v3684, %v3592
    %v3687 = vsel %vm316, %v3685, %v3598
    %v3688 = vsel %vm316, %v3686, %v3600
    %v3689 = vsel %vm319, %v3687, %v3606
    %v3690 = vsel %vm319, %v3688, %v3608
    %v3691 = vsel %vm322, %v3689, %v3614
    %v3692 = vsel %vm322, %v3690, %v3616
    %v3693 = vsel %vm325, %v3691, %v3622
    %v3694 = vsel %vm325, %v3692, %v3624
    %v3695 = vsel %vm328, %v3693, %v3630
    %v3696 = vsel %vm328, %v3694, %v3632
    %v3697 = vsel %vm331, %v3695, %v3638
    %v3698 = vsel %vm331, %v3696, %v3640
    %v3699 = vsel %vm334, %v3697, %v3646
    %v3700 = vsel %vm334, %v3698, %v3648
    %v3701 = vsel %vm337, %v3646, %v3654
    %v3702 = vsel %vm337, %v3648, %v3656
    %v3703 = vsel %vm340, %v3701, %v3662
    %v3704 = vsel %vm340, %v3702, %v3664
    %v3705 = vsel %vm343, %v3703, %v3670
    %v3706 = vsel %vm343, %v3704, %v3672
    %v3707 = vsel %vm346, %v3705, %v3678
    %v3708 = vsel %vm346, %v3706, %v3680
    %v3709 = vrot.slane %v30, 1
    %v3710 = vrot.slane %v31, 1
    %v3711 = vsel %vm965, %v3709, %v3710
    %v3712 = vrot.slane %v36, 1
    %v3713 = vrot.slane %v37, 1
    %v3714 = vsel %vm965, %v3712, %v3713
    %v3719 = vcombine.high %v3711, 0.0
    %v3721 = vunpack.c.l.s4 1983009808
    %v3722 = vunpack.c.0.s8 %v3721
    %v3723 = vlaneseq
    %v3724 = vshrl.u32 %v3723, 7
    %v3725 = vsub.s32 %v3722, %v3724
    %v3726 = vrot.slane %v3711, %v3725
    %v3728 = vunpack.c.l.s4 1983009808
    %v3729 = vunpack.c.0.s8 %v3728
    %v3730 = vlaneseq
    %v3731 = vshrl.u32 %v3730, 7
    %v3732 = vsub.s32 %v3729, %v3731
    %v3733 = vrot.slane %v3719, %v3732
    %v3734 = vcombine.high %v3726, 0.0
    %v3736 = vunpack.c.l.s4 1934713408
    %v3737 = vunpack.c.0.s8 %v3736
    %v3738 = vlaneseq
    %v3739 = vshrl.u32 %v3738, 7
    %v3740 = vsub.s32 %v3737, %v3739
    %v3741 = vrot.slane %v3726, %v3740
    %v3743 = vunpack.c.l.s4 1934713408
    %v3744 = vunpack.c.0.s8 %v3743
    %v3745 = vlaneseq
    %v3746 = vshrl.u32 %v3745, 7
    %v3747 = vsub.s32 %v3744, %v3746
    %v3748 = vrot.slane %v3734, %v3747
    %v3749 = vcombine.high %v3733, 0.0
    %v3751 = vunpack.c.l.s4 1934713408
    %v3752 = vunpack.c.0.s8 %v3751
    %v3753 = vlaneseq
    %v3754 = vshrl.u32 %v3753, 7
    %v3755 = vsub.s32 %v3752, %v3754
    %v3756 = vrot.slane %v3733, %v3755
    %v3758 = vunpack.c.l.s4 1934713408
    %v3759 = vunpack.c.0.s8 %v3758
    %v3760 = vlaneseq
    %v3761 = vshrl.u32 %v3760, 7
    %v3762 = vsub.s32 %v3759, %v3761
    %v3763 = vrot.slane %v3749, %v3762
    %v3764 = vcombine.high %v3741, 0.0
    %v3765 = vcombine.high %v3748, 0.0
    %v3766 = vcombine.high %v3756, 0.0
    %v3767 = vcombine.high %v3763, 0.0
    %v3769 = vunpack.c.l.s4 1983009808
    %v3770 = vunpack.c.0.s8 %v3769
    %v3771 = vlaneseq
    %v3772 = vshrl.u32 %v3771, 7
    %v3773 = vsub.s32 %v3770, %v3772
    %v3774 = vrot.slane %v3710, %v3773
    %v3775 = vcombine.high %v3774, 0.0
    %v3777 = vunpack.c.l.s4 1934713408
    %v3778 = vunpack.c.0.s8 %v3777
    %v3779 = vlaneseq
    %v3780 = vshrl.u32 %v3779, 7
    %v3781 = vsub.s32 %v3778, %v3780
    %v3782 = vrot.slane %v3774, %v3781
    %v3784 = vunpack.c.l.s4 1934713408
    %v3785 = vunpack.c.0.s8 %v3784
    %v3786 = vlaneseq
    %v3787 = vshrl.u32 %v3786, 7
    %v3788 = vsub.s32 %v3785, %v3787
    %v3789 = vrot.slane %v3775, %v3788
    %v3790 = vcombine.high %v3710, 0.0
    %v3792 = vunpack.c.l.s4 1934713408
    %v3793 = vunpack.c.0.s8 %v3792
    %v3794 = vlaneseq
    %v3795 = vshrl.u32 %v3794, 7
    %v3796 = vsub.s32 %v3793, %v3795
    %v3797 = vrot.slane %v3790, %v3796
    %v3798 = vcombine.high %v3782, 0.0
    %v3799 = vcombine.high %v3789, 0.0
    %v3800 = vcombine.high %v3797, 0.0
    %v3801 = vcombine.high %v3714, 0.0
    %v3803 = vunpack.c.l.s4 1983009808
    %v3804 = vunpack.c.0.s8 %v3803
    %v3805 = vlaneseq
    %v3806 = vshrl.u32 %v3805, 7
    %v3807 = vsub.s32 %v3804, %v3806
    %v3808 = vrot.slane %v3714, %v3807
    %v3810 = vunpack.c.l.s4 1983009808
    %v3811 = vunpack.c.0.s8 %v3810
    %v3812 = vlaneseq
    %v3813 = vshrl.u32 %v3812, 7
    %v3814 = vsub.s32 %v3811, %v3813
    %v3815 = vrot.slane %v3801, %v3814
    %v3816 = vcombine.high %v3808, 0.0
    %v3818 = vunpack.c.l.s4 1934713408
    %v3819 = vunpack.c.0.s8 %v3818
    %v3820 = vlaneseq
    %v3821 = vshrl.u32 %v3820, 7
    %v3822 = vsub.s32 %v3819, %v3821
    %v3823 = vrot.slane %v3808, %v3822
    %v3825 = vunpack.c.l.s4 1934713408
    %v3826 = vunpack.c.0.s8 %v3825
    %v3827 = vlaneseq
    %v3828 = vshrl.u32 %v3827, 7
    %v3829 = vsub.s32 %v3826, %v3828
    %v3830 = vrot.slane %v3816, %v3829
    %v3831 = vcombine.high %v3815, 0.0
    %v3833 = vunpack.c.l.s4 1934713408
    %v3834 = vunpack.c.0.s8 %v3833
    %v3835 = vlaneseq
    %v3836 = vshrl.u32 %v3835, 7
    %v3837 = vsub.s32 %v3834, %v3836
    %v3838 = vrot.slane %v3815, %v3837
    %v3840 = vunpack.c.l.s4 1934713408
    %v3841 = vunpack.c.0.s8 %v3840
    %v3842 = vlaneseq
    %v3843 = vshrl.u32 %v3842, 7
    %v3844 = vsub.s32 %v3841, %v3843
    %v3845 = vrot.slane %v3831, %v3844
    %v3846 = vcombine.high %v3823, 0.0
    %v3847 = vcombine.high %v3830, 0.0
    %v3848 = vcombine.high %v3838, 0.0
    %v3849 = vcombine.high %v3845, 0.0
    %v3851 = vunpack.c.l.s4 1983009808
    %v3852 = vunpack.c.0.s8 %v3851
    %v3853 = vlaneseq
    %v3854 = vshrl.u32 %v3853, 7
    %v3855 = vsub.s32 %v3852, %v3854
    %v3856 = vrot.slane %v3713, %v3855
    %v3857 = vcombine.high %v3856, 0.0
    %v3859 = vunpack.c.l.s4 1934713408
    %v3860 = vunpack.c.0.s8 %v3859
    %v3861 = vlaneseq
    %v3862 = vshrl.u32 %v3861, 7
    %v3863 = vsub.s32 %v3860, %v3862
    %v3864 = vrot.slane %v3856, %v3863
    %v3866 = vunpack.c.l.s4 1934713408
    %v3867 = vunpack.c.0.s8 %v3866
    %v3868 = vlaneseq
    %v3869 = vshrl.u32 %v3868, 7
    %v3870 = vsub.s32 %v3867, %v3869
    %v3871 = vrot.slane %v3857, %v3870
    %v3872 = vcombine.high %v3713, 0.0
    %v3874 = vunpack.c.l.s4 1934713408
    %v3875 = vunpack.c.0.s8 %v3874
    %v3876 = vlaneseq
    %v3877 = vshrl.u32 %v3876, 7
    %v3878 = vsub.s32 %v3875, %v3877
    %v3879 = vrot.slane %v3872, %v3878
    %v3880 = vcombine.high %v3864, 0.0
    %v3881 = vcombine.high %v3871, 0.0
    %v3882 = vcombine.high %v3879, 0.0
    %3885 = vrot.lane.b32.xlu0 %v3764, 14
    %v3886 = vpop.permute.xlu0 %3885
    %3887 = vrot.lane.b32.xlu0 %v3846, 14
    %v3888 = vpop.permute.xlu0 %3887
    %3893 = vrot.lane.b32.xlu0 %v3748, 28
    %v3894 = vpop.permute.xlu0 %3893
    %3895 = vrot.lane.b32.xlu0 %v3830, 28
    %v3896 = vpop.permute.xlu0 %3895
    %3901 = vrot.lane.b32.xlu0 %v3765, 42
    %v3902 = vpop.permute.xlu0 %3901
    %3903 = vrot.lane.b32.xlu0 %v3847, 42
    %v3904 = vpop.permute.xlu0 %3903
    %3909 = vrot.lane.b32.xlu0 %v3756, 56
    %v3910 = vpop.permute.xlu0 %3909
    %3911 = vrot.lane.b32.xlu0 %v3838, 56
    %v3912 = vpop.permute.xlu0 %3911
    %3917 = vrot.lane.b32.xlu0 %v3766, 70
    %v3918 = vpop.permute.xlu0 %3917
    %3919 = vrot.lane.b32.xlu0 %v3848, 70
    %v3920 = vpop.permute.xlu0 %3919
    %3925 = vrot.lane.b32.xlu0 %v3763, 84
    %v3926 = vpop.permute.xlu0 %3925
    %3927 = vrot.lane.b32.xlu0 %v3845, 84
    %v3928 = vpop.permute.xlu0 %3927
    %3933 = vrot.lane.b32.xlu0 %v3767, 98
    %v3934 = vpop.permute.xlu0 %3933
    %3935 = vrot.lane.b32.xlu0 %v3849, 98
    %v3936 = vpop.permute.xlu0 %3935
    %3941 = vrot.lane.b32.xlu0 %v3782, 112
    %v3942 = vpop.permute.xlu0 %3941
    %3943 = vrot.lane.b32.xlu0 %v3864, 112
    %v3944 = vpop.permute.xlu0 %3943
    %3949 = vrot.lane.b32.xlu0 %v3798, 126
    %v3950 = vpop.permute.xlu0 %3949
    %3951 = vrot.lane.b32.xlu0 %v3880, 126
    %v3952 = vpop.permute.xlu0 %3951
    %3957 = vrot.lane.b32.xlu0 %v3789, 12
    %v3958 = vpop.permute.xlu0 %3957
    %3959 = vrot.lane.b32.xlu0 %v3871, 12
    %v3960 = vpop.permute.xlu0 %3959
    %3965 = vrot.lane.b32.xlu0 %v3799, 26
    %v3966 = vpop.permute.xlu0 %3965
    %3967 = vrot.lane.b32.xlu0 %v3881, 26
    %v3968 = vpop.permute.xlu0 %3967
    %3973 = vrot.lane.b32.xlu0 %v3797, 40
    %v3974 = vpop.permute.xlu0 %3973
    %3975 = vrot.lane.b32.xlu0 %v3879, 40
    %v3976 = vpop.permute.xlu0 %3975
    %3981 = vrot.lane.b32.xlu0 %v3800, 54
    %v3982 = vpop.permute.xlu0 %3981
    %3983 = vrot.lane.b32.xlu0 %v3882, 54
    %v3984 = vpop.permute.xlu0 %3983
    %v3987 = vsel %vm310, %v3741, %v3886
    %v3988 = vsel %vm310, %v3823, %v3888
    %v3989 = vsel %vm313, %v3987, %v3894
    %v3990 = vsel %vm313, %v3988, %v3896
    %v3991 = vsel %vm316, %v3989, %v3902
    %v3992 = vsel %vm316, %v3990, %v3904
    %v3993 = vsel %vm319, %v3991, %v3910
    %v3994 = vsel %vm319, %v3992, %v3912
    %v3995 = vsel %vm322, %v3993, %v3918
    %v3996 = vsel %vm322, %v3994, %v3920
    %v3997 = vsel %vm325, %v3995, %v3926
    %v3998 = vsel %vm325, %v3996, %v3928
    %v3999 = vsel %vm328, %v3997, %v3934
    %v4000 = vsel %vm328, %v3998, %v3936
    %v4001 = vsel %vm331, %v3999, %v3942
    %v4002 = vsel %vm331, %v4000, %v3944
    %v4003 = vsel %vm334, %v4001, %v3950
    %v4004 = vsel %vm334, %v4002, %v3952
    %v4005 = vsel %vm337, %v3950, %v3958
    %v4006 = vsel %vm337, %v3952, %v3960
    %v4007 = vsel %vm340, %v4005, %v3966
    %v4008 = vsel %vm340, %v4006, %v3968
    %v4009 = vsel %vm343, %v4007, %v3974
    %v4010 = vsel %vm343, %v4008, %v3976
    %v4011 = vsel %vm346, %v4009, %v3982
    %v4012 = vsel %vm346, %v4010, %v3984
    %4013 = vrot.lane.b32.xlu0 %v3711, 127
    %v4014 = vpop.permute.xlu0 %4013
    %4015 = vrot.lane.b32.xlu0 %v3710, 127
    %v4016 = vpop.permute.xlu0 %4015
    %4017 = vrot.lane.b32.xlu0 %v3714, 127
    %v4018 = vpop.permute.xlu0 %4017
    %4019 = vrot.lane.b32.xlu0 %v3713, 127
    %v4020 = vpop.permute.xlu0 %4019
    %v4025 = vcombine.high %v4014, 0.0
    %v4027 = vunpack.c.l.s4 1983009808
    %v4028 = vunpack.c.0.s8 %v4027
    %v4029 = vlaneseq
    %v4030 = vshrl.u32 %v4029, 7
    %v4031 = vsub.s32 %v4028, %v4030
    %v4032 = vrot.slane %v4014, %v4031
    %v4034 = vunpack.c.l.s4 1983009808
    %v4035 = vunpack.c.0.s8 %v4034
    %v4036 = vlaneseq
    %v4037 = vshrl.u32 %v4036, 7
    %v4038 = vsub.s32 %v4035, %v4037
    %v4039 = vrot.slane %v4025, %v4038
    %v4040 = vcombine.high %v4032, 0.0
    %v4042 = vunpack.c.l.s4 1934713408
    %v4043 = vunpack.c.0.s8 %v4042
    %v4044 = vlaneseq
    %v4045 = vshrl.u32 %v4044, 7
    %v4046 = vsub.s32 %v4043, %v4045
    %v4047 = vrot.slane %v4032, %v4046
    %v4049 = vunpack.c.l.s4 1934713408
    %v4050 = vunpack.c.0.s8 %v4049
    %v4051 = vlaneseq
    %v4052 = vshrl.u32 %v4051, 7
    %v4053 = vsub.s32 %v4050, %v4052
    %v4054 = vrot.slane %v4040, %v4053
    %v4055 = vcombine.high %v4039, 0.0
    %v4057 = vunpack.c.l.s4 1934713408
    %v4058 = vunpack.c.0.s8 %v4057
    %v4059 = vlaneseq
    %v4060 = vshrl.u32 %v4059, 7
    %v4061 = vsub.s32 %v4058, %v4060
    %v4062 = vrot.slane %v4039, %v4061
    %v4064 = vunpack.c.l.s4 1934713408
    %v4065 = vunpack.c.0.s8 %v4064
    %v4066 = vlaneseq
    %v4067 = vshrl.u32 %v4066, 7
    %v4068 = vsub.s32 %v4065, %v4067
    %v4069 = vrot.slane %v4055, %v4068
    %v4070 = vcombine.high %v4047, 0.0
    %v4071 = vcombine.high %v4054, 0.0
    %v4072 = vcombine.high %v4062, 0.0
    %v4073 = vcombine.high %v4069, 0.0
    %v4075 = vunpack.c.l.s4 1983009808
    %v4076 = vunpack.c.0.s8 %v4075
    %v4077 = vlaneseq
    %v4078 = vshrl.u32 %v4077, 7
    %v4079 = vsub.s32 %v4076, %v4078
    %v4080 = vrot.slane %v4016, %v4079
    %v4081 = vcombine.high %v4080, 0.0
    %v4083 = vunpack.c.l.s4 1934713408
    %v4084 = vunpack.c.0.s8 %v4083
    %v4085 = vlaneseq
    %v4086 = vshrl.u32 %v4085, 7
    %v4087 = vsub.s32 %v4084, %v4086
    %v4088 = vrot.slane %v4080, %v4087
    %v4090 = vunpack.c.l.s4 1934713408
    %v4091 = vunpack.c.0.s8 %v4090
    %v4092 = vlaneseq
    %v4093 = vshrl.u32 %v4092, 7
    %v4094 = vsub.s32 %v4091, %v4093
    %v4095 = vrot.slane %v4081, %v4094
    %v4096 = vcombine.high %v4016, 0.0
    %v4098 = vunpack.c.l.s4 1934713408
    %v4099 = vunpack.c.0.s8 %v4098
    %v4100 = vlaneseq
    %v4101 = vshrl.u32 %v4100, 7
    %v4102 = vsub.s32 %v4099, %v4101
    %v4103 = vrot.slane %v4096, %v4102
    %v4104 = vcombine.high %v4088, 0.0
    %v4105 = vcombine.high %v4095, 0.0
    %v4106 = vcombine.high %v4103, 0.0
    %v4107 = vcombine.high %v4018, 0.0
    %v4109 = vunpack.c.l.s4 1983009808
    %v4110 = vunpack.c.0.s8 %v4109
    %v4111 = vlaneseq
    %v4112 = vshrl.u32 %v4111, 7
    %v4113 = vsub.s32 %v4110, %v4112
    %v4114 = vrot.slane %v4018, %v4113
    %v4116 = vunpack.c.l.s4 1983009808
    %v4117 = vunpack.c.0.s8 %v4116
    %v4118 = vlaneseq
    %v4119 = vshrl.u32 %v4118, 7
    %v4120 = vsub.s32 %v4117, %v4119
    %v4121 = vrot.slane %v4107, %v4120
    %v4122 = vcombine.high %v4114, 0.0
    %v4124 = vunpack.c.l.s4 1934713408
    %v4125 = vunpack.c.0.s8 %v4124
    %v4126 = vlaneseq
    %v4127 = vshrl.u32 %v4126, 7
    %v4128 = vsub.s32 %v4125, %v4127
    %v4129 = vrot.slane %v4114, %v4128
    %v4131 = vunpack.c.l.s4 1934713408
    %v4132 = vunpack.c.0.s8 %v4131
    %v4133 = vlaneseq
    %v4134 = vshrl.u32 %v4133, 7
    %v4135 = vsub.s32 %v4132, %v4134
    %v4136 = vrot.slane %v4122, %v4135
    %v4137 = vcombine.high %v4121, 0.0
    %v4139 = vunpack.c.l.s4 1934713408
    %v4140 = vunpack.c.0.s8 %v4139
    %v4141 = vlaneseq
    %v4142 = vshrl.u32 %v4141, 7
    %v4143 = vsub.s32 %v4140, %v4142
    %v4144 = vrot.slane %v4121, %v4143
    %v4146 = vunpack.c.l.s4 1934713408
    %v4147 = vunpack.c.0.s8 %v4146
    %v4148 = vlaneseq
    %v4149 = vshrl.u32 %v4148, 7
    %v4150 = vsub.s32 %v4147, %v4149
    %v4151 = vrot.slane %v4137, %v4150
    %v4152 = vcombine.high %v4129, 0.0
    %v4153 = vcombine.high %v4136, 0.0
    %v4154 = vcombine.high %v4144, 0.0
    %v4155 = vcombine.high %v4151, 0.0
    %v4157 = vunpack.c.l.s4 1983009808
    %v4158 = vunpack.c.0.s8 %v4157
    %v4159 = vlaneseq
    %v4160 = vshrl.u32 %v4159, 7
    %v4161 = vsub.s32 %v4158, %v4160
    %v4162 = vrot.slane %v4020, %v4161
    %v4163 = vcombine.high %v4162, 0.0
    %v4165 = vunpack.c.l.s4 1934713408
    %v4166 = vunpack.c.0.s8 %v4165
    %v4167 = vlaneseq
    %v4168 = vshrl.u32 %v4167, 7
    %v4169 = vsub.s32 %v4166, %v4168
    %v4170 = vrot.slane %v4162, %v4169
    %v4172 = vunpack.c.l.s4 1934713408
    %v4173 = vunpack.c.0.s8 %v4172
    %v4174 = vlaneseq
    %v4175 = vshrl.u32 %v4174, 7
    %v4176 = vsub.s32 %v4173, %v4175
    %v4177 = vrot.slane %v4163, %v4176
    %v4178 = vcombine.high %v4020, 0.0
    %v4180 = vunpack.c.l.s4 1934713408
    %v4181 = vunpack.c.0.s8 %v4180
    %v4182 = vlaneseq
    %v4183 = vshrl.u32 %v4182, 7
    %v4184 = vsub.s32 %v4181, %v4183
    %v4185 = vrot.slane %v4178, %v4184
    %v4186 = vcombine.high %v4170, 0.0
    %v4187 = vcombine.high %v4177, 0.0
    %v4188 = vcombine.high %v4185, 0.0
    %4191 = vrot.lane.b32.xlu0 %v4070, 14
    %v4192 = vpop.permute.xlu0 %4191
    %4193 = vrot.lane.b32.xlu0 %v4152, 14
    %v4194 = vpop.permute.xlu0 %4193
    %4199 = vrot.lane.b32.xlu0 %v4054, 28
    %v4200 = vpop.permute.xlu0 %4199
    %4201 = vrot.lane.b32.xlu0 %v4136, 28
    %v4202 = vpop.permute.xlu0 %4201
    %4207 = vrot.lane.b32.xlu0 %v4071, 42
    %v4208 = vpop.permute.xlu0 %4207
    %4209 = vrot.lane.b32.xlu0 %v4153, 42
    %v4210 = vpop.permute.xlu0 %4209
    %4215 = vrot.lane.b32.xlu0 %v4062, 56
    %v4216 = vpop.permute.xlu0 %4215
    %4217 = vrot.lane.b32.xlu0 %v4144, 56
    %v4218 = vpop.permute.xlu0 %4217
    %4223 = vrot.lane.b32.xlu0 %v4072, 70
    %v4224 = vpop.permute.xlu0 %4223
    %4225 = vrot.lane.b32.xlu0 %v4154, 70
    %v4226 = vpop.permute.xlu0 %4225
    %4231 = vrot.lane.b32.xlu0 %v4069, 84
    %v4232 = vpop.permute.xlu0 %4231
    %4233 = vrot.lane.b32.xlu0 %v4151, 84
    %v4234 = vpop.permute.xlu0 %4233
    %4239 = vrot.lane.b32.xlu0 %v4073, 98
    %v4240 = vpop.permute.xlu0 %4239
    %4241 = vrot.lane.b32.xlu0 %v4155, 98
    %v4242 = vpop.permute.xlu0 %4241
    %4247 = vrot.lane.b32.xlu0 %v4088, 112
    %v4248 = vpop.permute.xlu0 %4247
    %4249 = vrot.lane.b32.xlu0 %v4170, 112
    %v4250 = vpop.permute.xlu0 %4249
    %4255 = vrot.lane.b32.xlu0 %v4104, 126
    %v4256 = vpop.permute.xlu0 %4255
    %4257 = vrot.lane.b32.xlu0 %v4186, 126
    %v4258 = vpop.permute.xlu0 %4257
    %4263 = vrot.lane.b32.xlu0 %v4095, 12
    %v4264 = vpop.permute.xlu0 %4263
    %4265 = vrot.lane.b32.xlu0 %v4177, 12
    %v4266 = vpop.permute.xlu0 %4265
    %4271 = vrot.lane.b32.xlu0 %v4105, 26
    %v4272 = vpop.permute.xlu0 %4271
    %4273 = vrot.lane.b32.xlu0 %v4187, 26
    %v4274 = vpop.permute.xlu0 %4273
    %4279 = vrot.lane.b32.xlu0 %v4103, 40
    %v4280 = vpop.permute.xlu0 %4279
    %4281 = vrot.lane.b32.xlu0 %v4185, 40
    %v4282 = vpop.permute.xlu0 %4281
    %4287 = vrot.lane.b32.xlu0 %v4106, 54
    %v4288 = vpop.permute.xlu0 %4287
    %4289 = vrot.lane.b32.xlu0 %v4188, 54
    %v4290 = vpop.permute.xlu0 %4289
    %v4293 = vsel %vm310, %v4047, %v4192
    %v4294 = vsel %vm310, %v4129, %v4194
    %v4295 = vsel %vm313, %v4293, %v4200
    %v4296 = vsel %vm313, %v4294, %v4202
    %v4297 = vsel %vm316, %v4295, %v4208
    %v4298 = vsel %vm316, %v4296, %v4210
    %v4299 = vsel %vm319, %v4297, %v4216
    %v4300 = vsel %vm319, %v4298, %v4218
    %v4301 = vsel %vm322, %v4299, %v4224
    %v4302 = vsel %vm322, %v4300, %v4226
    %v4303 = vsel %vm325, %v4301, %v4232
    %v4304 = vsel %vm325, %v4302, %v4234
    %v4305 = vsel %vm328, %v4303, %v4240
    %v4306 = vsel %vm328, %v4304, %v4242
    %v4307 = vsel %vm331, %v4305, %v4248
    %v4308 = vsel %vm331, %v4306, %v4250
    %v4309 = vsel %vm334, %v4307, %v4256
    %v4310 = vsel %vm334, %v4308, %v4258
    %v4311 = vsel %vm337, %v4256, %v4264
    %v4312 = vsel %vm337, %v4258, %v4266
    %v4313 = vsel %vm340, %v4311, %v4272
    %v4314 = vsel %vm340, %v4312, %v4274
    %v4315 = vsel %vm343, %v4313, %v4280
    %v4316 = vsel %vm343, %v4314, %v4282
    %v4317 = vsel %vm346, %v4315, %v4288
    %v4318 = vsel %vm346, %v4316, %v4290
    %4319 = vrot.lane.b32.xlu0 %v3711, 126
    %v4320 = vpop.permute.xlu0 %4319
    %4321 = vrot.lane.b32.xlu0 %v3710, 126
    %v4322 = vpop.permute.xlu0 %4321
    %4323 = vrot.lane.b32.xlu0 %v3714, 126
    %v4324 = vpop.permute.xlu0 %4323
    %4325 = vrot.lane.b32.xlu0 %v3713, 126
    %v4326 = vpop.permute.xlu0 %4325
    %v4331 = vcombine.high %v4320, 0.0
    %v4333 = vunpack.c.l.s4 1983009808
    %v4334 = vunpack.c.0.s8 %v4333
    %v4335 = vlaneseq
    %v4336 = vshrl.u32 %v4335, 7
    %v4337 = vsub.s32 %v4334, %v4336
    %v4338 = vrot.slane %v4320, %v4337
    %v4340 = vunpack.c.l.s4 1983009808
    %v4341 = vunpack.c.0.s8 %v4340
    %v4342 = vlaneseq
    %v4343 = vshrl.u32 %v4342, 7
    %v4344 = vsub.s32 %v4341, %v4343
    %v4345 = vrot.slane %v4331, %v4344
    %v4346 = vcombine.high %v4338, 0.0
    %v4348 = vunpack.c.l.s4 1934713408
    %v4349 = vunpack.c.0.s8 %v4348
    %v4350 = vlaneseq
    %v4351 = vshrl.u32 %v4350, 7
    %v4352 = vsub.s32 %v4349, %v4351
    %v4353 = vrot.slane %v4338, %v4352
    %v4355 = vunpack.c.l.s4 1934713408
    %v4356 = vunpack.c.0.s8 %v4355
    %v4357 = vlaneseq
    %v4358 = vshrl.u32 %v4357, 7
    %v4359 = vsub.s32 %v4356, %v4358
    %v4360 = vrot.slane %v4346, %v4359
    %v4361 = vcombine.high %v4345, 0.0
    %v4363 = vunpack.c.l.s4 1934713408
    %v4364 = vunpack.c.0.s8 %v4363
    %v4365 = vlaneseq
    %v4366 = vshrl.u32 %v4365, 7
    %v4367 = vsub.s32 %v4364, %v4366
    %v4368 = vrot.slane %v4345, %v4367
    %v4370 = vunpack.c.l.s4 1934713408
    %v4371 = vunpack.c.0.s8 %v4370
    %v4372 = vlaneseq
    %v4373 = vshrl.u32 %v4372, 7
    %v4374 = vsub.s32 %v4371, %v4373
    %v4375 = vrot.slane %v4361, %v4374
    %v4376 = vcombine.high %v4353, 0.0
    %v4377 = vcombine.high %v4360, 0.0
    %v4378 = vcombine.high %v4368, 0.0
    %v4379 = vcombine.high %v4375, 0.0
    %v4381 = vunpack.c.l.s4 1983009808
    %v4382 = vunpack.c.0.s8 %v4381
    %v4383 = vlaneseq
    %v4384 = vshrl.u32 %v4383, 7
    %v4385 = vsub.s32 %v4382, %v4384
    %v4386 = vrot.slane %v4322, %v4385
    %v4387 = vcombine.high %v4386, 0.0
    %v4389 = vunpack.c.l.s4 1934713408
    %v4390 = vunpack.c.0.s8 %v4389
    %v4391 = vlaneseq
    %v4392 = vshrl.u32 %v4391, 7
    %v4393 = vsub.s32 %v4390, %v4392
    %v4394 = vrot.slane %v4386, %v4393
    %v4396 = vunpack.c.l.s4 1934713408
    %v4397 = vunpack.c.0.s8 %v4396
    %v4398 = vlaneseq
    %v4399 = vshrl.u32 %v4398, 7
    %v4400 = vsub.s32 %v4397, %v4399
    %v4401 = vrot.slane %v4387, %v4400
    %v4402 = vcombine.high %v4322, 0.0
    %v4404 = vunpack.c.l.s4 1934713408
    %v4405 = vunpack.c.0.s8 %v4404
    %v4406 = vlaneseq
    %v4407 = vshrl.u32 %v4406, 7
    %v4408 = vsub.s32 %v4405, %v4407
    %v4409 = vrot.slane %v4402, %v4408
    %v4410 = vcombine.high %v4394, 0.0
    %v4411 = vcombine.high %v4401, 0.0
    %v4412 = vcombine.high %v4409, 0.0
    %v4413 = vcombine.high %v4324, 0.0
    %v4415 = vunpack.c.l.s4 1983009808
    %v4416 = vunpack.c.0.s8 %v4415
    %v4417 = vlaneseq
    %v4418 = vshrl.u32 %v4417, 7
    %v4419 = vsub.s32 %v4416, %v4418
    %v4420 = vrot.slane %v4324, %v4419
    %v4422 = vunpack.c.l.s4 1983009808
    %v4423 = vunpack.c.0.s8 %v4422
    %v4424 = vlaneseq
    %v4425 = vshrl.u32 %v4424, 7
    %v4426 = vsub.s32 %v4423, %v4425
    %v4427 = vrot.slane %v4413, %v4426
    %v4428 = vcombine.high %v4420, 0.0
    %v4430 = vunpack.c.l.s4 1934713408
    %v4431 = vunpack.c.0.s8 %v4430
    %v4432 = vlaneseq
    %v4433 = vshrl.u32 %v4432, 7
    %v4434 = vsub.s32 %v4431, %v4433
    %v4435 = vrot.slane %v4420, %v4434
    %v4437 = vunpack.c.l.s4 1934713408
    %v4438 = vunpack.c.0.s8 %v4437
    %v4439 = vlaneseq
    %v4440 = vshrl.u32 %v4439, 7
    %v4441 = vsub.s32 %v4438, %v4440
    %v4442 = vrot.slane %v4428, %v4441
    %v4443 = vcombine.high %v4427, 0.0
    %v4445 = vunpack.c.l.s4 1934713408
    %v4446 = vunpack.c.0.s8 %v4445
    %v4447 = vlaneseq
    %v4448 = vshrl.u32 %v4447, 7
    %v4449 = vsub.s32 %v4446, %v4448
    %v4450 = vrot.slane %v4427, %v4449
    %v4452 = vunpack.c.l.s4 1934713408
    %v4453 = vunpack.c.0.s8 %v4452
    %v4454 = vlaneseq
    %v4455 = vshrl.u32 %v4454, 7
    %v4456 = vsub.s32 %v4453, %v4455
    %v4457 = vrot.slane %v4443, %v4456
    %v4458 = vcombine.high %v4435, 0.0
    %v4459 = vcombine.high %v4442, 0.0
    %v4460 = vcombine.high %v4450, 0.0
    %v4461 = vcombine.high %v4457, 0.0
    %v4463 = vunpack.c.l.s4 1983009808
    %v4464 = vunpack.c.0.s8 %v4463
    %v4465 = vlaneseq
    %v4466 = vshrl.u32 %v4465, 7
    %v4467 = vsub.s32 %v4464, %v4466
    %v4468 = vrot.slane %v4326, %v4467
    %v4469 = vcombine.high %v4468, 0.0
    %v4471 = vunpack.c.l.s4 1934713408
    %v4472 = vunpack.c.0.s8 %v4471
    %v4473 = vlaneseq
    %v4474 = vshrl.u32 %v4473, 7
    %v4475 = vsub.s32 %v4472, %v4474
    %v4476 = vrot.slane %v4468, %v4475
    %v4478 = vunpack.c.l.s4 1934713408
    %v4479 = vunpack.c.0.s8 %v4478
    %v4480 = vlaneseq
    %v4481 = vshrl.u32 %v4480, 7
    %v4482 = vsub.s32 %v4479, %v4481
    %v4483 = vrot.slane %v4469, %v4482
    %v4484 = vcombine.high %v4326, 0.0
    %v4486 = vunpack.c.l.s4 1934713408
    %v4487 = vunpack.c.0.s8 %v4486
    %v4488 = vlaneseq
    %v4489 = vshrl.u32 %v4488, 7
    %v4490 = vsub.s32 %v4487, %v4489
    %v4491 = vrot.slane %v4484, %v4490
    %v4492 = vcombine.high %v4476, 0.0
    %v4493 = vcombine.high %v4483, 0.0
    %v4494 = vcombine.high %v4491, 0.0
    %4497 = vrot.lane.b32.xlu0 %v4376, 14
    %v4498 = vpop.permute.xlu0 %4497
    %4499 = vrot.lane.b32.xlu0 %v4458, 14
    %v4500 = vpop.permute.xlu0 %4499
    %4505 = vrot.lane.b32.xlu0 %v4360, 28
    %v4506 = vpop.permute.xlu0 %4505
    %4507 = vrot.lane.b32.xlu0 %v4442, 28
    %v4508 = vpop.permute.xlu0 %4507
    %4513 = vrot.lane.b32.xlu0 %v4377, 42
    %v4514 = vpop.permute.xlu0 %4513
    %4515 = vrot.lane.b32.xlu0 %v4459, 42
    %v4516 = vpop.permute.xlu0 %4515
    %4521 = vrot.lane.b32.xlu0 %v4368, 56
    %v4522 = vpop.permute.xlu0 %4521
    %4523 = vrot.lane.b32.xlu0 %v4450, 56
    %v4524 = vpop.permute.xlu0 %4523
    %4529 = vrot.lane.b32.xlu0 %v4378, 70
    %v4530 = vpop.permute.xlu0 %4529
    %4531 = vrot.lane.b32.xlu0 %v4460, 70
    %v4532 = vpop.permute.xlu0 %4531
    %4537 = vrot.lane.b32.xlu0 %v4375, 84
    %v4538 = vpop.permute.xlu0 %4537
    %4539 = vrot.lane.b32.xlu0 %v4457, 84
    %v4540 = vpop.permute.xlu0 %4539
    %4545 = vrot.lane.b32.xlu0 %v4379, 98
    %v4546 = vpop.permute.xlu0 %4545
    %4547 = vrot.lane.b32.xlu0 %v4461, 98
    %v4548 = vpop.permute.xlu0 %4547
    %4553 = vrot.lane.b32.xlu0 %v4394, 112
    %v4554 = vpop.permute.xlu0 %4553
    %4555 = vrot.lane.b32.xlu0 %v4476, 112
    %v4556 = vpop.permute.xlu0 %4555
    %4561 = vrot.lane.b32.xlu0 %v4410, 126
    %v4562 = vpop.permute.xlu0 %4561
    %4563 = vrot.lane.b32.xlu0 %v4492, 126
    %v4564 = vpop.permute.xlu0 %4563
    %4569 = vrot.lane.b32.xlu0 %v4401, 12
    %v4570 = vpop.permute.xlu0 %4569
    %4571 = vrot.lane.b32.xlu0 %v4483, 12
    %v4572 = vpop.permute.xlu0 %4571
    %4577 = vrot.lane.b32.xlu0 %v4411, 26
    %v4578 = vpop.permute.xlu0 %4577
    %4579 = vrot.lane.b32.xlu0 %v4493, 26
    %v4580 = vpop.permute.xlu0 %4579
    %4585 = vrot.lane.b32.xlu0 %v4409, 40
    %v4586 = vpop.permute.xlu0 %4585
    %4587 = vrot.lane.b32.xlu0 %v4491, 40
    %v4588 = vpop.permute.xlu0 %4587
    %4593 = vrot.lane.b32.xlu0 %v4412, 54
    %v4594 = vpop.permute.xlu0 %4593
    %4595 = vrot.lane.b32.xlu0 %v4494, 54
    %v4596 = vpop.permute.xlu0 %4595
    %v4599 = vsel %vm310, %v4353, %v4498
    %v4600 = vsel %vm310, %v4435, %v4500
    %v4601 = vsel %vm313, %v4599, %v4506
    %v4602 = vsel %vm313, %v4600, %v4508
    %v4603 = vsel %vm316, %v4601, %v4514
    %v4604 = vsel %vm316, %v4602, %v4516
    %v4605 = vsel %vm319, %v4603, %v4522
    %v4606 = vsel %vm319, %v4604, %v4524
    %v4607 = vsel %vm322, %v4605, %v4530
    %v4608 = vsel %vm322, %v4606, %v4532
    %v4609 = vsel %vm325, %v4607, %v4538
    %v4610 = vsel %vm325, %v4608, %v4540
    %v4611 = vsel %vm328, %v4609, %v4546
    %v4612 = vsel %vm328, %v4610, %v4548
    %v4613 = vsel %vm331, %v4611, %v4554
    %v4614 = vsel %vm331, %v4612, %v4556
    %v4615 = vsel %vm334, %v4613, %v4562
    %v4616 = vsel %vm334, %v4614, %v4564
    %v4617 = vsel %vm337, %v4562, %v4570
    %v4618 = vsel %vm337, %v4564, %v4572
    %v4619 = vsel %vm340, %v4617, %v4578
    %v4620 = vsel %vm340, %v4618, %v4580
    %v4621 = vsel %vm343, %v4619, %v4586
    %v4622 = vsel %vm343, %v4620, %v4588
    %v4623 = vsel %vm346, %v4621, %v4594
    %v4624 = vsel %vm346, %v4622, %v4596
    %v4625 = vrot.slane %v30, 2
    %v4626 = vrot.slane %v31, 2
    %v4627 = vsel %vm1882, %v4625, %v4626
    %v4628 = vrot.slane %v36, 2
    %v4629 = vrot.slane %v37, 2
    %v4630 = vsel %vm1882, %v4628, %v4629
    %v4635 = vcombine.high %v4627, 0.0
    %v4637 = vunpack.c.l.s4 1983009808
    %v4638 = vunpack.c.0.s8 %v4637
    %v4639 = vlaneseq
    %v4640 = vshrl.u32 %v4639, 7
    %v4641 = vsub.s32 %v4638, %v4640
    %v4642 = vrot.slane %v4627, %v4641
    %v4644 = vunpack.c.l.s4 1983009808
    %v4645 = vunpack.c.0.s8 %v4644
    %v4646 = vlaneseq
    %v4647 = vshrl.u32 %v4646, 7
    %v4648 = vsub.s32 %v4645, %v4647
    %v4649 = vrot.slane %v4635, %v4648
    %v4650 = vcombine.high %v4642, 0.0
    %v4652 = vunpack.c.l.s4 1934713408
    %v4653 = vunpack.c.0.s8 %v4652
    %v4654 = vlaneseq
    %v4655 = vshrl.u32 %v4654, 7
    %v4656 = vsub.s32 %v4653, %v4655
    %v4657 = vrot.slane %v4642, %v4656
    %v4659 = vunpack.c.l.s4 1934713408
    %v4660 = vunpack.c.0.s8 %v4659
    %v4661 = vlaneseq
    %v4662 = vshrl.u32 %v4661, 7
    %v4663 = vsub.s32 %v4660, %v4662
    %v4664 = vrot.slane %v4650, %v4663
    %v4665 = vcombine.high %v4649, 0.0
    %v4667 = vunpack.c.l.s4 1934713408
    %v4668 = vunpack.c.0.s8 %v4667
    %v4669 = vlaneseq
    %v4670 = vshrl.u32 %v4669, 7
    %v4671 = vsub.s32 %v4668, %v4670
    %v4672 = vrot.slane %v4649, %v4671
    %v4674 = vunpack.c.l.s4 1934713408
    %v4675 = vunpack.c.0.s8 %v4674
    %v4676 = vlaneseq
    %v4677 = vshrl.u32 %v4676, 7
    %v4678 = vsub.s32 %v4675, %v4677
    %v4679 = vrot.slane %v4665, %v4678
    %v4680 = vcombine.high %v4657, 0.0
    %v4681 = vcombine.high %v4664, 0.0
    %v4682 = vcombine.high %v4672, 0.0
    %v4683 = vcombine.high %v4679, 0.0
    %v4685 = vunpack.c.l.s4 1983009808
    %v4686 = vunpack.c.0.s8 %v4685
    %v4687 = vlaneseq
    %v4688 = vshrl.u32 %v4687, 7
    %v4689 = vsub.s32 %v4686, %v4688
    %v4690 = vrot.slane %v4626, %v4689
    %v4691 = vcombine.high %v4690, 0.0
    %v4693 = vunpack.c.l.s4 1934713408
    %v4694 = vunpack.c.0.s8 %v4693
    %v4695 = vlaneseq
    %v4696 = vshrl.u32 %v4695, 7
    %v4697 = vsub.s32 %v4694, %v4696
    %v4698 = vrot.slane %v4690, %v4697
    %v4700 = vunpack.c.l.s4 1934713408
    %v4701 = vunpack.c.0.s8 %v4700
    %v4702 = vlaneseq
    %v4703 = vshrl.u32 %v4702, 7
    %v4704 = vsub.s32 %v4701, %v4703
    %v4705 = vrot.slane %v4691, %v4704
    %v4706 = vcombine.high %v4626, 0.0
    %v4708 = vunpack.c.l.s4 1934713408
    %v4709 = vunpack.c.0.s8 %v4708
    %v4710 = vlaneseq
    %v4711 = vshrl.u32 %v4710, 7
    %v4712 = vsub.s32 %v4709, %v4711
    %v4713 = vrot.slane %v4706, %v4712
    %v4714 = vcombine.high %v4698, 0.0
    %v4715 = vcombine.high %v4705, 0.0
    %v4716 = vcombine.high %v4713, 0.0
    %v4717 = vcombine.high %v4630, 0.0
    %v4719 = vunpack.c.l.s4 1983009808
    %v4720 = vunpack.c.0.s8 %v4719
    %v4721 = vlaneseq
    %v4722 = vshrl.u32 %v4721, 7
    %v4723 = vsub.s32 %v4720, %v4722
    %v4724 = vrot.slane %v4630, %v4723
    %v4726 = vunpack.c.l.s4 1983009808
    %v4727 = vunpack.c.0.s8 %v4726
    %v4728 = vlaneseq
    %v4729 = vshrl.u32 %v4728, 7
    %v4730 = vsub.s32 %v4727, %v4729
    %v4731 = vrot.slane %v4717, %v4730
    %v4732 = vcombine.high %v4724, 0.0
    %v4734 = vunpack.c.l.s4 1934713408
    %v4735 = vunpack.c.0.s8 %v4734
    %v4736 = vlaneseq
    %v4737 = vshrl.u32 %v4736, 7
    %v4738 = vsub.s32 %v4735, %v4737
    %v4739 = vrot.slane %v4724, %v4738
    %v4741 = vunpack.c.l.s4 1934713408
    %v4742 = vunpack.c.0.s8 %v4741
    %v4743 = vlaneseq
    %v4744 = vshrl.u32 %v4743, 7
    %v4745 = vsub.s32 %v4742, %v4744
    %v4746 = vrot.slane %v4732, %v4745
    %v4747 = vcombine.high %v4731, 0.0
    %v4749 = vunpack.c.l.s4 1934713408
    %v4750 = vunpack.c.0.s8 %v4749
    %v4751 = vlaneseq
    %v4752 = vshrl.u32 %v4751, 7
    %v4753 = vsub.s32 %v4750, %v4752
    %v4754 = vrot.slane %v4731, %v4753
    %v4756 = vunpack.c.l.s4 1934713408
    %v4757 = vunpack.c.0.s8 %v4756
    %v4758 = vlaneseq
    %v4759 = vshrl.u32 %v4758, 7
    %v4760 = vsub.s32 %v4757, %v4759
    %v4761 = vrot.slane %v4747, %v4760
    %v4762 = vcombine.high %v4739, 0.0
    %v4763 = vcombine.high %v4746, 0.0
    %v4764 = vcombine.high %v4754, 0.0
    %v4765 = vcombine.high %v4761, 0.0
    %v4767 = vunpack.c.l.s4 1983009808
    %v4768 = vunpack.c.0.s8 %v4767
    %v4769 = vlaneseq
    %v4770 = vshrl.u32 %v4769, 7
    %v4771 = vsub.s32 %v4768, %v4770
    %v4772 = vrot.slane %v4629, %v4771
    %v4773 = vcombine.high %v4772, 0.0
    %v4775 = vunpack.c.l.s4 1934713408
    %v4776 = vunpack.c.0.s8 %v4775
    %v4777 = vlaneseq
    %v4778 = vshrl.u32 %v4777, 7
    %v4779 = vsub.s32 %v4776, %v4778
    %v4780 = vrot.slane %v4772, %v4779
    %v4782 = vunpack.c.l.s4 1934713408
    %v4783 = vunpack.c.0.s8 %v4782
    %v4784 = vlaneseq
    %v4785 = vshrl.u32 %v4784, 7
    %v4786 = vsub.s32 %v4783, %v4785
    %v4787 = vrot.slane %v4773, %v4786
    %v4788 = vcombine.high %v4629, 0.0
    %v4790 = vunpack.c.l.s4 1934713408
    %v4791 = vunpack.c.0.s8 %v4790
    %v4792 = vlaneseq
    %v4793 = vshrl.u32 %v4792, 7
    %v4794 = vsub.s32 %v4791, %v4793
    %v4795 = vrot.slane %v4788, %v4794
    %v4796 = vcombine.high %v4780, 0.0
    %v4797 = vcombine.high %v4787, 0.0
    %v4798 = vcombine.high %v4795, 0.0
    %4801 = vrot.lane.b32.xlu0 %v4680, 14
    %v4802 = vpop.permute.xlu0 %4801
    %4803 = vrot.lane.b32.xlu0 %v4762, 14
    %v4804 = vpop.permute.xlu0 %4803
    %4809 = vrot.lane.b32.xlu0 %v4664, 28
    %v4810 = vpop.permute.xlu0 %4809
    %4811 = vrot.lane.b32.xlu0 %v4746, 28
    %v4812 = vpop.permute.xlu0 %4811
    %4817 = vrot.lane.b32.xlu0 %v4681, 42
    %v4818 = vpop.permute.xlu0 %4817
    %4819 = vrot.lane.b32.xlu0 %v4763, 42
    %v4820 = vpop.permute.xlu0 %4819
    %4825 = vrot.lane.b32.xlu0 %v4672, 56
    %v4826 = vpop.permute.xlu0 %4825
    %4827 = vrot.lane.b32.xlu0 %v4754, 56
    %v4828 = vpop.permute.xlu0 %4827
    %4833 = vrot.lane.b32.xlu0 %v4682, 70
    %v4834 = vpop.permute.xlu0 %4833
    %4835 = vrot.lane.b32.xlu0 %v4764, 70
    %v4836 = vpop.permute.xlu0 %4835
    %4841 = vrot.lane.b32.xlu0 %v4679, 84
    %v4842 = vpop.permute.xlu0 %4841
    %4843 = vrot.lane.b32.xlu0 %v4761, 84
    %v4844 = vpop.permute.xlu0 %4843
    %4849 = vrot.lane.b32.xlu0 %v4683, 98
    %v4850 = vpop.permute.xlu0 %4849
    %4851 = vrot.lane.b32.xlu0 %v4765, 98
    %v4852 = vpop.permute.xlu0 %4851
    %4857 = vrot.lane.b32.xlu0 %v4698, 112
    %v4858 = vpop.permute.xlu0 %4857
    %4859 = vrot.lane.b32.xlu0 %v4780, 112
    %v4860 = vpop.permute.xlu0 %4859
    %4865 = vrot.lane.b32.xlu0 %v4714, 126
    %v4866 = vpop.permute.xlu0 %4865
    %4867 = vrot.lane.b32.xlu0 %v4796, 126
    %v4868 = vpop.permute.xlu0 %4867
    %4873 = vrot.lane.b32.xlu0 %v4705, 12
    %v4874 = vpop.permute.xlu0 %4873
    %4875 = vrot.lane.b32.xlu0 %v4787, 12
    %v4876 = vpop.permute.xlu0 %4875
    %4881 = vrot.lane.b32.xlu0 %v4715, 26
    %v4882 = vpop.permute.xlu0 %4881
    %4883 = vrot.lane.b32.xlu0 %v4797, 26
    %v4884 = vpop.permute.xlu0 %4883
    %4889 = vrot.lane.b32.xlu0 %v4713, 40
    %v4890 = vpop.permute.xlu0 %4889
    %4891 = vrot.lane.b32.xlu0 %v4795, 40
    %v4892 = vpop.permute.xlu0 %4891
    %4897 = vrot.lane.b32.xlu0 %v4716, 54
    %v4898 = vpop.permute.xlu0 %4897
    %4899 = vrot.lane.b32.xlu0 %v4798, 54
    %v4900 = vpop.permute.xlu0 %4899
    %v4903 = vsel %vm310, %v4657, %v4802
    %v4904 = vsel %vm310, %v4739, %v4804
    %v4905 = vsel %vm313, %v4903, %v4810
    %v4906 = vsel %vm313, %v4904, %v4812
    %v4907 = vsel %vm316, %v4905, %v4818
    %v4908 = vsel %vm316, %v4906, %v4820
    %v4909 = vsel %vm319, %v4907, %v4826
    %v4910 = vsel %vm319, %v4908, %v4828
    %v4911 = vsel %vm322, %v4909, %v4834
    %v4912 = vsel %vm322, %v4910, %v4836
    %v4913 = vsel %vm325, %v4911, %v4842
    %v4914 = vsel %vm325, %v4912, %v4844
    %v4915 = vsel %vm328, %v4913, %v4850
    %v4916 = vsel %vm328, %v4914, %v4852
    %v4917 = vsel %vm331, %v4915, %v4858
    %v4918 = vsel %vm331, %v4916, %v4860
    %v4919 = vsel %vm334, %v4917, %v4866
    %v4920 = vsel %vm334, %v4918, %v4868
    %v4921 = vsel %vm337, %v4866, %v4874
    %v4922 = vsel %vm337, %v4868, %v4876
    %v4923 = vsel %vm340, %v4921, %v4882
    %v4924 = vsel %vm340, %v4922, %v4884
    %v4925 = vsel %vm343, %v4923, %v4890
    %v4926 = vsel %vm343, %v4924, %v4892
    %v4927 = vsel %vm346, %v4925, %v4898
    %v4928 = vsel %vm346, %v4926, %v4900
    %4929 = vrot.lane.b32.xlu0 %v4627, 127
    %v4930 = vpop.permute.xlu0 %4929
    %4931 = vrot.lane.b32.xlu0 %v4626, 127
    %v4932 = vpop.permute.xlu0 %4931
    %4933 = vrot.lane.b32.xlu0 %v4630, 127
    %v4934 = vpop.permute.xlu0 %4933
    %4935 = vrot.lane.b32.xlu0 %v4629, 127
    %v4936 = vpop.permute.xlu0 %4935
    %v4941 = vcombine.high %v4930, 0.0
    %v4943 = vunpack.c.l.s4 1983009808
    %v4944 = vunpack.c.0.s8 %v4943
    %v4945 = vlaneseq
    %v4946 = vshrl.u32 %v4945, 7
    %v4947 = vsub.s32 %v4944, %v4946
    %v4948 = vrot.slane %v4930, %v4947
    %v4950 = vunpack.c.l.s4 1983009808
    %v4951 = vunpack.c.0.s8 %v4950
    %v4952 = vlaneseq
    %v4953 = vshrl.u32 %v4952, 7
    %v4954 = vsub.s32 %v4951, %v4953
    %v4955 = vrot.slane %v4941, %v4954
    %v4956 = vcombine.high %v4948, 0.0
    %v4958 = vunpack.c.l.s4 1934713408
    %v4959 = vunpack.c.0.s8 %v4958
    %v4960 = vlaneseq
    %v4961 = vshrl.u32 %v4960, 7
    %v4962 = vsub.s32 %v4959, %v4961
    %v4963 = vrot.slane %v4948, %v4962
    %v4965 = vunpack.c.l.s4 1934713408
    %v4966 = vunpack.c.0.s8 %v4965
    %v4967 = vlaneseq
    %v4968 = vshrl.u32 %v4967, 7
    %v4969 = vsub.s32 %v4966, %v4968
    %v4970 = vrot.slane %v4956, %v4969
    %v4971 = vcombine.high %v4955, 0.0
    %v4973 = vunpack.c.l.s4 1934713408
    %v4974 = vunpack.c.0.s8 %v4973
    %v4975 = vlaneseq
    %v4976 = vshrl.u32 %v4975, 7
    %v4977 = vsub.s32 %v4974, %v4976
    %v4978 = vrot.slane %v4955, %v4977
    %v4980 = vunpack.c.l.s4 1934713408
    %v4981 = vunpack.c.0.s8 %v4980
    %v4982 = vlaneseq
    %v4983 = vshrl.u32 %v4982, 7
    %v4984 = vsub.s32 %v4981, %v4983
    %v4985 = vrot.slane %v4971, %v4984
    %v4986 = vcombine.high %v4963, 0.0
    %v4987 = vcombine.high %v4970, 0.0
    %v4988 = vcombine.high %v4978, 0.0
    %v4989 = vcombine.high %v4985, 0.0
    %v4991 = vunpack.c.l.s4 1983009808
    %v4992 = vunpack.c.0.s8 %v4991
    %v4993 = vlaneseq
    %v4994 = vshrl.u32 %v4993, 7
    %v4995 = vsub.s32 %v4992, %v4994
    %v4996 = vrot.slane %v4932, %v4995
    %v4997 = vcombine.high %v4996, 0.0
    %v4999 = vunpack.c.l.s4 1934713408
    %v5000 = vunpack.c.0.s8 %v4999
    %v5001 = vlaneseq
    %v5002 = vshrl.u32 %v5001, 7
    %v5003 = vsub.s32 %v5000, %v5002
    %v5004 = vrot.slane %v4996, %v5003
    %v5006 = vunpack.c.l.s4 1934713408
    %v5007 = vunpack.c.0.s8 %v5006
    %v5008 = vlaneseq
    %v5009 = vshrl.u32 %v5008, 7
    %v5010 = vsub.s32 %v5007, %v5009
    %v5011 = vrot.slane %v4997, %v5010
    %v5012 = vcombine.high %v4932, 0.0
    %v5014 = vunpack.c.l.s4 1934713408
    %v5015 = vunpack.c.0.s8 %v5014
    %v5016 = vlaneseq
    %v5017 = vshrl.u32 %v5016, 7
    %v5018 = vsub.s32 %v5015, %v5017
    %v5019 = vrot.slane %v5012, %v5018
    %v5020 = vcombine.high %v5004, 0.0
    %v5021 = vcombine.high %v5011, 0.0
    %v5022 = vcombine.high %v5019, 0.0
    %v5023 = vcombine.high %v4934, 0.0
    %v5025 = vunpack.c.l.s4 1983009808
    %v5026 = vunpack.c.0.s8 %v5025
    %v5027 = vlaneseq
    %v5028 = vshrl.u32 %v5027, 7
    %v5029 = vsub.s32 %v5026, %v5028
    %v5030 = vrot.slane %v4934, %v5029
    %v5032 = vunpack.c.l.s4 1983009808
    %v5033 = vunpack.c.0.s8 %v5032
    %v5034 = vlaneseq
    %v5035 = vshrl.u32 %v5034, 7
    %v5036 = vsub.s32 %v5033, %v5035
    %v5037 = vrot.slane %v5023, %v5036
    %v5038 = vcombine.high %v5030, 0.0
    %v5040 = vunpack.c.l.s4 1934713408
    %v5041 = vunpack.c.0.s8 %v5040
    %v5042 = vlaneseq
    %v5043 = vshrl.u32 %v5042, 7
    %v5044 = vsub.s32 %v5041, %v5043
    %v5045 = vrot.slane %v5030, %v5044
    %v5047 = vunpack.c.l.s4 1934713408
    %v5048 = vunpack.c.0.s8 %v5047
    %v5049 = vlaneseq
    %v5050 = vshrl.u32 %v5049, 7
    %v5051 = vsub.s32 %v5048, %v5050
    %v5052 = vrot.slane %v5038, %v5051
    %v5053 = vcombine.high %v5037, 0.0
    %v5055 = vunpack.c.l.s4 1934713408
    %v5056 = vunpack.c.0.s8 %v5055
    %v5057 = vlaneseq
    %v5058 = vshrl.u32 %v5057, 7
    %v5059 = vsub.s32 %v5056, %v5058
    %v5060 = vrot.slane %v5037, %v5059
    %v5062 = vunpack.c.l.s4 1934713408
    %v5063 = vunpack.c.0.s8 %v5062
    %v5064 = vlaneseq
    %v5065 = vshrl.u32 %v5064, 7
    %v5066 = vsub.s32 %v5063, %v5065
    %v5067 = vrot.slane %v5053, %v5066
    %v5068 = vcombine.high %v5045, 0.0
    %v5069 = vcombine.high %v5052, 0.0
    %v5070 = vcombine.high %v5060, 0.0
    %v5071 = vcombine.high %v5067, 0.0
    %v5073 = vunpack.c.l.s4 1983009808
    %v5074 = vunpack.c.0.s8 %v5073
    %v5075 = vlaneseq
    %v5076 = vshrl.u32 %v5075, 7
    %v5077 = vsub.s32 %v5074, %v5076
    %v5078 = vrot.slane %v4936, %v5077
    %v5079 = vcombine.high %v5078, 0.0
    %v5081 = vunpack.c.l.s4 1934713408
    %v5082 = vunpack.c.0.s8 %v5081
    %v5083 = vlaneseq
    %v5084 = vshrl.u32 %v5083, 7
    %v5085 = vsub.s32 %v5082, %v5084
    %v5086 = vrot.slane %v5078, %v5085
    %v5088 = vunpack.c.l.s4 1934713408
    %v5089 = vunpack.c.0.s8 %v5088
    %v5090 = vlaneseq
    %v5091 = vshrl.u32 %v5090, 7
    %v5092 = vsub.s32 %v5089, %v5091
    %v5093 = vrot.slane %v5079, %v5092
    %v5094 = vcombine.high %v4936, 0.0
    %v5096 = vunpack.c.l.s4 1934713408
    %v5097 = vunpack.c.0.s8 %v5096
    %v5098 = vlaneseq
    %v5099 = vshrl.u32 %v5098, 7
    %v5100 = vsub.s32 %v5097, %v5099
    %v5101 = vrot.slane %v5094, %v5100
    %v5102 = vcombine.high %v5086, 0.0
    %v5103 = vcombine.high %v5093, 0.0
    %v5104 = vcombine.high %v5101, 0.0
    %5107 = vrot.lane.b32.xlu0 %v4986, 14
    %v5108 = vpop.permute.xlu0 %5107
    %5109 = vrot.lane.b32.xlu0 %v5068, 14
    %v5110 = vpop.permute.xlu0 %5109
    %5115 = vrot.lane.b32.xlu0 %v4970, 28
    %v5116 = vpop.permute.xlu0 %5115
    %5117 = vrot.lane.b32.xlu0 %v5052, 28
    %v5118 = vpop.permute.xlu0 %5117
    %5123 = vrot.lane.b32.xlu0 %v4987, 42
    %v5124 = vpop.permute.xlu0 %5123
    %5125 = vrot.lane.b32.xlu0 %v5069, 42
    %v5126 = vpop.permute.xlu0 %5125
    %5131 = vrot.lane.b32.xlu0 %v4978, 56
    %v5132 = vpop.permute.xlu0 %5131
    %5133 = vrot.lane.b32.xlu0 %v5060, 56
    %v5134 = vpop.permute.xlu0 %5133
    %5139 = vrot.lane.b32.xlu0 %v4988, 70
    %v5140 = vpop.permute.xlu0 %5139
    %5141 = vrot.lane.b32.xlu0 %v5070, 70
    %v5142 = vpop.permute.xlu0 %5141
    %5147 = vrot.lane.b32.xlu0 %v4985, 84
    %v5148 = vpop.permute.xlu0 %5147
    %5149 = vrot.lane.b32.xlu0 %v5067, 84
    %v5150 = vpop.permute.xlu0 %5149
    %5155 = vrot.lane.b32.xlu0 %v4989, 98
    %v5156 = vpop.permute.xlu0 %5155
    %5157 = vrot.lane.b32.xlu0 %v5071, 98
    %v5158 = vpop.permute.xlu0 %5157
    %5163 = vrot.lane.b32.xlu0 %v5004, 112
    %v5164 = vpop.permute.xlu0 %5163
    %5165 = vrot.lane.b32.xlu0 %v5086, 112
    %v5166 = vpop.permute.xlu0 %5165
    %5171 = vrot.lane.b32.xlu0 %v5020, 126
    %v5172 = vpop.permute.xlu0 %5171
    %5173 = vrot.lane.b32.xlu0 %v5102, 126
    %v5174 = vpop.permute.xlu0 %5173
    %5179 = vrot.lane.b32.xlu0 %v5011, 12
    %v5180 = vpop.permute.xlu0 %5179
    %5181 = vrot.lane.b32.xlu0 %v5093, 12
    %v5182 = vpop.permute.xlu0 %5181
    %5187 = vrot.lane.b32.xlu0 %v5021, 26
    %v5188 = vpop.permute.xlu0 %5187
    %5189 = vrot.lane.b32.xlu0 %v5103, 26
    %v5190 = vpop.permute.xlu0 %5189
    %5195 = vrot.lane.b32.xlu0 %v5019, 40
    %v5196 = vpop.permute.xlu0 %5195
    %5197 = vrot.lane.b32.xlu0 %v5101, 40
    %v5198 = vpop.permute.xlu0 %5197
    %5203 = vrot.lane.b32.xlu0 %v5022, 54
    %v5204 = vpop.permute.xlu0 %5203
    %5205 = vrot.lane.b32.xlu0 %v5104, 54
    %v5206 = vpop.permute.xlu0 %5205
    %v5209 = vsel %vm310, %v4963, %v5108
    %v5210 = vsel %vm310, %v5045, %v5110
    %v5211 = vsel %vm313, %v5209, %v5116
    %v5212 = vsel %vm313, %v5210, %v5118
    %v5213 = vsel %vm316, %v5211, %v5124
    %v5214 = vsel %vm316, %v5212, %v5126
    %v5215 = vsel %vm319, %v5213, %v5132
    %v5216 = vsel %vm319, %v5214, %v5134
    %v5217 = vsel %vm322, %v5215, %v5140
    %v5218 = vsel %vm322, %v5216, %v5142
    %v5219 = vsel %vm325, %v5217, %v5148
    %v5220 = vsel %vm325, %v5218, %v5150
    %v5221 = vsel %vm328, %v5219, %v5156
    %v5222 = vsel %vm328, %v5220, %v5158
    %v5223 = vsel %vm331, %v5221, %v5164
    %v5224 = vsel %vm331, %v5222, %v5166
    %v5225 = vsel %vm334, %v5223, %v5172
    %v5226 = vsel %vm334, %v5224, %v5174
    %v5227 = vsel %vm337, %v5172, %v5180
    %v5228 = vsel %vm337, %v5174, %v5182
    %v5229 = vsel %vm340, %v5227, %v5188
    %v5230 = vsel %vm340, %v5228, %v5190
    %v5231 = vsel %vm343, %v5229, %v5196
    %v5232 = vsel %vm343, %v5230, %v5198
    %v5233 = vsel %vm346, %v5231, %v5204
    %v5234 = vsel %vm346, %v5232, %v5206
    %5235 = vrot.lane.b32.xlu0 %v4627, 126
    %v5236 = vpop.permute.xlu0 %5235
    %5237 = vrot.lane.b32.xlu0 %v4626, 126
    %v5238 = vpop.permute.xlu0 %5237
    %5239 = vrot.lane.b32.xlu0 %v4630, 126
    %v5240 = vpop.permute.xlu0 %5239
    %5241 = vrot.lane.b32.xlu0 %v4629, 126
    %v5242 = vpop.permute.xlu0 %5241
    %v5247 = vcombine.high %v5236, 0.0
    %v5249 = vunpack.c.l.s4 1983009808
    %v5250 = vunpack.c.0.s8 %v5249
    %v5251 = vlaneseq
    %v5252 = vshrl.u32 %v5251, 7
    %v5253 = vsub.s32 %v5250, %v5252
    %v5254 = vrot.slane %v5236, %v5253
    %v5256 = vunpack.c.l.s4 1983009808
    %v5257 = vunpack.c.0.s8 %v5256
    %v5258 = vlaneseq
    %v5259 = vshrl.u32 %v5258, 7
    %v5260 = vsub.s32 %v5257, %v5259
    %v5261 = vrot.slane %v5247, %v5260
    %v5262 = vcombine.high %v5254, 0.0
    %v5264 = vunpack.c.l.s4 1934713408
    %v5265 = vunpack.c.0.s8 %v5264
    %v5266 = vlaneseq
    %v5267 = vshrl.u32 %v5266, 7
    %v5268 = vsub.s32 %v5265, %v5267
    %v5269 = vrot.slane %v5254, %v5268
    %v5271 = vunpack.c.l.s4 1934713408
    %v5272 = vunpack.c.0.s8 %v5271
    %v5273 = vlaneseq
    %v5274 = vshrl.u32 %v5273, 7
    %v5275 = vsub.s32 %v5272, %v5274
    %v5276 = vrot.slane %v5262, %v5275
    %v5277 = vcombine.high %v5261, 0.0
    %v5279 = vunpack.c.l.s4 1934713408
    %v5280 = vunpack.c.0.s8 %v5279
    %v5281 = vlaneseq
    %v5282 = vshrl.u32 %v5281, 7
    %v5283 = vsub.s32 %v5280, %v5282
    %v5284 = vrot.slane %v5261, %v5283
    %v5286 = vunpack.c.l.s4 1934713408
    %v5287 = vunpack.c.0.s8 %v5286
    %v5288 = vlaneseq
    %v5289 = vshrl.u32 %v5288, 7
    %v5290 = vsub.s32 %v5287, %v5289
    %v5291 = vrot.slane %v5277, %v5290
    %v5292 = vcombine.high %v5269, 0.0
    %v5293 = vcombine.high %v5276, 0.0
    %v5294 = vcombine.high %v5284, 0.0
    %v5295 = vcombine.high %v5291, 0.0
    %v5297 = vunpack.c.l.s4 1983009808
    %v5298 = vunpack.c.0.s8 %v5297
    %v5299 = vlaneseq
    %v5300 = vshrl.u32 %v5299, 7
    %v5301 = vsub.s32 %v5298, %v5300
    %v5302 = vrot.slane %v5238, %v5301
    %v5303 = vcombine.high %v5302, 0.0
    %v5305 = vunpack.c.l.s4 1934713408
    %v5306 = vunpack.c.0.s8 %v5305
    %v5307 = vlaneseq
    %v5308 = vshrl.u32 %v5307, 7
    %v5309 = vsub.s32 %v5306, %v5308
    %v5310 = vrot.slane %v5302, %v5309
    %v5312 = vunpack.c.l.s4 1934713408
    %v5313 = vunpack.c.0.s8 %v5312
    %v5314 = vlaneseq
    %v5315 = vshrl.u32 %v5314, 7
    %v5316 = vsub.s32 %v5313, %v5315
    %v5317 = vrot.slane %v5303, %v5316
    %v5318 = vcombine.high %v5238, 0.0
    %v5320 = vunpack.c.l.s4 1934713408
    %v5321 = vunpack.c.0.s8 %v5320
    %v5322 = vlaneseq
    %v5323 = vshrl.u32 %v5322, 7
    %v5324 = vsub.s32 %v5321, %v5323
    %v5325 = vrot.slane %v5318, %v5324
    %v5326 = vcombine.high %v5310, 0.0
    %v5327 = vcombine.high %v5317, 0.0
    %v5328 = vcombine.high %v5325, 0.0
    %v5329 = vcombine.high %v5240, 0.0
    %v5331 = vunpack.c.l.s4 1983009808
    %v5332 = vunpack.c.0.s8 %v5331
    %v5333 = vlaneseq
    %v5334 = vshrl.u32 %v5333, 7
    %v5335 = vsub.s32 %v5332, %v5334
    %v5336 = vrot.slane %v5240, %v5335
    %v5338 = vunpack.c.l.s4 1983009808
    %v5339 = vunpack.c.0.s8 %v5338
    %v5340 = vlaneseq
    %v5341 = vshrl.u32 %v5340, 7
    %v5342 = vsub.s32 %v5339, %v5341
    %v5343 = vrot.slane %v5329, %v5342
    %v5344 = vcombine.high %v5336, 0.0
    %v5346 = vunpack.c.l.s4 1934713408
    %v5347 = vunpack.c.0.s8 %v5346
    %v5348 = vlaneseq
    %v5349 = vshrl.u32 %v5348, 7
    %v5350 = vsub.s32 %v5347, %v5349
    %v5351 = vrot.slane %v5336, %v5350
    %v5353 = vunpack.c.l.s4 1934713408
    %v5354 = vunpack.c.0.s8 %v5353
    %v5355 = vlaneseq
    %v5356 = vshrl.u32 %v5355, 7
    %v5357 = vsub.s32 %v5354, %v5356
    %v5358 = vrot.slane %v5344, %v5357
    %v5359 = vcombine.high %v5343, 0.0
    %v5361 = vunpack.c.l.s4 1934713408
    %v5362 = vunpack.c.0.s8 %v5361
    %v5363 = vlaneseq
    %v5364 = vshrl.u32 %v5363, 7
    %v5365 = vsub.s32 %v5362, %v5364
    %v5366 = vrot.slane %v5343, %v5365
    %v5368 = vunpack.c.l.s4 1934713408
    %v5369 = vunpack.c.0.s8 %v5368
    %v5370 = vlaneseq
    %v5371 = vshrl.u32 %v5370, 7
    %v5372 = vsub.s32 %v5369, %v5371
    %v5373 = vrot.slane %v5359, %v5372
    %v5374 = vcombine.high %v5351, 0.0
    %v5375 = vcombine.high %v5358, 0.0
    %v5376 = vcombine.high %v5366, 0.0
    %v5377 = vcombine.high %v5373, 0.0
    %v5379 = vunpack.c.l.s4 1983009808
    %v5380 = vunpack.c.0.s8 %v5379
    %v5381 = vlaneseq
    %v5382 = vshrl.u32 %v5381, 7
    %v5383 = vsub.s32 %v5380, %v5382
    %v5384 = vrot.slane %v5242, %v5383
    %v5385 = vcombine.high %v5384, 0.0
    %v5387 = vunpack.c.l.s4 1934713408
    %v5388 = vunpack.c.0.s8 %v5387
    %v5389 = vlaneseq
    %v5390 = vshrl.u32 %v5389, 7
    %v5391 = vsub.s32 %v5388, %v5390
    %v5392 = vrot.slane %v5384, %v5391
    %v5394 = vunpack.c.l.s4 1934713408
    %v5395 = vunpack.c.0.s8 %v5394
    %v5396 = vlaneseq
    %v5397 = vshrl.u32 %v5396, 7
    %v5398 = vsub.s32 %v5395, %v5397
    %v5399 = vrot.slane %v5385, %v5398
    %v5400 = vcombine.high %v5242, 0.0
    %v5402 = vunpack.c.l.s4 1934713408
    %v5403 = vunpack.c.0.s8 %v5402
    %v5404 = vlaneseq
    %v5405 = vshrl.u32 %v5404, 7
    %v5406 = vsub.s32 %v5403, %v5405
    %v5407 = vrot.slane %v5400, %v5406
    %v5408 = vcombine.high %v5392, 0.0
    %v5409 = vcombine.high %v5399, 0.0
    %v5410 = vcombine.high %v5407, 0.0
    %5413 = vrot.lane.b32.xlu0 %v5292, 14
    %v5414 = vpop.permute.xlu0 %5413
    %5415 = vrot.lane.b32.xlu0 %v5374, 14
    %v5416 = vpop.permute.xlu0 %5415
    %5421 = vrot.lane.b32.xlu0 %v5276, 28
    %v5422 = vpop.permute.xlu0 %5421
    %5423 = vrot.lane.b32.xlu0 %v5358, 28
    %v5424 = vpop.permute.xlu0 %5423
    %5429 = vrot.lane.b32.xlu0 %v5293, 42
    %v5430 = vpop.permute.xlu0 %5429
    %5431 = vrot.lane.b32.xlu0 %v5375, 42
    %v5432 = vpop.permute.xlu0 %5431
    %5437 = vrot.lane.b32.xlu0 %v5284, 56
    %v5438 = vpop.permute.xlu0 %5437
    %5439 = vrot.lane.b32.xlu0 %v5366, 56
    %v5440 = vpop.permute.xlu0 %5439
    %5445 = vrot.lane.b32.xlu0 %v5294, 70
    %v5446 = vpop.permute.xlu0 %5445
    %5447 = vrot.lane.b32.xlu0 %v5376, 70
    %v5448 = vpop.permute.xlu0 %5447
    %5453 = vrot.lane.b32.xlu0 %v5291, 84
    %v5454 = vpop.permute.xlu0 %5453
    %5455 = vrot.lane.b32.xlu0 %v5373, 84
    %v5456 = vpop.permute.xlu0 %5455
    %5461 = vrot.lane.b32.xlu0 %v5295, 98
    %v5462 = vpop.permute.xlu0 %5461
    %5463 = vrot.lane.b32.xlu0 %v5377, 98
    %v5464 = vpop.permute.xlu0 %5463
    %5469 = vrot.lane.b32.xlu0 %v5310, 112
    %v5470 = vpop.permute.xlu0 %5469
    %5471 = vrot.lane.b32.xlu0 %v5392, 112
    %v5472 = vpop.permute.xlu0 %5471
    %5477 = vrot.lane.b32.xlu0 %v5326, 126
    %v5478 = vpop.permute.xlu0 %5477
    %5479 = vrot.lane.b32.xlu0 %v5408, 126
    %v5480 = vpop.permute.xlu0 %5479
    %5485 = vrot.lane.b32.xlu0 %v5317, 12
    %v5486 = vpop.permute.xlu0 %5485
    %5487 = vrot.lane.b32.xlu0 %v5399, 12
    %v5488 = vpop.permute.xlu0 %5487
    %5493 = vrot.lane.b32.xlu0 %v5327, 26
    %v5494 = vpop.permute.xlu0 %5493
    %5495 = vrot.lane.b32.xlu0 %v5409, 26
    %v5496 = vpop.permute.xlu0 %5495
    %5501 = vrot.lane.b32.xlu0 %v5325, 40
    %v5502 = vpop.permute.xlu0 %5501
    %5503 = vrot.lane.b32.xlu0 %v5407, 40
    %v5504 = vpop.permute.xlu0 %5503
    %5509 = vrot.lane.b32.xlu0 %v5328, 54
    %v5510 = vpop.permute.xlu0 %5509
    %5511 = vrot.lane.b32.xlu0 %v5410, 54
    %v5512 = vpop.permute.xlu0 %5511
    %v5515 = vsel %vm310, %v5269, %v5414
    %v5516 = vsel %vm310, %v5351, %v5416
    %v5517 = vsel %vm313, %v5515, %v5422
    %v5518 = vsel %vm313, %v5516, %v5424
    %v5519 = vsel %vm316, %v5517, %v5430
    %v5520 = vsel %vm316, %v5518, %v5432
    %v5521 = vsel %vm319, %v5519, %v5438
    %v5522 = vsel %vm319, %v5520, %v5440
    %v5523 = vsel %vm322, %v5521, %v5446
    %v5524 = vsel %vm322, %v5522, %v5448
    %v5525 = vsel %vm325, %v5523, %v5454
    %v5526 = vsel %vm325, %v5524, %v5456
    %v5527 = vsel %vm328, %v5525, %v5462
    %v5528 = vsel %vm328, %v5526, %v5464
    %v5529 = vsel %vm331, %v5527, %v5470
    %v5530 = vsel %vm331, %v5528, %v5472
    %v5531 = vsel %vm334, %v5529, %v5478
    %v5532 = vsel %vm334, %v5530, %v5480
    %v5533 = vsel %vm337, %v5478, %v5486
    %v5534 = vsel %vm337, %v5480, %v5488
    %v5535 = vsel %vm340, %v5533, %v5494
    %v5536 = vsel %vm340, %v5534, %v5496
    %v5537 = vsel %vm343, %v5535, %v5502
    %v5538 = vsel %vm343, %v5536, %v5504
    %v5539 = vsel %vm346, %v5537, %v5510
    %v5540 = vsel %vm346, %v5538, %v5512
    %v5541 = vcombine.high %v32, 0.0
    %v5543 = vunpack.c.l.s4 1983009808
    %v5544 = vunpack.c.0.s8 %v5543
    %v5545 = vlaneseq
    %v5546 = vshrl.u32 %v5545, 7
    %v5547 = vsub.s32 %v5544, %v5546
    %v5548 = vrot.slane %v32, %v5547
    %v5550 = vunpack.c.l.s4 1983009808
    %v5551 = vunpack.c.0.s8 %v5550
    %v5552 = vlaneseq
    %v5553 = vshrl.u32 %v5552, 7
    %v5554 = vsub.s32 %v5551, %v5553
    %v5555 = vrot.slane %v5541, %v5554
    %v5556 = vcombine.high %v5548, 0.0
    %v5558 = vunpack.c.l.s4 1934713408
    %v5559 = vunpack.c.0.s8 %v5558
    %v5560 = vlaneseq
    %v5561 = vshrl.u32 %v5560, 7
    %v5562 = vsub.s32 %v5559, %v5561
    %v5563 = vrot.slane %v5548, %v5562
    %v5565 = vunpack.c.l.s4 1934713408
    %v5566 = vunpack.c.0.s8 %v5565
    %v5567 = vlaneseq
    %v5568 = vshrl.u32 %v5567, 7
    %v5569 = vsub.s32 %v5566, %v5568
    %v5570 = vrot.slane %v5556, %v5569
    %v5571 = vcombine.high %v5555, 0.0
    %v5573 = vunpack.c.l.s4 1934713408
    %v5574 = vunpack.c.0.s8 %v5573
    %v5575 = vlaneseq
    %v5576 = vshrl.u32 %v5575, 7
    %v5577 = vsub.s32 %v5574, %v5576
    %v5578 = vrot.slane %v5555, %v5577
    %v5580 = vunpack.c.l.s4 1934713408
    %v5581 = vunpack.c.0.s8 %v5580
    %v5582 = vlaneseq
    %v5583 = vshrl.u32 %v5582, 7
    %v5584 = vsub.s32 %v5581, %v5583
    %v5585 = vrot.slane %v5571, %v5584
    %v5586 = vcombine.high %v5563, 0.0
    %v5587 = vcombine.high %v5570, 0.0
    %v5588 = vcombine.high %v5578, 0.0
    %v5589 = vcombine.high %v5585, 0.0
    %v5591 = vunpack.c.l.s4 1983009808
    %v5592 = vunpack.c.0.s8 %v5591
    %v5593 = vlaneseq
    %v5594 = vshrl.u32 %v5593, 7
    %v5595 = vsub.s32 %v5592, %v5594
    %v5596 = vrot.slane %v33, %v5595
    %v5597 = vcombine.high %v5596, 0.0
    %v5599 = vunpack.c.l.s4 1934713408
    %v5600 = vunpack.c.0.s8 %v5599
    %v5601 = vlaneseq
    %v5602 = vshrl.u32 %v5601, 7
    %v5603 = vsub.s32 %v5600, %v5602
    %v5604 = vrot.slane %v5596, %v5603
    %v5606 = vunpack.c.l.s4 1934713408
    %v5607 = vunpack.c.0.s8 %v5606
    %v5608 = vlaneseq
    %v5609 = vshrl.u32 %v5608, 7
    %v5610 = vsub.s32 %v5607, %v5609
    %v5611 = vrot.slane %v5597, %v5610
    %v5612 = vcombine.high %v33, 0.0
    %v5614 = vunpack.c.l.s4 1934713408
    %v5615 = vunpack.c.0.s8 %v5614
    %v5616 = vlaneseq
    %v5617 = vshrl.u32 %v5616, 7
    %v5618 = vsub.s32 %v5615, %v5617
    %v5619 = vrot.slane %v5612, %v5618
    %v5620 = vcombine.high %v5604, 0.0
    %v5621 = vcombine.high %v5611, 0.0
    %v5622 = vcombine.high %v5619, 0.0
    %v5623 = vcombine.high %v38, 0.0
    %v5625 = vunpack.c.l.s4 1983009808
    %v5626 = vunpack.c.0.s8 %v5625
    %v5627 = vlaneseq
    %v5628 = vshrl.u32 %v5627, 7
    %v5629 = vsub.s32 %v5626, %v5628
    %v5630 = vrot.slane %v38, %v5629
    %v5632 = vunpack.c.l.s4 1983009808
    %v5633 = vunpack.c.0.s8 %v5632
    %v5634 = vlaneseq
    %v5635 = vshrl.u32 %v5634, 7
    %v5636 = vsub.s32 %v5633, %v5635
    %v5637 = vrot.slane %v5623, %v5636
    %v5638 = vcombine.high %v5630, 0.0
    %v5640 = vunpack.c.l.s4 1934713408
    %v5641 = vunpack.c.0.s8 %v5640
    %v5642 = vlaneseq
    %v5643 = vshrl.u32 %v5642, 7
    %v5644 = vsub.s32 %v5641, %v5643
    %v5645 = vrot.slane %v5630, %v5644
    %v5647 = vunpack.c.l.s4 1934713408
    %v5648 = vunpack.c.0.s8 %v5647
    %v5649 = vlaneseq
    %v5650 = vshrl.u32 %v5649, 7
    %v5651 = vsub.s32 %v5648, %v5650
    %v5652 = vrot.slane %v5638, %v5651
    %v5653 = vcombine.high %v5637, 0.0
    %v5655 = vunpack.c.l.s4 1934713408
    %v5656 = vunpack.c.0.s8 %v5655
    %v5657 = vlaneseq
    %v5658 = vshrl.u32 %v5657, 7
    %v5659 = vsub.s32 %v5656, %v5658
    %v5660 = vrot.slane %v5637, %v5659
    %v5662 = vunpack.c.l.s4 1934713408
    %v5663 = vunpack.c.0.s8 %v5662
    %v5664 = vlaneseq
    %v5665 = vshrl.u32 %v5664, 7
    %v5666 = vsub.s32 %v5663, %v5665
    %v5667 = vrot.slane %v5653, %v5666
    %v5668 = vcombine.high %v5645, 0.0
    %v5669 = vcombine.high %v5652, 0.0
    %v5670 = vcombine.high %v5660, 0.0
    %v5671 = vcombine.high %v5667, 0.0
    %v5673 = vunpack.c.l.s4 1983009808
    %v5674 = vunpack.c.0.s8 %v5673
    %v5675 = vlaneseq
    %v5676 = vshrl.u32 %v5675, 7
    %v5677 = vsub.s32 %v5674, %v5676
    %v5678 = vrot.slane %v39, %v5677
    %v5679 = vcombine.high %v5678, 0.0
    %v5681 = vunpack.c.l.s4 1934713408
    %v5682 = vunpack.c.0.s8 %v5681
    %v5683 = vlaneseq
    %v5684 = vshrl.u32 %v5683, 7
    %v5685 = vsub.s32 %v5682, %v5684
    %v5686 = vrot.slane %v5678, %v5685
    %v5688 = vunpack.c.l.s4 1934713408
    %v5689 = vunpack.c.0.s8 %v5688
    %v5690 = vlaneseq
    %v5691 = vshrl.u32 %v5690, 7
    %v5692 = vsub.s32 %v5689, %v5691
    %v5693 = vrot.slane %v5679, %v5692
    %v5694 = vcombine.high %v39, 0.0
    %v5696 = vunpack.c.l.s4 1934713408
    %v5697 = vunpack.c.0.s8 %v5696
    %v5698 = vlaneseq
    %v5699 = vshrl.u32 %v5698, 7
    %v5700 = vsub.s32 %v5697, %v5699
    %v5701 = vrot.slane %v5694, %v5700
    %v5702 = vcombine.high %v5686, 0.0
    %v5703 = vcombine.high %v5693, 0.0
    %v5704 = vcombine.high %v5701, 0.0
    %5707 = vrot.lane.b32.xlu0 %v5586, 14
    %v5708 = vpop.permute.xlu0 %5707
    %5709 = vrot.lane.b32.xlu0 %v5668, 14
    %v5710 = vpop.permute.xlu0 %5709
    %5715 = vrot.lane.b32.xlu0 %v5570, 28
    %v5716 = vpop.permute.xlu0 %5715
    %5717 = vrot.lane.b32.xlu0 %v5652, 28
    %v5718 = vpop.permute.xlu0 %5717
    %5723 = vrot.lane.b32.xlu0 %v5587, 42
    %v5724 = vpop.permute.xlu0 %5723
    %5725 = vrot.lane.b32.xlu0 %v5669, 42
    %v5726 = vpop.permute.xlu0 %5725
    %5731 = vrot.lane.b32.xlu0 %v5578, 56
    %v5732 = vpop.permute.xlu0 %5731
    %5733 = vrot.lane.b32.xlu0 %v5660, 56
    %v5734 = vpop.permute.xlu0 %5733
    %5739 = vrot.lane.b32.xlu0 %v5588, 70
    %v5740 = vpop.permute.xlu0 %5739
    %5741 = vrot.lane.b32.xlu0 %v5670, 70
    %v5742 = vpop.permute.xlu0 %5741
    %5747 = vrot.lane.b32.xlu0 %v5585, 84
    %v5748 = vpop.permute.xlu0 %5747
    %5749 = vrot.lane.b32.xlu0 %v5667, 84
    %v5750 = vpop.permute.xlu0 %5749
    %5755 = vrot.lane.b32.xlu0 %v5589, 98
    %v5756 = vpop.permute.xlu0 %5755
    %5757 = vrot.lane.b32.xlu0 %v5671, 98
    %v5758 = vpop.permute.xlu0 %5757
    %5763 = vrot.lane.b32.xlu0 %v5604, 112
    %v5764 = vpop.permute.xlu0 %5763
    %5765 = vrot.lane.b32.xlu0 %v5686, 112
    %v5766 = vpop.permute.xlu0 %5765
    %5771 = vrot.lane.b32.xlu0 %v5620, 126
    %v5772 = vpop.permute.xlu0 %5771
    %5773 = vrot.lane.b32.xlu0 %v5702, 126
    %v5774 = vpop.permute.xlu0 %5773
    %5779 = vrot.lane.b32.xlu0 %v5611, 12
    %v5780 = vpop.permute.xlu0 %5779
    %5781 = vrot.lane.b32.xlu0 %v5693, 12
    %v5782 = vpop.permute.xlu0 %5781
    %5787 = vrot.lane.b32.xlu0 %v5621, 26
    %v5788 = vpop.permute.xlu0 %5787
    %5789 = vrot.lane.b32.xlu0 %v5703, 26
    %v5790 = vpop.permute.xlu0 %5789
    %5795 = vrot.lane.b32.xlu0 %v5619, 40
    %v5796 = vpop.permute.xlu0 %5795
    %5797 = vrot.lane.b32.xlu0 %v5701, 40
    %v5798 = vpop.permute.xlu0 %5797
    %5803 = vrot.lane.b32.xlu0 %v5622, 54
    %v5804 = vpop.permute.xlu0 %5803
    %5805 = vrot.lane.b32.xlu0 %v5704, 54
    %v5806 = vpop.permute.xlu0 %5805
    %v5809 = vsel %vm310, %v5563, %v5708
    %v5810 = vsel %vm310, %v5645, %v5710
    %v5811 = vsel %vm313, %v5809, %v5716
    %v5812 = vsel %vm313, %v5810, %v5718
    %v5813 = vsel %vm316, %v5811, %v5724
    %v5814 = vsel %vm316, %v5812, %v5726
    %v5815 = vsel %vm319, %v5813, %v5732
    %v5816 = vsel %vm319, %v5814, %v5734
    %v5817 = vsel %vm322, %v5815, %v5740
    %v5818 = vsel %vm322, %v5816, %v5742
    %v5819 = vsel %vm325, %v5817, %v5748
    %v5820 = vsel %vm325, %v5818, %v5750
    %v5821 = vsel %vm328, %v5819, %v5756
    %v5822 = vsel %vm328, %v5820, %v5758
    %v5823 = vsel %vm331, %v5821, %v5764
    %v5824 = vsel %vm331, %v5822, %v5766
    %v5825 = vsel %vm334, %v5823, %v5772
    %v5826 = vsel %vm334, %v5824, %v5774
    %v5827 = vsel %vm337, %v5772, %v5780
    %v5828 = vsel %vm337, %v5774, %v5782
    %v5829 = vsel %vm340, %v5827, %v5788
    %v5830 = vsel %vm340, %v5828, %v5790
    %v5831 = vsel %vm343, %v5829, %v5796
    %v5832 = vsel %vm343, %v5830, %v5798
    %v5833 = vsel %vm346, %v5831, %v5804
    %v5834 = vsel %vm346, %v5832, %v5806
    %5839 = vrot.lane.b32.xlu0 %v32, 127
    %v5840 = vpop.permute.xlu0 %5839
    %5841 = vrot.lane.b32.xlu0 %v33, 127
    %v5842 = vpop.permute.xlu0 %5841
    %5843 = vrot.lane.b32.xlu0 %v38, 127
    %v5844 = vpop.permute.xlu0 %5843
    %5845 = vrot.lane.b32.xlu0 %v39, 127
    %v5846 = vpop.permute.xlu0 %5845
    %v5851 = vcombine.high %v5840, 0.0
    %v5853 = vunpack.c.l.s4 1983009808
    %v5854 = vunpack.c.0.s8 %v5853
    %v5855 = vlaneseq
    %v5856 = vshrl.u32 %v5855, 7
    %v5857 = vsub.s32 %v5854, %v5856
    %v5858 = vrot.slane %v5840, %v5857
    %v5860 = vunpack.c.l.s4 1983009808
    %v5861 = vunpack.c.0.s8 %v5860
    %v5862 = vlaneseq
    %v5863 = vshrl.u32 %v5862, 7
    %v5864 = vsub.s32 %v5861, %v5863
    %v5865 = vrot.slane %v5851, %v5864
    %v5866 = vcombine.high %v5858, 0.0
    %v5868 = vunpack.c.l.s4 1934713408
    %v5869 = vunpack.c.0.s8 %v5868
    %v5870 = vlaneseq
    %v5871 = vshrl.u32 %v5870, 7
    %v5872 = vsub.s32 %v5869, %v5871
    %v5873 = vrot.slane %v5858, %v5872
    %v5875 = vunpack.c.l.s4 1934713408
    %v5876 = vunpack.c.0.s8 %v5875
    %v5877 = vlaneseq
    %v5878 = vshrl.u32 %v5877, 7
    %v5879 = vsub.s32 %v5876, %v5878
    %v5880 = vrot.slane %v5866, %v5879
    %v5881 = vcombine.high %v5865, 0.0
    %v5883 = vunpack.c.l.s4 1934713408
    %v5884 = vunpack.c.0.s8 %v5883
    %v5885 = vlaneseq
    %v5886 = vshrl.u32 %v5885, 7
    %v5887 = vsub.s32 %v5884, %v5886
    %v5888 = vrot.slane %v5865, %v5887
    %v5890 = vunpack.c.l.s4 1934713408
    %v5891 = vunpack.c.0.s8 %v5890
    %v5892 = vlaneseq
    %v5893 = vshrl.u32 %v5892, 7
    %v5894 = vsub.s32 %v5891, %v5893
    %v5895 = vrot.slane %v5881, %v5894
    %v5896 = vcombine.high %v5873, 0.0
    %v5897 = vcombine.high %v5880, 0.0
    %v5898 = vcombine.high %v5888, 0.0
    %v5899 = vcombine.high %v5895, 0.0
    %v5901 = vunpack.c.l.s4 1983009808
    %v5902 = vunpack.c.0.s8 %v5901
    %v5903 = vlaneseq
    %v5904 = vshrl.u32 %v5903, 7
    %v5905 = vsub.s32 %v5902, %v5904
    %v5906 = vrot.slane %v5842, %v5905
    %v5907 = vcombine.high %v5906, 0.0
    %v5909 = vunpack.c.l.s4 1934713408
    %v5910 = vunpack.c.0.s8 %v5909
    %v5911 = vlaneseq
    %v5912 = vshrl.u32 %v5911, 7
    %v5913 = vsub.s32 %v5910, %v5912
    %v5914 = vrot.slane %v5906, %v5913
    %v5916 = vunpack.c.l.s4 1934713408
    %v5917 = vunpack.c.0.s8 %v5916
    %v5918 = vlaneseq
    %v5919 = vshrl.u32 %v5918, 7
    %v5920 = vsub.s32 %v5917, %v5919
    %v5921 = vrot.slane %v5907, %v5920
    %v5922 = vcombine.high %v5842, 0.0
    %v5924 = vunpack.c.l.s4 1934713408
    %v5925 = vunpack.c.0.s8 %v5924
    %v5926 = vlaneseq
    %v5927 = vshrl.u32 %v5926, 7
    %v5928 = vsub.s32 %v5925, %v5927
    %v5929 = vrot.slane %v5922, %v5928
    %v5930 = vcombine.high %v5914, 0.0
    %v5931 = vcombine.high %v5921, 0.0
    %v5932 = vcombine.high %v5929, 0.0
    %v5933 = vcombine.high %v5844, 0.0
    %v5935 = vunpack.c.l.s4 1983009808
    %v5936 = vunpack.c.0.s8 %v5935
    %v5937 = vlaneseq
    %v5938 = vshrl.u32 %v5937, 7
    %v5939 = vsub.s32 %v5936, %v5938
    %v5940 = vrot.slane %v5844, %v5939
    %v5942 = vunpack.c.l.s4 1983009808
    %v5943 = vunpack.c.0.s8 %v5942
    %v5944 = vlaneseq
    %v5945 = vshrl.u32 %v5944, 7
    %v5946 = vsub.s32 %v5943, %v5945
    %v5947 = vrot.slane %v5933, %v5946
    %v5948 = vcombine.high %v5940, 0.0
    %v5950 = vunpack.c.l.s4 1934713408
    %v5951 = vunpack.c.0.s8 %v5950
    %v5952 = vlaneseq
    %v5953 = vshrl.u32 %v5952, 7
    %v5954 = vsub.s32 %v5951, %v5953
    %v5955 = vrot.slane %v5940, %v5954
    %v5957 = vunpack.c.l.s4 1934713408
    %v5958 = vunpack.c.0.s8 %v5957
    %v5959 = vlaneseq
    %v5960 = vshrl.u32 %v5959, 7
    %v5961 = vsub.s32 %v5958, %v5960
    %v5962 = vrot.slane %v5948, %v5961
    %v5963 = vcombine.high %v5947, 0.0
    %v5965 = vunpack.c.l.s4 1934713408
    %v5966 = vunpack.c.0.s8 %v5965
    %v5967 = vlaneseq
    %v5968 = vshrl.u32 %v5967, 7
    %v5969 = vsub.s32 %v5966, %v5968
    %v5970 = vrot.slane %v5947, %v5969
    %v5972 = vunpack.c.l.s4 1934713408
    %v5973 = vunpack.c.0.s8 %v5972
    %v5974 = vlaneseq
    %v5975 = vshrl.u32 %v5974, 7
    %v5976 = vsub.s32 %v5973, %v5975
    %v5977 = vrot.slane %v5963, %v5976
    %v5978 = vcombine.high %v5955, 0.0
    %v5979 = vcombine.high %v5962, 0.0
    %v5980 = vcombine.high %v5970, 0.0
    %v5981 = vcombine.high %v5977, 0.0
    %v5983 = vunpack.c.l.s4 1983009808
    %v5984 = vunpack.c.0.s8 %v5983
    %v5985 = vlaneseq
    %v5986 = vshrl.u32 %v5985, 7
    %v5987 = vsub.s32 %v5984, %v5986
    %v5988 = vrot.slane %v5846, %v5987
    %v5989 = vcombine.high %v5988, 0.0
    %v5991 = vunpack.c.l.s4 1934713408
    %v5992 = vunpack.c.0.s8 %v5991
    %v5993 = vlaneseq
    %v5994 = vshrl.u32 %v5993, 7
    %v5995 = vsub.s32 %v5992, %v5994
    %v5996 = vrot.slane %v5988, %v5995
    %v5998 = vunpack.c.l.s4 1934713408
    %v5999 = vunpack.c.0.s8 %v5998
    %v6000 = vlaneseq
    %v6001 = vshrl.u32 %v6000, 7
    %v6002 = vsub.s32 %v5999, %v6001
    %v6003 = vrot.slane %v5989, %v6002
    %v6004 = vcombine.high %v5846, 0.0
    %v6006 = vunpack.c.l.s4 1934713408
    %v6007 = vunpack.c.0.s8 %v6006
    %v6008 = vlaneseq
    %v6009 = vshrl.u32 %v6008, 7
    %v6010 = vsub.s32 %v6007, %v6009
    %v6011 = vrot.slane %v6004, %v6010
    %v6012 = vcombine.high %v5996, 0.0
    %v6013 = vcombine.high %v6003, 0.0
    %v6014 = vcombine.high %v6011, 0.0
    %6017 = vrot.lane.b32.xlu0 %v5896, 14
    %v6018 = vpop.permute.xlu0 %6017
    %6019 = vrot.lane.b32.xlu0 %v5978, 14
    %v6020 = vpop.permute.xlu0 %6019
    %6025 = vrot.lane.b32.xlu0 %v5880, 28
    %v6026 = vpop.permute.xlu0 %6025
    %6027 = vrot.lane.b32.xlu0 %v5962, 28
    %v6028 = vpop.permute.xlu0 %6027
    %6033 = vrot.lane.b32.xlu0 %v5897, 42
    %v6034 = vpop.permute.xlu0 %6033
    %6035 = vrot.lane.b32.xlu0 %v5979, 42
    %v6036 = vpop.permute.xlu0 %6035
    %6041 = vrot.lane.b32.xlu0 %v5888, 56
    %v6042 = vpop.permute.xlu0 %6041
    %6043 = vrot.lane.b32.xlu0 %v5970, 56
    %v6044 = vpop.permute.xlu0 %6043
    %6049 = vrot.lane.b32.xlu0 %v5898, 70
    %v6050 = vpop.permute.xlu0 %6049
    %6051 = vrot.lane.b32.xlu0 %v5980, 70
    %v6052 = vpop.permute.xlu0 %6051
    %6057 = vrot.lane.b32.xlu0 %v5895, 84
    %v6058 = vpop.permute.xlu0 %6057
    %6059 = vrot.lane.b32.xlu0 %v5977, 84
    %v6060 = vpop.permute.xlu0 %6059
    %6065 = vrot.lane.b32.xlu0 %v5899, 98
    %v6066 = vpop.permute.xlu0 %6065
    %6067 = vrot.lane.b32.xlu0 %v5981, 98
    %v6068 = vpop.permute.xlu0 %6067
    %6073 = vrot.lane.b32.xlu0 %v5914, 112
    %v6074 = vpop.permute.xlu0 %6073
    %6075 = vrot.lane.b32.xlu0 %v5996, 112
    %v6076 = vpop.permute.xlu0 %6075
    %6081 = vrot.lane.b32.xlu0 %v5930, 126
    %v6082 = vpop.permute.xlu0 %6081
    %6083 = vrot.lane.b32.xlu0 %v6012, 126
    %v6084 = vpop.permute.xlu0 %6083
    %6089 = vrot.lane.b32.xlu0 %v5921, 12
    %v6090 = vpop.permute.xlu0 %6089
    %6091 = vrot.lane.b32.xlu0 %v6003, 12
    %v6092 = vpop.permute.xlu0 %6091
    %6097 = vrot.lane.b32.xlu0 %v5931, 26
    %v6098 = vpop.permute.xlu0 %6097
    %6099 = vrot.lane.b32.xlu0 %v6013, 26
    %v6100 = vpop.permute.xlu0 %6099
    %6105 = vrot.lane.b32.xlu0 %v5929, 40
    %v6106 = vpop.permute.xlu0 %6105
    %6107 = vrot.lane.b32.xlu0 %v6011, 40
    %v6108 = vpop.permute.xlu0 %6107
    %6113 = vrot.lane.b32.xlu0 %v5932, 54
    %v6114 = vpop.permute.xlu0 %6113
    %6115 = vrot.lane.b32.xlu0 %v6014, 54
    %v6116 = vpop.permute.xlu0 %6115
    %v6119 = vsel %vm310, %v5873, %v6018
    %v6120 = vsel %vm310, %v5955, %v6020
    %v6121 = vsel %vm313, %v6119, %v6026
    %v6122 = vsel %vm313, %v6120, %v6028
    %v6123 = vsel %vm316, %v6121, %v6034
    %v6124 = vsel %vm316, %v6122, %v6036
    %v6125 = vsel %vm319, %v6123, %v6042
    %v6126 = vsel %vm319, %v6124, %v6044
    %v6127 = vsel %vm322, %v6125, %v6050
    %v6128 = vsel %vm322, %v6126, %v6052
    %v6129 = vsel %vm325, %v6127, %v6058
    %v6130 = vsel %vm325, %v6128, %v6060
    %v6131 = vsel %vm328, %v6129, %v6066
    %v6132 = vsel %vm328, %v6130, %v6068
    %v6133 = vsel %vm331, %v6131, %v6074
    %v6134 = vsel %vm331, %v6132, %v6076
    %v6135 = vsel %vm334, %v6133, %v6082
    %v6136 = vsel %vm334, %v6134, %v6084
    %v6137 = vsel %vm337, %v6082, %v6090
    %v6138 = vsel %vm337, %v6084, %v6092
    %v6139 = vsel %vm340, %v6137, %v6098
    %v6140 = vsel %vm340, %v6138, %v6100
    %v6141 = vsel %vm343, %v6139, %v6106
    %v6142 = vsel %vm343, %v6140, %v6108
    %v6143 = vsel %vm346, %v6141, %v6114
    %v6144 = vsel %vm346, %v6142, %v6116
    %6145 = vrot.lane.b32.xlu0 %v32, 126
    %v6146 = vpop.permute.xlu0 %6145
    %6147 = vrot.lane.b32.xlu0 %v33, 126
    %v6148 = vpop.permute.xlu0 %6147
    %6149 = vrot.lane.b32.xlu0 %v38, 126
    %v6150 = vpop.permute.xlu0 %6149
    %6151 = vrot.lane.b32.xlu0 %v39, 126
    %v6152 = vpop.permute.xlu0 %6151
    %v6157 = vcombine.high %v6146, 0.0
    %v6159 = vunpack.c.l.s4 1983009808
    %v6160 = vunpack.c.0.s8 %v6159
    %v6161 = vlaneseq
    %v6162 = vshrl.u32 %v6161, 7
    %v6163 = vsub.s32 %v6160, %v6162
    %v6164 = vrot.slane %v6146, %v6163
    %v6166 = vunpack.c.l.s4 1983009808
    %v6167 = vunpack.c.0.s8 %v6166
    %v6168 = vlaneseq
    %v6169 = vshrl.u32 %v6168, 7
    %v6170 = vsub.s32 %v6167, %v6169
    %v6171 = vrot.slane %v6157, %v6170
    %v6172 = vcombine.high %v6164, 0.0
    %v6174 = vunpack.c.l.s4 1934713408
    %v6175 = vunpack.c.0.s8 %v6174
    %v6176 = vlaneseq
    %v6177 = vshrl.u32 %v6176, 7
    %v6178 = vsub.s32 %v6175, %v6177
    %v6179 = vrot.slane %v6164, %v6178
    %v6181 = vunpack.c.l.s4 1934713408
    %v6182 = vunpack.c.0.s8 %v6181
    %v6183 = vlaneseq
    %v6184 = vshrl.u32 %v6183, 7
    %v6185 = vsub.s32 %v6182, %v6184
    %v6186 = vrot.slane %v6172, %v6185
    %v6187 = vcombine.high %v6171, 0.0
    %v6189 = vunpack.c.l.s4 1934713408
    %v6190 = vunpack.c.0.s8 %v6189
    %v6191 = vlaneseq
    %v6192 = vshrl.u32 %v6191, 7
    %v6193 = vsub.s32 %v6190, %v6192
    %v6194 = vrot.slane %v6171, %v6193
    %v6196 = vunpack.c.l.s4 1934713408
    %v6197 = vunpack.c.0.s8 %v6196
    %v6198 = vlaneseq
    %v6199 = vshrl.u32 %v6198, 7
    %v6200 = vsub.s32 %v6197, %v6199
    %v6201 = vrot.slane %v6187, %v6200
    %v6202 = vcombine.high %v6179, 0.0
    %v6203 = vcombine.high %v6186, 0.0
    %v6204 = vcombine.high %v6194, 0.0
    %v6205 = vcombine.high %v6201, 0.0
    %v6207 = vunpack.c.l.s4 1983009808
    %v6208 = vunpack.c.0.s8 %v6207
    %v6209 = vlaneseq
    %v6210 = vshrl.u32 %v6209, 7
    %v6211 = vsub.s32 %v6208, %v6210
    %v6212 = vrot.slane %v6148, %v6211
    %v6213 = vcombine.high %v6212, 0.0
    %v6215 = vunpack.c.l.s4 1934713408
    %v6216 = vunpack.c.0.s8 %v6215
    %v6217 = vlaneseq
    %v6218 = vshrl.u32 %v6217, 7
    %v6219 = vsub.s32 %v6216, %v6218
    %v6220 = vrot.slane %v6212, %v6219
    %v6222 = vunpack.c.l.s4 1934713408
    %v6223 = vunpack.c.0.s8 %v6222
    %v6224 = vlaneseq
    %v6225 = vshrl.u32 %v6224, 7
    %v6226 = vsub.s32 %v6223, %v6225
    %v6227 = vrot.slane %v6213, %v6226
    %v6228 = vcombine.high %v6148, 0.0
    %v6230 = vunpack.c.l.s4 1934713408
    %v6231 = vunpack.c.0.s8 %v6230
    %v6232 = vlaneseq
    %v6233 = vshrl.u32 %v6232, 7
    %v6234 = vsub.s32 %v6231, %v6233
    %v6235 = vrot.slane %v6228, %v6234
    %v6236 = vcombine.high %v6220, 0.0
    %v6237 = vcombine.high %v6227, 0.0
    %v6238 = vcombine.high %v6235, 0.0
    %v6239 = vcombine.high %v6150, 0.0
    %v6241 = vunpack.c.l.s4 1983009808
    %v6242 = vunpack.c.0.s8 %v6241
    %v6243 = vlaneseq
    %v6244 = vshrl.u32 %v6243, 7
    %v6245 = vsub.s32 %v6242, %v6244
    %v6246 = vrot.slane %v6150, %v6245
    %v6248 = vunpack.c.l.s4 1983009808
    %v6249 = vunpack.c.0.s8 %v6248
    %v6250 = vlaneseq
    %v6251 = vshrl.u32 %v6250, 7
    %v6252 = vsub.s32 %v6249, %v6251
    %v6253 = vrot.slane %v6239, %v6252
    %v6254 = vcombine.high %v6246, 0.0
    %v6256 = vunpack.c.l.s4 1934713408
    %v6257 = vunpack.c.0.s8 %v6256
    %v6258 = vlaneseq
    %v6259 = vshrl.u32 %v6258, 7
    %v6260 = vsub.s32 %v6257, %v6259
    %v6261 = vrot.slane %v6246, %v6260
    %v6263 = vunpack.c.l.s4 1934713408
    %v6264 = vunpack.c.0.s8 %v6263
    %v6265 = vlaneseq
    %v6266 = vshrl.u32 %v6265, 7
    %v6267 = vsub.s32 %v6264, %v6266
    %v6268 = vrot.slane %v6254, %v6267
    %v6269 = vcombine.high %v6253, 0.0
    %v6271 = vunpack.c.l.s4 1934713408
    %v6272 = vunpack.c.0.s8 %v6271
    %v6273 = vlaneseq
    %v6274 = vshrl.u32 %v6273, 7
    %v6275 = vsub.s32 %v6272, %v6274
    %v6276 = vrot.slane %v6253, %v6275
    %v6278 = vunpack.c.l.s4 1934713408
    %v6279 = vunpack.c.0.s8 %v6278
    %v6280 = vlaneseq
    %v6281 = vshrl.u32 %v6280, 7
    %v6282 = vsub.s32 %v6279, %v6281
    %v6283 = vrot.slane %v6269, %v6282
    %v6284 = vcombine.high %v6261, 0.0
    %v6285 = vcombine.high %v6268, 0.0
    %v6286 = vcombine.high %v6276, 0.0
    %v6287 = vcombine.high %v6283, 0.0
    %v6289 = vunpack.c.l.s4 1983009808
    %v6290 = vunpack.c.0.s8 %v6289
    %v6291 = vlaneseq
    %v6292 = vshrl.u32 %v6291, 7
    %v6293 = vsub.s32 %v6290, %v6292
    %v6294 = vrot.slane %v6152, %v6293
    %v6295 = vcombine.high %v6294, 0.0
    %v6297 = vunpack.c.l.s4 1934713408
    %v6298 = vunpack.c.0.s8 %v6297
    %v6299 = vlaneseq
    %v6300 = vshrl.u32 %v6299, 7
    %v6301 = vsub.s32 %v6298, %v6300
    %v6302 = vrot.slane %v6294, %v6301
    %v6304 = vunpack.c.l.s4 1934713408
    %v6305 = vunpack.c.0.s8 %v6304
    %v6306 = vlaneseq
    %v6307 = vshrl.u32 %v6306, 7
    %v6308 = vsub.s32 %v6305, %v6307
    %v6309 = vrot.slane %v6295, %v6308
    %v6310 = vcombine.high %v6152, 0.0
    %v6312 = vunpack.c.l.s4 1934713408
    %v6313 = vunpack.c.0.s8 %v6312
    %v6314 = vlaneseq
    %v6315 = vshrl.u32 %v6314, 7
    %v6316 = vsub.s32 %v6313, %v6315
    %v6317 = vrot.slane %v6310, %v6316
    %v6318 = vcombine.high %v6302, 0.0
    %v6319 = vcombine.high %v6309, 0.0
    %v6320 = vcombine.high %v6317, 0.0
    %6323 = vrot.lane.b32.xlu0 %v6202, 14
    %v6324 = vpop.permute.xlu0 %6323
    %6325 = vrot.lane.b32.xlu0 %v6284, 14
    %v6326 = vpop.permute.xlu0 %6325
    %6331 = vrot.lane.b32.xlu0 %v6186, 28
    %v6332 = vpop.permute.xlu0 %6331
    %6333 = vrot.lane.b32.xlu0 %v6268, 28
    %v6334 = vpop.permute.xlu0 %6333
    %6339 = vrot.lane.b32.xlu0 %v6203, 42
    %v6340 = vpop.permute.xlu0 %6339
    %6341 = vrot.lane.b32.xlu0 %v6285, 42
    %v6342 = vpop.permute.xlu0 %6341
    %6347 = vrot.lane.b32.xlu0 %v6194, 56
    %v6348 = vpop.permute.xlu0 %6347
    %6349 = vrot.lane.b32.xlu0 %v6276, 56
    %v6350 = vpop.permute.xlu0 %6349
    %6355 = vrot.lane.b32.xlu0 %v6204, 70
    %v6356 = vpop.permute.xlu0 %6355
    %6357 = vrot.lane.b32.xlu0 %v6286, 70
    %v6358 = vpop.permute.xlu0 %6357
    %6363 = vrot.lane.b32.xlu0 %v6201, 84
    %v6364 = vpop.permute.xlu0 %6363
    %6365 = vrot.lane.b32.xlu0 %v6283, 84
    %v6366 = vpop.permute.xlu0 %6365
    %6371 = vrot.lane.b32.xlu0 %v6205, 98
    %v6372 = vpop.permute.xlu0 %6371
    %6373 = vrot.lane.b32.xlu0 %v6287, 98
    %v6374 = vpop.permute.xlu0 %6373
    %6379 = vrot.lane.b32.xlu0 %v6220, 112
    %v6380 = vpop.permute.xlu0 %6379
    %6381 = vrot.lane.b32.xlu0 %v6302, 112
    %v6382 = vpop.permute.xlu0 %6381
    %6387 = vrot.lane.b32.xlu0 %v6236, 126
    %v6388 = vpop.permute.xlu0 %6387
    %6389 = vrot.lane.b32.xlu0 %v6318, 126
    %v6390 = vpop.permute.xlu0 %6389
    %6395 = vrot.lane.b32.xlu0 %v6227, 12
    %v6396 = vpop.permute.xlu0 %6395
    %6397 = vrot.lane.b32.xlu0 %v6309, 12
    %v6398 = vpop.permute.xlu0 %6397
    %6403 = vrot.lane.b32.xlu0 %v6237, 26
    %v6404 = vpop.permute.xlu0 %6403
    %6405 = vrot.lane.b32.xlu0 %v6319, 26
    %v6406 = vpop.permute.xlu0 %6405
    %6411 = vrot.lane.b32.xlu0 %v6235, 40
    %v6412 = vpop.permute.xlu0 %6411
    %6413 = vrot.lane.b32.xlu0 %v6317, 40
    %v6414 = vpop.permute.xlu0 %6413
    %6419 = vrot.lane.b32.xlu0 %v6238, 54
    %v6420 = vpop.permute.xlu0 %6419
    %6421 = vrot.lane.b32.xlu0 %v6320, 54
    %v6422 = vpop.permute.xlu0 %6421
    %v6425 = vsel %vm310, %v6179, %v6324
    %v6426 = vsel %vm310, %v6261, %v6326
    %v6427 = vsel %vm313, %v6425, %v6332
    %v6428 = vsel %vm313, %v6426, %v6334
    %v6429 = vsel %vm316, %v6427, %v6340
    %v6430 = vsel %vm316, %v6428, %v6342
    %v6431 = vsel %vm319, %v6429, %v6348
    %v6432 = vsel %vm319, %v6430, %v6350
    %v6433 = vsel %vm322, %v6431, %v6356
    %v6434 = vsel %vm322, %v6432, %v6358
    %v6435 = vsel %vm325, %v6433, %v6364
    %v6436 = vsel %vm325, %v6434, %v6366
    %v6437 = vsel %vm328, %v6435, %v6372
    %v6438 = vsel %vm328, %v6436, %v6374
    %v6439 = vsel %vm331, %v6437, %v6380
    %v6440 = vsel %vm331, %v6438, %v6382
    %v6441 = vsel %vm334, %v6439, %v6388
    %v6442 = vsel %vm334, %v6440, %v6390
    %v6443 = vsel %vm337, %v6388, %v6396
    %v6444 = vsel %vm337, %v6390, %v6398
    %v6445 = vsel %vm340, %v6443, %v6404
    %v6446 = vsel %vm340, %v6444, %v6406
    %v6447 = vsel %vm343, %v6445, %v6412
    %v6448 = vsel %vm343, %v6446, %v6414
    %v6449 = vsel %vm346, %v6447, %v6420
    %v6450 = vsel %vm346, %v6448, %v6422
    %v6451 = vrot.slane %v32, 1
    %v6452 = vrot.slane %v33, 1
    %v6453 = vsel %vm965, %v6451, %v6452
    %v6454 = vrot.slane %v38, 1
    %v6455 = vrot.slane %v39, 1
    %v6456 = vsel %vm965, %v6454, %v6455
    %v6461 = vcombine.high %v6453, 0.0
    %v6463 = vunpack.c.l.s4 1983009808
    %v6464 = vunpack.c.0.s8 %v6463
    %v6465 = vlaneseq
    %v6466 = vshrl.u32 %v6465, 7
    %v6467 = vsub.s32 %v6464, %v6466
    %v6468 = vrot.slane %v6453, %v6467
    %v6470 = vunpack.c.l.s4 1983009808
    %v6471 = vunpack.c.0.s8 %v6470
    %v6472 = vlaneseq
    %v6473 = vshrl.u32 %v6472, 7
    %v6474 = vsub.s32 %v6471, %v6473
    %v6475 = vrot.slane %v6461, %v6474
    %v6476 = vcombine.high %v6468, 0.0
    %v6478 = vunpack.c.l.s4 1934713408
    %v6479 = vunpack.c.0.s8 %v6478
    %v6480 = vlaneseq
    %v6481 = vshrl.u32 %v6480, 7
    %v6482 = vsub.s32 %v6479, %v6481
    %v6483 = vrot.slane %v6468, %v6482
    %v6485 = vunpack.c.l.s4 1934713408
    %v6486 = vunpack.c.0.s8 %v6485
    %v6487 = vlaneseq
    %v6488 = vshrl.u32 %v6487, 7
    %v6489 = vsub.s32 %v6486, %v6488
    %v6490 = vrot.slane %v6476, %v6489
    %v6491 = vcombine.high %v6475, 0.0
    %v6493 = vunpack.c.l.s4 1934713408
    %v6494 = vunpack.c.0.s8 %v6493
    %v6495 = vlaneseq
    %v6496 = vshrl.u32 %v6495, 7
    %v6497 = vsub.s32 %v6494, %v6496
    %v6498 = vrot.slane %v6475, %v6497
    %v6500 = vunpack.c.l.s4 1934713408
    %v6501 = vunpack.c.0.s8 %v6500
    %v6502 = vlaneseq
    %v6503 = vshrl.u32 %v6502, 7
    %v6504 = vsub.s32 %v6501, %v6503
    %v6505 = vrot.slane %v6491, %v6504
    %v6506 = vcombine.high %v6483, 0.0
    %v6507 = vcombine.high %v6490, 0.0
    %v6508 = vcombine.high %v6498, 0.0
    %v6509 = vcombine.high %v6505, 0.0
    %v6511 = vunpack.c.l.s4 1983009808
    %v6512 = vunpack.c.0.s8 %v6511
    %v6513 = vlaneseq
    %v6514 = vshrl.u32 %v6513, 7
    %v6515 = vsub.s32 %v6512, %v6514
    %v6516 = vrot.slane %v6452, %v6515
    %v6517 = vcombine.high %v6516, 0.0
    %v6519 = vunpack.c.l.s4 1934713408
    %v6520 = vunpack.c.0.s8 %v6519
    %v6521 = vlaneseq
    %v6522 = vshrl.u32 %v6521, 7
    %v6523 = vsub.s32 %v6520, %v6522
    %v6524 = vrot.slane %v6516, %v6523
    %v6526 = vunpack.c.l.s4 1934713408
    %v6527 = vunpack.c.0.s8 %v6526
    %v6528 = vlaneseq
    %v6529 = vshrl.u32 %v6528, 7
    %v6530 = vsub.s32 %v6527, %v6529
    %v6531 = vrot.slane %v6517, %v6530
    %v6532 = vcombine.high %v6452, 0.0
    %v6534 = vunpack.c.l.s4 1934713408
    %v6535 = vunpack.c.0.s8 %v6534
    %v6536 = vlaneseq
    %v6537 = vshrl.u32 %v6536, 7
    %v6538 = vsub.s32 %v6535, %v6537
    %v6539 = vrot.slane %v6532, %v6538
    %v6540 = vcombine.high %v6524, 0.0
    %v6541 = vcombine.high %v6531, 0.0
    %v6542 = vcombine.high %v6539, 0.0
    %v6543 = vcombine.high %v6456, 0.0
    %v6545 = vunpack.c.l.s4 1983009808
    %v6546 = vunpack.c.0.s8 %v6545
    %v6547 = vlaneseq
    %v6548 = vshrl.u32 %v6547, 7
    %v6549 = vsub.s32 %v6546, %v6548
    %v6550 = vrot.slane %v6456, %v6549
    %v6552 = vunpack.c.l.s4 1983009808
    %v6553 = vunpack.c.0.s8 %v6552
    %v6554 = vlaneseq
    %v6555 = vshrl.u32 %v6554, 7
    %v6556 = vsub.s32 %v6553, %v6555
    %v6557 = vrot.slane %v6543, %v6556
    %v6558 = vcombine.high %v6550, 0.0
    %v6560 = vunpack.c.l.s4 1934713408
    %v6561 = vunpack.c.0.s8 %v6560
    %v6562 = vlaneseq
    %v6563 = vshrl.u32 %v6562, 7
    %v6564 = vsub.s32 %v6561, %v6563
    %v6565 = vrot.slane %v6550, %v6564
    %v6567 = vunpack.c.l.s4 1934713408
    %v6568 = vunpack.c.0.s8 %v6567
    %v6569 = vlaneseq
    %v6570 = vshrl.u32 %v6569, 7
    %v6571 = vsub.s32 %v6568, %v6570
    %v6572 = vrot.slane %v6558, %v6571
    %v6573 = vcombine.high %v6557, 0.0
    %v6575 = vunpack.c.l.s4 1934713408
    %v6576 = vunpack.c.0.s8 %v6575
    %v6577 = vlaneseq
    %v6578 = vshrl.u32 %v6577, 7
    %v6579 = vsub.s32 %v6576, %v6578
    %v6580 = vrot.slane %v6557, %v6579
    %v6582 = vunpack.c.l.s4 1934713408
    %v6583 = vunpack.c.0.s8 %v6582
    %v6584 = vlaneseq
    %v6585 = vshrl.u32 %v6584, 7
    %v6586 = vsub.s32 %v6583, %v6585
    %v6587 = vrot.slane %v6573, %v6586
    %v6588 = vcombine.high %v6565, 0.0
    %v6589 = vcombine.high %v6572, 0.0
    %v6590 = vcombine.high %v6580, 0.0
    %v6591 = vcombine.high %v6587, 0.0
    %v6593 = vunpack.c.l.s4 1983009808
    %v6594 = vunpack.c.0.s8 %v6593
    %v6595 = vlaneseq
    %v6596 = vshrl.u32 %v6595, 7
    %v6597 = vsub.s32 %v6594, %v6596
    %v6598 = vrot.slane %v6455, %v6597
    %v6599 = vcombine.high %v6598, 0.0
    %v6601 = vunpack.c.l.s4 1934713408
    %v6602 = vunpack.c.0.s8 %v6601
    %v6603 = vlaneseq
    %v6604 = vshrl.u32 %v6603, 7
    %v6605 = vsub.s32 %v6602, %v6604
    %v6606 = vrot.slane %v6598, %v6605
    %v6608 = vunpack.c.l.s4 1934713408
    %v6609 = vunpack.c.0.s8 %v6608
    %v6610 = vlaneseq
    %v6611 = vshrl.u32 %v6610, 7
    %v6612 = vsub.s32 %v6609, %v6611
    %v6613 = vrot.slane %v6599, %v6612
    %v6614 = vcombine.high %v6455, 0.0
    %v6616 = vunpack.c.l.s4 1934713408
    %v6617 = vunpack.c.0.s8 %v6616
    %v6618 = vlaneseq
    %v6619 = vshrl.u32 %v6618, 7
    %v6620 = vsub.s32 %v6617, %v6619
    %v6621 = vrot.slane %v6614, %v6620
    %v6622 = vcombine.high %v6606, 0.0
    %v6623 = vcombine.high %v6613, 0.0
    %v6624 = vcombine.high %v6621, 0.0
    %6627 = vrot.lane.b32.xlu0 %v6506, 14
    %v6628 = vpop.permute.xlu0 %6627
    %6629 = vrot.lane.b32.xlu0 %v6588, 14
    %v6630 = vpop.permute.xlu0 %6629
    %6635 = vrot.lane.b32.xlu0 %v6490, 28
    %v6636 = vpop.permute.xlu0 %6635
    %6637 = vrot.lane.b32.xlu0 %v6572, 28
    %v6638 = vpop.permute.xlu0 %6637
    %6643 = vrot.lane.b32.xlu0 %v6507, 42
    %v6644 = vpop.permute.xlu0 %6643
    %6645 = vrot.lane.b32.xlu0 %v6589, 42
    %v6646 = vpop.permute.xlu0 %6645
    %6651 = vrot.lane.b32.xlu0 %v6498, 56
    %v6652 = vpop.permute.xlu0 %6651
    %6653 = vrot.lane.b32.xlu0 %v6580, 56
    %v6654 = vpop.permute.xlu0 %6653
    %6659 = vrot.lane.b32.xlu0 %v6508, 70
    %v6660 = vpop.permute.xlu0 %6659
    %6661 = vrot.lane.b32.xlu0 %v6590, 70
    %v6662 = vpop.permute.xlu0 %6661
    %6667 = vrot.lane.b32.xlu0 %v6505, 84
    %v6668 = vpop.permute.xlu0 %6667
    %6669 = vrot.lane.b32.xlu0 %v6587, 84
    %v6670 = vpop.permute.xlu0 %6669
    %6675 = vrot.lane.b32.xlu0 %v6509, 98
    %v6676 = vpop.permute.xlu0 %6675
    %6677 = vrot.lane.b32.xlu0 %v6591, 98
    %v6678 = vpop.permute.xlu0 %6677
    %6683 = vrot.lane.b32.xlu0 %v6524, 112
    %v6684 = vpop.permute.xlu0 %6683
    %6685 = vrot.lane.b32.xlu0 %v6606, 112
    %v6686 = vpop.permute.xlu0 %6685
    %6691 = vrot.lane.b32.xlu0 %v6540, 126
    %v6692 = vpop.permute.xlu0 %6691
    %6693 = vrot.lane.b32.xlu0 %v6622, 126
    %v6694 = vpop.permute.xlu0 %6693
    %6699 = vrot.lane.b32.xlu0 %v6531, 12
    %v6700 = vpop.permute.xlu0 %6699
    %6701 = vrot.lane.b32.xlu0 %v6613, 12
    %v6702 = vpop.permute.xlu0 %6701
    %6707 = vrot.lane.b32.xlu0 %v6541, 26
    %v6708 = vpop.permute.xlu0 %6707
    %6709 = vrot.lane.b32.xlu0 %v6623, 26
    %v6710 = vpop.permute.xlu0 %6709
    %6715 = vrot.lane.b32.xlu0 %v6539, 40
    %v6716 = vpop.permute.xlu0 %6715
    %6717 = vrot.lane.b32.xlu0 %v6621, 40
    %v6718 = vpop.permute.xlu0 %6717
    %6723 = vrot.lane.b32.xlu0 %v6542, 54
    %v6724 = vpop.permute.xlu0 %6723
    %6725 = vrot.lane.b32.xlu0 %v6624, 54
    %v6726 = vpop.permute.xlu0 %6725
    %v6729 = vsel %vm310, %v6483, %v6628
    %v6730 = vsel %vm310, %v6565, %v6630
    %v6731 = vsel %vm313, %v6729, %v6636
    %v6732 = vsel %vm313, %v6730, %v6638
    %v6733 = vsel %vm316, %v6731, %v6644
    %v6734 = vsel %vm316, %v6732, %v6646
    %v6735 = vsel %vm319, %v6733, %v6652
    %v6736 = vsel %vm319, %v6734, %v6654
    %v6737 = vsel %vm322, %v6735, %v6660
    %v6738 = vsel %vm322, %v6736, %v6662
    %v6739 = vsel %vm325, %v6737, %v6668
    %v6740 = vsel %vm325, %v6738, %v6670
    %v6741 = vsel %vm328, %v6739, %v6676
    %v6742 = vsel %vm328, %v6740, %v6678
    %v6743 = vsel %vm331, %v6741, %v6684
    %v6744 = vsel %vm331, %v6742, %v6686
    %v6745 = vsel %vm334, %v6743, %v6692
    %v6746 = vsel %vm334, %v6744, %v6694
    %v6747 = vsel %vm337, %v6692, %v6700
    %v6748 = vsel %vm337, %v6694, %v6702
    %v6749 = vsel %vm340, %v6747, %v6708
    %v6750 = vsel %vm340, %v6748, %v6710
    %v6751 = vsel %vm343, %v6749, %v6716
    %v6752 = vsel %vm343, %v6750, %v6718
    %v6753 = vsel %vm346, %v6751, %v6724
    %v6754 = vsel %vm346, %v6752, %v6726
    %6755 = vrot.lane.b32.xlu0 %v6453, 127
    %v6756 = vpop.permute.xlu0 %6755
    %6757 = vrot.lane.b32.xlu0 %v6452, 127
    %v6758 = vpop.permute.xlu0 %6757
    %6759 = vrot.lane.b32.xlu0 %v6456, 127
    %v6760 = vpop.permute.xlu0 %6759
    %6761 = vrot.lane.b32.xlu0 %v6455, 127
    %v6762 = vpop.permute.xlu0 %6761
    %v6767 = vcombine.high %v6756, 0.0
    %v6769 = vunpack.c.l.s4 1983009808
    %v6770 = vunpack.c.0.s8 %v6769
    %v6771 = vlaneseq
    %v6772 = vshrl.u32 %v6771, 7
    %v6773 = vsub.s32 %v6770, %v6772
    %v6774 = vrot.slane %v6756, %v6773
    %v6776 = vunpack.c.l.s4 1983009808
    %v6777 = vunpack.c.0.s8 %v6776
    %v6778 = vlaneseq
    %v6779 = vshrl.u32 %v6778, 7
    %v6780 = vsub.s32 %v6777, %v6779
    %v6781 = vrot.slane %v6767, %v6780
    %v6782 = vcombine.high %v6774, 0.0
    %v6784 = vunpack.c.l.s4 1934713408
    %v6785 = vunpack.c.0.s8 %v6784
    %v6786 = vlaneseq
    %v6787 = vshrl.u32 %v6786, 7
    %v6788 = vsub.s32 %v6785, %v6787
    %v6789 = vrot.slane %v6774, %v6788
    %v6791 = vunpack.c.l.s4 1934713408
    %v6792 = vunpack.c.0.s8 %v6791
    %v6793 = vlaneseq
    %v6794 = vshrl.u32 %v6793, 7
    %v6795 = vsub.s32 %v6792, %v6794
    %v6796 = vrot.slane %v6782, %v6795
    %v6797 = vcombine.high %v6781, 0.0
    %v6799 = vunpack.c.l.s4 1934713408
    %v6800 = vunpack.c.0.s8 %v6799
    %v6801 = vlaneseq
    %v6802 = vshrl.u32 %v6801, 7
    %v6803 = vsub.s32 %v6800, %v6802
    %v6804 = vrot.slane %v6781, %v6803
    %v6806 = vunpack.c.l.s4 1934713408
    %v6807 = vunpack.c.0.s8 %v6806
    %v6808 = vlaneseq
    %v6809 = vshrl.u32 %v6808, 7
    %v6810 = vsub.s32 %v6807, %v6809
    %v6811 = vrot.slane %v6797, %v6810
    %v6812 = vcombine.high %v6789, 0.0
    %v6813 = vcombine.high %v6796, 0.0
    %v6814 = vcombine.high %v6804, 0.0
    %v6815 = vcombine.high %v6811, 0.0
    %v6817 = vunpack.c.l.s4 1983009808
    %v6818 = vunpack.c.0.s8 %v6817
    %v6819 = vlaneseq
    %v6820 = vshrl.u32 %v6819, 7
    %v6821 = vsub.s32 %v6818, %v6820
    %v6822 = vrot.slane %v6758, %v6821
    %v6823 = vcombine.high %v6822, 0.0
    %v6825 = vunpack.c.l.s4 1934713408
    %v6826 = vunpack.c.0.s8 %v6825
    %v6827 = vlaneseq
    %v6828 = vshrl.u32 %v6827, 7
    %v6829 = vsub.s32 %v6826, %v6828
    %v6830 = vrot.slane %v6822, %v6829
    %v6832 = vunpack.c.l.s4 1934713408
    %v6833 = vunpack.c.0.s8 %v6832
    %v6834 = vlaneseq
    %v6835 = vshrl.u32 %v6834, 7
    %v6836 = vsub.s32 %v6833, %v6835
    %v6837 = vrot.slane %v6823, %v6836
    %v6838 = vcombine.high %v6758, 0.0
    %v6840 = vunpack.c.l.s4 1934713408
    %v6841 = vunpack.c.0.s8 %v6840
    %v6842 = vlaneseq
    %v6843 = vshrl.u32 %v6842, 7
    %v6844 = vsub.s32 %v6841, %v6843
    %v6845 = vrot.slane %v6838, %v6844
    %v6846 = vcombine.high %v6830, 0.0
    %v6847 = vcombine.high %v6837, 0.0
    %v6848 = vcombine.high %v6845, 0.0
    %v6849 = vcombine.high %v6760, 0.0
    %v6851 = vunpack.c.l.s4 1983009808
    %v6852 = vunpack.c.0.s8 %v6851
    %v6853 = vlaneseq
    %v6854 = vshrl.u32 %v6853, 7
    %v6855 = vsub.s32 %v6852, %v6854
    %v6856 = vrot.slane %v6760, %v6855
    %v6858 = vunpack.c.l.s4 1983009808
    %v6859 = vunpack.c.0.s8 %v6858
    %v6860 = vlaneseq
    %v6861 = vshrl.u32 %v6860, 7
    %v6862 = vsub.s32 %v6859, %v6861
    %v6863 = vrot.slane %v6849, %v6862
    %v6864 = vcombine.high %v6856, 0.0
    %v6866 = vunpack.c.l.s4 1934713408
    %v6867 = vunpack.c.0.s8 %v6866
    %v6868 = vlaneseq
    %v6869 = vshrl.u32 %v6868, 7
    %v6870 = vsub.s32 %v6867, %v6869
    %v6871 = vrot.slane %v6856, %v6870
    %v6873 = vunpack.c.l.s4 1934713408
    %v6874 = vunpack.c.0.s8 %v6873
    %v6875 = vlaneseq
    %v6876 = vshrl.u32 %v6875, 7
    %v6877 = vsub.s32 %v6874, %v6876
    %v6878 = vrot.slane %v6864, %v6877
    %v6879 = vcombine.high %v6863, 0.0
    %v6881 = vunpack.c.l.s4 1934713408
    %v6882 = vunpack.c.0.s8 %v6881
    %v6883 = vlaneseq
    %v6884 = vshrl.u32 %v6883, 7
    %v6885 = vsub.s32 %v6882, %v6884
    %v6886 = vrot.slane %v6863, %v6885
    %v6888 = vunpack.c.l.s4 1934713408
    %v6889 = vunpack.c.0.s8 %v6888
    %v6890 = vlaneseq
    %v6891 = vshrl.u32 %v6890, 7
    %v6892 = vsub.s32 %v6889, %v6891
    %v6893 = vrot.slane %v6879, %v6892
    %v6894 = vcombine.high %v6871, 0.0
    %v6895 = vcombine.high %v6878, 0.0
    %v6896 = vcombine.high %v6886, 0.0
    %v6897 = vcombine.high %v6893, 0.0
    %v6899 = vunpack.c.l.s4 1983009808
    %v6900 = vunpack.c.0.s8 %v6899
    %v6901 = vlaneseq
    %v6902 = vshrl.u32 %v6901, 7
    %v6903 = vsub.s32 %v6900, %v6902
    %v6904 = vrot.slane %v6762, %v6903
    %v6905 = vcombine.high %v6904, 0.0
    %v6907 = vunpack.c.l.s4 1934713408
    %v6908 = vunpack.c.0.s8 %v6907
    %v6909 = vlaneseq
    %v6910 = vshrl.u32 %v6909, 7
    %v6911 = vsub.s32 %v6908, %v6910
    %v6912 = vrot.slane %v6904, %v6911
    %v6914 = vunpack.c.l.s4 1934713408
    %v6915 = vunpack.c.0.s8 %v6914
    %v6916 = vlaneseq
    %v6917 = vshrl.u32 %v6916, 7
    %v6918 = vsub.s32 %v6915, %v6917
    %v6919 = vrot.slane %v6905, %v6918
    %v6920 = vcombine.high %v6762, 0.0
    %v6922 = vunpack.c.l.s4 1934713408
    %v6923 = vunpack.c.0.s8 %v6922
    %v6924 = vlaneseq
    %v6925 = vshrl.u32 %v6924, 7
    %v6926 = vsub.s32 %v6923, %v6925
    %v6927 = vrot.slane %v6920, %v6926
    %v6928 = vcombine.high %v6912, 0.0
    %v6929 = vcombine.high %v6919, 0.0
    %v6930 = vcombine.high %v6927, 0.0
    %6933 = vrot.lane.b32.xlu0 %v6812, 14
    %v6934 = vpop.permute.xlu0 %6933
    %6935 = vrot.lane.b32.xlu0 %v6894, 14
    %v6936 = vpop.permute.xlu0 %6935
    %6941 = vrot.lane.b32.xlu0 %v6796, 28
    %v6942 = vpop.permute.xlu0 %6941
    %6943 = vrot.lane.b32.xlu0 %v6878, 28
    %v6944 = vpop.permute.xlu0 %6943
    %6949 = vrot.lane.b32.xlu0 %v6813, 42
    %v6950 = vpop.permute.xlu0 %6949
    %6951 = vrot.lane.b32.xlu0 %v6895, 42
    %v6952 = vpop.permute.xlu0 %6951
    %6957 = vrot.lane.b32.xlu0 %v6804, 56
    %v6958 = vpop.permute.xlu0 %6957
    %6959 = vrot.lane.b32.xlu0 %v6886, 56
    %v6960 = vpop.permute.xlu0 %6959
    %6965 = vrot.lane.b32.xlu0 %v6814, 70
    %v6966 = vpop.permute.xlu0 %6965
    %6967 = vrot.lane.b32.xlu0 %v6896, 70
    %v6968 = vpop.permute.xlu0 %6967
    %6973 = vrot.lane.b32.xlu0 %v6811, 84
    %v6974 = vpop.permute.xlu0 %6973
    %6975 = vrot.lane.b32.xlu0 %v6893, 84
    %v6976 = vpop.permute.xlu0 %6975
    %6981 = vrot.lane.b32.xlu0 %v6815, 98
    %v6982 = vpop.permute.xlu0 %6981
    %6983 = vrot.lane.b32.xlu0 %v6897, 98
    %v6984 = vpop.permute.xlu0 %6983
    %6989 = vrot.lane.b32.xlu0 %v6830, 112
    %v6990 = vpop.permute.xlu0 %6989
    %6991 = vrot.lane.b32.xlu0 %v6912, 112
    %v6992 = vpop.permute.xlu0 %6991
    %6997 = vrot.lane.b32.xlu0 %v6846, 126
    %v6998 = vpop.permute.xlu0 %6997
    %6999 = vrot.lane.b32.xlu0 %v6928, 126
    %v7000 = vpop.permute.xlu0 %6999
    %7005 = vrot.lane.b32.xlu0 %v6837, 12
    %v7006 = vpop.permute.xlu0 %7005
    %7007 = vrot.lane.b32.xlu0 %v6919, 12
    %v7008 = vpop.permute.xlu0 %7007
    %7013 = vrot.lane.b32.xlu0 %v6847, 26
    %v7014 = vpop.permute.xlu0 %7013
    %7015 = vrot.lane.b32.xlu0 %v6929, 26
    %v7016 = vpop.permute.xlu0 %7015
    %7021 = vrot.lane.b32.xlu0 %v6845, 40
    %v7022 = vpop.permute.xlu0 %7021
    %7023 = vrot.lane.b32.xlu0 %v6927, 40
    %v7024 = vpop.permute.xlu0 %7023
    %7029 = vrot.lane.b32.xlu0 %v6848, 54
    %v7030 = vpop.permute.xlu0 %7029
    %7031 = vrot.lane.b32.xlu0 %v6930, 54
    %v7032 = vpop.permute.xlu0 %7031
    %v7035 = vsel %vm310, %v6789, %v6934
    %v7036 = vsel %vm310, %v6871, %v6936
    %v7037 = vsel %vm313, %v7035, %v6942
    %v7038 = vsel %vm313, %v7036, %v6944
    %v7039 = vsel %vm316, %v7037, %v6950
    %v7040 = vsel %vm316, %v7038, %v6952
    %v7041 = vsel %vm319, %v7039, %v6958
    %v7042 = vsel %vm319, %v7040, %v6960
    %v7043 = vsel %vm322, %v7041, %v6966
    %v7044 = vsel %vm322, %v7042, %v6968
    %v7045 = vsel %vm325, %v7043, %v6974
    %v7046 = vsel %vm325, %v7044, %v6976
    %v7047 = vsel %vm328, %v7045, %v6982
    %v7048 = vsel %vm328, %v7046, %v6984
    %v7049 = vsel %vm331, %v7047, %v6990
    %v7050 = vsel %vm331, %v7048, %v6992
    %v7051 = vsel %vm334, %v7049, %v6998
    %v7052 = vsel %vm334, %v7050, %v7000
    %v7053 = vsel %vm337, %v6998, %v7006
    %v7054 = vsel %vm337, %v7000, %v7008
    %v7055 = vsel %vm340, %v7053, %v7014
    %v7056 = vsel %vm340, %v7054, %v7016
    %v7057 = vsel %vm343, %v7055, %v7022
    %v7058 = vsel %vm343, %v7056, %v7024
    %v7059 = vsel %vm346, %v7057, %v7030
    %v7060 = vsel %vm346, %v7058, %v7032
    %7061 = vrot.lane.b32.xlu0 %v6453, 126
    %v7062 = vpop.permute.xlu0 %7061
    %7063 = vrot.lane.b32.xlu0 %v6452, 126
    %v7064 = vpop.permute.xlu0 %7063
    %7065 = vrot.lane.b32.xlu0 %v6456, 126
    %v7066 = vpop.permute.xlu0 %7065
    %7067 = vrot.lane.b32.xlu0 %v6455, 126
    %v7068 = vpop.permute.xlu0 %7067
    %v7073 = vcombine.high %v7062, 0.0
    %v7075 = vunpack.c.l.s4 1983009808
    %v7076 = vunpack.c.0.s8 %v7075
    %v7077 = vlaneseq
    %v7078 = vshrl.u32 %v7077, 7
    %v7079 = vsub.s32 %v7076, %v7078
    %v7080 = vrot.slane %v7062, %v7079
    %v7082 = vunpack.c.l.s4 1983009808
    %v7083 = vunpack.c.0.s8 %v7082
    %v7084 = vlaneseq
    %v7085 = vshrl.u32 %v7084, 7
    %v7086 = vsub.s32 %v7083, %v7085
    %v7087 = vrot.slane %v7073, %v7086
    %v7088 = vcombine.high %v7080, 0.0
    %v7090 = vunpack.c.l.s4 1934713408
    %v7091 = vunpack.c.0.s8 %v7090
    %v7092 = vlaneseq
    %v7093 = vshrl.u32 %v7092, 7
    %v7094 = vsub.s32 %v7091, %v7093
    %v7095 = vrot.slane %v7080, %v7094
    %v7097 = vunpack.c.l.s4 1934713408
    %v7098 = vunpack.c.0.s8 %v7097
    %v7099 = vlaneseq
    %v7100 = vshrl.u32 %v7099, 7
    %v7101 = vsub.s32 %v7098, %v7100
    %v7102 = vrot.slane %v7088, %v7101
    %v7103 = vcombine.high %v7087, 0.0
    %v7105 = vunpack.c.l.s4 1934713408
    %v7106 = vunpack.c.0.s8 %v7105
    %v7107 = vlaneseq
    %v7108 = vshrl.u32 %v7107, 7
    %v7109 = vsub.s32 %v7106, %v7108
    %v7110 = vrot.slane %v7087, %v7109
    %v7112 = vunpack.c.l.s4 1934713408
    %v7113 = vunpack.c.0.s8 %v7112
    %v7114 = vlaneseq
    %v7115 = vshrl.u32 %v7114, 7
    %v7116 = vsub.s32 %v7113, %v7115
    %v7117 = vrot.slane %v7103, %v7116
    %v7118 = vcombine.high %v7095, 0.0
    %v7119 = vcombine.high %v7102, 0.0
    %v7120 = vcombine.high %v7110, 0.0
    %v7121 = vcombine.high %v7117, 0.0
    %v7123 = vunpack.c.l.s4 1983009808
    %v7124 = vunpack.c.0.s8 %v7123
    %v7125 = vlaneseq
    %v7126 = vshrl.u32 %v7125, 7
    %v7127 = vsub.s32 %v7124, %v7126
    %v7128 = vrot.slane %v7064, %v7127
    %v7129 = vcombine.high %v7128, 0.0
    %v7131 = vunpack.c.l.s4 1934713408
    %v7132 = vunpack.c.0.s8 %v7131
    %v7133 = vlaneseq
    %v7134 = vshrl.u32 %v7133, 7
    %v7135 = vsub.s32 %v7132, %v7134
    %v7136 = vrot.slane %v7128, %v7135
    %v7138 = vunpack.c.l.s4 1934713408
    %v7139 = vunpack.c.0.s8 %v7138
    %v7140 = vlaneseq
    %v7141 = vshrl.u32 %v7140, 7
    %v7142 = vsub.s32 %v7139, %v7141
    %v7143 = vrot.slane %v7129, %v7142
    %v7144 = vcombine.high %v7064, 0.0
    %v7146 = vunpack.c.l.s4 1934713408
    %v7147 = vunpack.c.0.s8 %v7146
    %v7148 = vlaneseq
    %v7149 = vshrl.u32 %v7148, 7
    %v7150 = vsub.s32 %v7147, %v7149
    %v7151 = vrot.slane %v7144, %v7150
    %v7152 = vcombine.high %v7136, 0.0
    %v7153 = vcombine.high %v7143, 0.0
    %v7154 = vcombine.high %v7151, 0.0
    %v7155 = vcombine.high %v7066, 0.0
    %v7157 = vunpack.c.l.s4 1983009808
    %v7158 = vunpack.c.0.s8 %v7157
    %v7159 = vlaneseq
    %v7160 = vshrl.u32 %v7159, 7
    %v7161 = vsub.s32 %v7158, %v7160
    %v7162 = vrot.slane %v7066, %v7161
    %v7164 = vunpack.c.l.s4 1983009808
    %v7165 = vunpack.c.0.s8 %v7164
    %v7166 = vlaneseq
    %v7167 = vshrl.u32 %v7166, 7
    %v7168 = vsub.s32 %v7165, %v7167
    %v7169 = vrot.slane %v7155, %v7168
    %v7170 = vcombine.high %v7162, 0.0
    %v7172 = vunpack.c.l.s4 1934713408
    %v7173 = vunpack.c.0.s8 %v7172
    %v7174 = vlaneseq
    %v7175 = vshrl.u32 %v7174, 7
    %v7176 = vsub.s32 %v7173, %v7175
    %v7177 = vrot.slane %v7162, %v7176
    %v7179 = vunpack.c.l.s4 1934713408
    %v7180 = vunpack.c.0.s8 %v7179
    %v7181 = vlaneseq
    %v7182 = vshrl.u32 %v7181, 7
    %v7183 = vsub.s32 %v7180, %v7182
    %v7184 = vrot.slane %v7170, %v7183
    %v7185 = vcombine.high %v7169, 0.0
    %v7187 = vunpack.c.l.s4 1934713408
    %v7188 = vunpack.c.0.s8 %v7187
    %v7189 = vlaneseq
    %v7190 = vshrl.u32 %v7189, 7
    %v7191 = vsub.s32 %v7188, %v7190
    %v7192 = vrot.slane %v7169, %v7191
    %v7194 = vunpack.c.l.s4 1934713408
    %v7195 = vunpack.c.0.s8 %v7194
    %v7196 = vlaneseq
    %v7197 = vshrl.u32 %v7196, 7
    %v7198 = vsub.s32 %v7195, %v7197
    %v7199 = vrot.slane %v7185, %v7198
    %v7200 = vcombine.high %v7177, 0.0
    %v7201 = vcombine.high %v7184, 0.0
    %v7202 = vcombine.high %v7192, 0.0
    %v7203 = vcombine.high %v7199, 0.0
    %v7205 = vunpack.c.l.s4 1983009808
    %v7206 = vunpack.c.0.s8 %v7205
    %v7207 = vlaneseq
    %v7208 = vshrl.u32 %v7207, 7
    %v7209 = vsub.s32 %v7206, %v7208
    %v7210 = vrot.slane %v7068, %v7209
    %v7211 = vcombine.high %v7210, 0.0
    %v7213 = vunpack.c.l.s4 1934713408
    %v7214 = vunpack.c.0.s8 %v7213
    %v7215 = vlaneseq
    %v7216 = vshrl.u32 %v7215, 7
    %v7217 = vsub.s32 %v7214, %v7216
    %v7218 = vrot.slane %v7210, %v7217
    %v7220 = vunpack.c.l.s4 1934713408
    %v7221 = vunpack.c.0.s8 %v7220
    %v7222 = vlaneseq
    %v7223 = vshrl.u32 %v7222, 7
    %v7224 = vsub.s32 %v7221, %v7223
    %v7225 = vrot.slane %v7211, %v7224
    %v7226 = vcombine.high %v7068, 0.0
    %v7228 = vunpack.c.l.s4 1934713408
    %v7229 = vunpack.c.0.s8 %v7228
    %v7230 = vlaneseq
    %v7231 = vshrl.u32 %v7230, 7
    %v7232 = vsub.s32 %v7229, %v7231
    %v7233 = vrot.slane %v7226, %v7232
    %v7234 = vcombine.high %v7218, 0.0
    %v7235 = vcombine.high %v7225, 0.0
    %v7236 = vcombine.high %v7233, 0.0
    %7239 = vrot.lane.b32.xlu0 %v7118, 14
    %v7240 = vpop.permute.xlu0 %7239
    %7241 = vrot.lane.b32.xlu0 %v7200, 14
    %v7242 = vpop.permute.xlu0 %7241
    %7247 = vrot.lane.b32.xlu0 %v7102, 28
    %v7248 = vpop.permute.xlu0 %7247
    %7249 = vrot.lane.b32.xlu0 %v7184, 28
    %v7250 = vpop.permute.xlu0 %7249
    %7255 = vrot.lane.b32.xlu0 %v7119, 42
    %v7256 = vpop.permute.xlu0 %7255
    %7257 = vrot.lane.b32.xlu0 %v7201, 42
    %v7258 = vpop.permute.xlu0 %7257
    %7263 = vrot.lane.b32.xlu0 %v7110, 56
    %v7264 = vpop.permute.xlu0 %7263
    %7265 = vrot.lane.b32.xlu0 %v7192, 56
    %v7266 = vpop.permute.xlu0 %7265
    %7271 = vrot.lane.b32.xlu0 %v7120, 70
    %v7272 = vpop.permute.xlu0 %7271
    %7273 = vrot.lane.b32.xlu0 %v7202, 70
    %v7274 = vpop.permute.xlu0 %7273
    %7279 = vrot.lane.b32.xlu0 %v7117, 84
    %v7280 = vpop.permute.xlu0 %7279
    %7281 = vrot.lane.b32.xlu0 %v7199, 84
    %v7282 = vpop.permute.xlu0 %7281
    %7287 = vrot.lane.b32.xlu0 %v7121, 98
    %v7288 = vpop.permute.xlu0 %7287
    %7289 = vrot.lane.b32.xlu0 %v7203, 98
    %v7290 = vpop.permute.xlu0 %7289
    %7295 = vrot.lane.b32.xlu0 %v7136, 112
    %v7296 = vpop.permute.xlu0 %7295
    %7297 = vrot.lane.b32.xlu0 %v7218, 112
    %v7298 = vpop.permute.xlu0 %7297
    %7303 = vrot.lane.b32.xlu0 %v7152, 126
    %v7304 = vpop.permute.xlu0 %7303
    %7305 = vrot.lane.b32.xlu0 %v7234, 126
    %v7306 = vpop.permute.xlu0 %7305
    %7311 = vrot.lane.b32.xlu0 %v7143, 12
    %v7312 = vpop.permute.xlu0 %7311
    %7313 = vrot.lane.b32.xlu0 %v7225, 12
    %v7314 = vpop.permute.xlu0 %7313
    %7319 = vrot.lane.b32.xlu0 %v7153, 26
    %v7320 = vpop.permute.xlu0 %7319
    %7321 = vrot.lane.b32.xlu0 %v7235, 26
    %v7322 = vpop.permute.xlu0 %7321
    %7327 = vrot.lane.b32.xlu0 %v7151, 40
    %v7328 = vpop.permute.xlu0 %7327
    %7329 = vrot.lane.b32.xlu0 %v7233, 40
    %v7330 = vpop.permute.xlu0 %7329
    %7335 = vrot.lane.b32.xlu0 %v7154, 54
    %v7336 = vpop.permute.xlu0 %7335
    %7337 = vrot.lane.b32.xlu0 %v7236, 54
    %v7338 = vpop.permute.xlu0 %7337
    %v7341 = vsel %vm310, %v7095, %v7240
    %v7342 = vsel %vm310, %v7177, %v7242
    %v7343 = vsel %vm313, %v7341, %v7248
    %v7344 = vsel %vm313, %v7342, %v7250
    %v7345 = vsel %vm316, %v7343, %v7256
    %v7346 = vsel %vm316, %v7344, %v7258
    %v7347 = vsel %vm319, %v7345, %v7264
    %v7348 = vsel %vm319, %v7346, %v7266
    %v7349 = vsel %vm322, %v7347, %v7272
    %v7350 = vsel %vm322, %v7348, %v7274
    %v7351 = vsel %vm325, %v7349, %v7280
    %v7352 = vsel %vm325, %v7350, %v7282
    %v7353 = vsel %vm328, %v7351, %v7288
    %v7354 = vsel %vm328, %v7352, %v7290
    %v7355 = vsel %vm331, %v7353, %v7296
    %v7356 = vsel %vm331, %v7354, %v7298
    %v7357 = vsel %vm334, %v7355, %v7304
    %v7358 = vsel %vm334, %v7356, %v7306
    %v7359 = vsel %vm337, %v7304, %v7312
    %v7360 = vsel %vm337, %v7306, %v7314
    %v7361 = vsel %vm340, %v7359, %v7320
    %v7362 = vsel %vm340, %v7360, %v7322
    %v7363 = vsel %vm343, %v7361, %v7328
    %v7364 = vsel %vm343, %v7362, %v7330
    %v7365 = vsel %vm346, %v7363, %v7336
    %v7366 = vsel %vm346, %v7364, %v7338
    %v7367 = vrot.slane %v32, 2
    %v7368 = vrot.slane %v33, 2
    %v7369 = vsel %vm1882, %v7367, %v7368
    %v7370 = vrot.slane %v38, 2
    %v7371 = vrot.slane %v39, 2
    %v7372 = vsel %vm1882, %v7370, %v7371
    %v7377 = vcombine.high %v7369, 0.0
    %v7379 = vunpack.c.l.s4 1983009808
    %v7380 = vunpack.c.0.s8 %v7379
    %v7381 = vlaneseq
    %v7382 = vshrl.u32 %v7381, 7
    %v7383 = vsub.s32 %v7380, %v7382
    %v7384 = vrot.slane %v7369, %v7383
    %v7386 = vunpack.c.l.s4 1983009808
    %v7387 = vunpack.c.0.s8 %v7386
    %v7388 = vlaneseq
    %v7389 = vshrl.u32 %v7388, 7
    %v7390 = vsub.s32 %v7387, %v7389
    %v7391 = vrot.slane %v7377, %v7390
    %v7392 = vcombine.high %v7384, 0.0
    %v7394 = vunpack.c.l.s4 1934713408
    %v7395 = vunpack.c.0.s8 %v7394
    %v7396 = vlaneseq
    %v7397 = vshrl.u32 %v7396, 7
    %v7398 = vsub.s32 %v7395, %v7397
    %v7399 = vrot.slane %v7384, %v7398
    %v7401 = vunpack.c.l.s4 1934713408
    %v7402 = vunpack.c.0.s8 %v7401
    %v7403 = vlaneseq
    %v7404 = vshrl.u32 %v7403, 7
    %v7405 = vsub.s32 %v7402, %v7404
    %v7406 = vrot.slane %v7392, %v7405
    %v7407 = vcombine.high %v7391, 0.0
    %v7409 = vunpack.c.l.s4 1934713408
    %v7410 = vunpack.c.0.s8 %v7409
    %v7411 = vlaneseq
    %v7412 = vshrl.u32 %v7411, 7
    %v7413 = vsub.s32 %v7410, %v7412
    %v7414 = vrot.slane %v7391, %v7413
    %v7416 = vunpack.c.l.s4 1934713408
    %v7417 = vunpack.c.0.s8 %v7416
    %v7418 = vlaneseq
    %v7419 = vshrl.u32 %v7418, 7
    %v7420 = vsub.s32 %v7417, %v7419
    %v7421 = vrot.slane %v7407, %v7420
    %v7422 = vcombine.high %v7399, 0.0
    %v7423 = vcombine.high %v7406, 0.0
    %v7424 = vcombine.high %v7414, 0.0
    %v7425 = vcombine.high %v7421, 0.0
    %v7427 = vunpack.c.l.s4 1983009808
    %v7428 = vunpack.c.0.s8 %v7427
    %v7429 = vlaneseq
    %v7430 = vshrl.u32 %v7429, 7
    %v7431 = vsub.s32 %v7428, %v7430
    %v7432 = vrot.slane %v7368, %v7431
    %v7433 = vcombine.high %v7432, 0.0
    %v7435 = vunpack.c.l.s4 1934713408
    %v7436 = vunpack.c.0.s8 %v7435
    %v7437 = vlaneseq
    %v7438 = vshrl.u32 %v7437, 7
    %v7439 = vsub.s32 %v7436, %v7438
    %v7440 = vrot.slane %v7432, %v7439
    %v7442 = vunpack.c.l.s4 1934713408
    %v7443 = vunpack.c.0.s8 %v7442
    %v7444 = vlaneseq
    %v7445 = vshrl.u32 %v7444, 7
    %v7446 = vsub.s32 %v7443, %v7445
    %v7447 = vrot.slane %v7433, %v7446
    %v7448 = vcombine.high %v7368, 0.0
    %v7450 = vunpack.c.l.s4 1934713408
    %v7451 = vunpack.c.0.s8 %v7450
    %v7452 = vlaneseq
    %v7453 = vshrl.u32 %v7452, 7
    %v7454 = vsub.s32 %v7451, %v7453
    %v7455 = vrot.slane %v7448, %v7454
    %v7456 = vcombine.high %v7440, 0.0
    %v7457 = vcombine.high %v7447, 0.0
    %v7458 = vcombine.high %v7455, 0.0
    %v7459 = vcombine.high %v7372, 0.0
    %v7461 = vunpack.c.l.s4 1983009808
    %v7462 = vunpack.c.0.s8 %v7461
    %v7463 = vlaneseq
    %v7464 = vshrl.u32 %v7463, 7
    %v7465 = vsub.s32 %v7462, %v7464
    %v7466 = vrot.slane %v7372, %v7465
    %v7468 = vunpack.c.l.s4 1983009808
    %v7469 = vunpack.c.0.s8 %v7468
    %v7470 = vlaneseq
    %v7471 = vshrl.u32 %v7470, 7
    %v7472 = vsub.s32 %v7469, %v7471
    %v7473 = vrot.slane %v7459, %v7472
    %v7474 = vcombine.high %v7466, 0.0
    %v7476 = vunpack.c.l.s4 1934713408
    %v7477 = vunpack.c.0.s8 %v7476
    %v7478 = vlaneseq
    %v7479 = vshrl.u32 %v7478, 7
    %v7480 = vsub.s32 %v7477, %v7479
    %v7481 = vrot.slane %v7466, %v7480
    %v7483 = vunpack.c.l.s4 1934713408
    %v7484 = vunpack.c.0.s8 %v7483
    %v7485 = vlaneseq
    %v7486 = vshrl.u32 %v7485, 7
    %v7487 = vsub.s32 %v7484, %v7486
    %v7488 = vrot.slane %v7474, %v7487
    %v7489 = vcombine.high %v7473, 0.0
    %v7491 = vunpack.c.l.s4 1934713408
    %v7492 = vunpack.c.0.s8 %v7491
    %v7493 = vlaneseq
    %v7494 = vshrl.u32 %v7493, 7
    %v7495 = vsub.s32 %v7492, %v7494
    %v7496 = vrot.slane %v7473, %v7495
    %v7498 = vunpack.c.l.s4 1934713408
    %v7499 = vunpack.c.0.s8 %v7498
    %v7500 = vlaneseq
    %v7501 = vshrl.u32 %v7500, 7
    %v7502 = vsub.s32 %v7499, %v7501
    %v7503 = vrot.slane %v7489, %v7502
    %v7504 = vcombine.high %v7481, 0.0
    %v7505 = vcombine.high %v7488, 0.0
    %v7506 = vcombine.high %v7496, 0.0
    %v7507 = vcombine.high %v7503, 0.0
    %v7509 = vunpack.c.l.s4 1983009808
    %v7510 = vunpack.c.0.s8 %v7509
    %v7511 = vlaneseq
    %v7512 = vshrl.u32 %v7511, 7
    %v7513 = vsub.s32 %v7510, %v7512
    %v7514 = vrot.slane %v7371, %v7513
    %v7515 = vcombine.high %v7514, 0.0
    %v7517 = vunpack.c.l.s4 1934713408
    %v7518 = vunpack.c.0.s8 %v7517
    %v7519 = vlaneseq
    %v7520 = vshrl.u32 %v7519, 7
    %v7521 = vsub.s32 %v7518, %v7520
    %v7522 = vrot.slane %v7514, %v7521
    %v7524 = vunpack.c.l.s4 1934713408
    %v7525 = vunpack.c.0.s8 %v7524
    %v7526 = vlaneseq
    %v7527 = vshrl.u32 %v7526, 7
    %v7528 = vsub.s32 %v7525, %v7527
    %v7529 = vrot.slane %v7515, %v7528
    %v7530 = vcombine.high %v7371, 0.0
    %v7532 = vunpack.c.l.s4 1934713408
    %v7533 = vunpack.c.0.s8 %v7532
    %v7534 = vlaneseq
    %v7535 = vshrl.u32 %v7534, 7
    %v7536 = vsub.s32 %v7533, %v7535
    %v7537 = vrot.slane %v7530, %v7536
    %v7538 = vcombine.high %v7522, 0.0
    %v7539 = vcombine.high %v7529, 0.0
    %v7540 = vcombine.high %v7537, 0.0
    %7543 = vrot.lane.b32.xlu0 %v7422, 14
    %v7544 = vpop.permute.xlu0 %7543
    %7545 = vrot.lane.b32.xlu0 %v7504, 14
    %v7546 = vpop.permute.xlu0 %7545
    %7551 = vrot.lane.b32.xlu0 %v7406, 28
    %v7552 = vpop.permute.xlu0 %7551
    %7553 = vrot.lane.b32.xlu0 %v7488, 28
    %v7554 = vpop.permute.xlu0 %7553
    %7559 = vrot.lane.b32.xlu0 %v7423, 42
    %v7560 = vpop.permute.xlu0 %7559
    %7561 = vrot.lane.b32.xlu0 %v7505, 42
    %v7562 = vpop.permute.xlu0 %7561
    %7567 = vrot.lane.b32.xlu0 %v7414, 56
    %v7568 = vpop.permute.xlu0 %7567
    %7569 = vrot.lane.b32.xlu0 %v7496, 56
    %v7570 = vpop.permute.xlu0 %7569
    %7575 = vrot.lane.b32.xlu0 %v7424, 70
    %v7576 = vpop.permute.xlu0 %7575
    %7577 = vrot.lane.b32.xlu0 %v7506, 70
    %v7578 = vpop.permute.xlu0 %7577
    %7583 = vrot.lane.b32.xlu0 %v7421, 84
    %v7584 = vpop.permute.xlu0 %7583
    %7585 = vrot.lane.b32.xlu0 %v7503, 84
    %v7586 = vpop.permute.xlu0 %7585
    %7591 = vrot.lane.b32.xlu0 %v7425, 98
    %v7592 = vpop.permute.xlu0 %7591
    %7593 = vrot.lane.b32.xlu0 %v7507, 98
    %v7594 = vpop.permute.xlu0 %7593
    %7599 = vrot.lane.b32.xlu0 %v7440, 112
    %v7600 = vpop.permute.xlu0 %7599
    %7601 = vrot.lane.b32.xlu0 %v7522, 112
    %v7602 = vpop.permute.xlu0 %7601
    %7607 = vrot.lane.b32.xlu0 %v7456, 126
    %v7608 = vpop.permute.xlu0 %7607
    %7609 = vrot.lane.b32.xlu0 %v7538, 126
    %v7610 = vpop.permute.xlu0 %7609
    %7615 = vrot.lane.b32.xlu0 %v7447, 12
    %v7616 = vpop.permute.xlu0 %7615
    %7617 = vrot.lane.b32.xlu0 %v7529, 12
    %v7618 = vpop.permute.xlu0 %7617
    %7623 = vrot.lane.b32.xlu0 %v7457, 26
    %v7624 = vpop.permute.xlu0 %7623
    %7625 = vrot.lane.b32.xlu0 %v7539, 26
    %v7626 = vpop.permute.xlu0 %7625
    %7631 = vrot.lane.b32.xlu0 %v7455, 40
    %v7632 = vpop.permute.xlu0 %7631
    %7633 = vrot.lane.b32.xlu0 %v7537, 40
    %v7634 = vpop.permute.xlu0 %7633
    %7639 = vrot.lane.b32.xlu0 %v7458, 54
    %v7640 = vpop.permute.xlu0 %7639
    %7641 = vrot.lane.b32.xlu0 %v7540, 54
    %v7642 = vpop.permute.xlu0 %7641
    %v7645 = vsel %vm310, %v7399, %v7544
    %v7646 = vsel %vm310, %v7481, %v7546
    %v7647 = vsel %vm313, %v7645, %v7552
    %v7648 = vsel %vm313, %v7646, %v7554
    %v7649 = vsel %vm316, %v7647, %v7560
    %v7650 = vsel %vm316, %v7648, %v7562
    %v7651 = vsel %vm319, %v7649, %v7568
    %v7652 = vsel %vm319, %v7650, %v7570
    %v7653 = vsel %vm322, %v7651, %v7576
    %v7654 = vsel %vm322, %v7652, %v7578
    %v7655 = vsel %vm325, %v7653, %v7584
    %v7656 = vsel %vm325, %v7654, %v7586
    %v7657 = vsel %vm328, %v7655, %v7592
    %v7658 = vsel %vm328, %v7656, %v7594
    %v7659 = vsel %vm331, %v7657, %v7600
    %v7660 = vsel %vm331, %v7658, %v7602
    %v7661 = vsel %vm334, %v7659, %v7608
    %v7662 = vsel %vm334, %v7660, %v7610
    %v7663 = vsel %vm337, %v7608, %v7616
    %v7664 = vsel %vm337, %v7610, %v7618
    %v7665 = vsel %vm340, %v7663, %v7624
    %v7666 = vsel %vm340, %v7664, %v7626
    %v7667 = vsel %vm343, %v7665, %v7632
    %v7668 = vsel %vm343, %v7666, %v7634
    %v7669 = vsel %vm346, %v7667, %v7640
    %v7670 = vsel %vm346, %v7668, %v7642
    %7671 = vrot.lane.b32.xlu0 %v7369, 127
    %v7672 = vpop.permute.xlu0 %7671
    %7673 = vrot.lane.b32.xlu0 %v7368, 127
    %v7674 = vpop.permute.xlu0 %7673
    %7675 = vrot.lane.b32.xlu0 %v7372, 127
    %v7676 = vpop.permute.xlu0 %7675
    %7677 = vrot.lane.b32.xlu0 %v7371, 127
    %v7678 = vpop.permute.xlu0 %7677
    %v7683 = vcombine.high %v7672, 0.0
    %v7685 = vunpack.c.l.s4 1983009808
    %v7686 = vunpack.c.0.s8 %v7685
    %v7687 = vlaneseq
    %v7688 = vshrl.u32 %v7687, 7
    %v7689 = vsub.s32 %v7686, %v7688
    %v7690 = vrot.slane %v7672, %v7689
    %v7692 = vunpack.c.l.s4 1983009808
    %v7693 = vunpack.c.0.s8 %v7692
    %v7694 = vlaneseq
    %v7695 = vshrl.u32 %v7694, 7
    %v7696 = vsub.s32 %v7693, %v7695
    %v7697 = vrot.slane %v7683, %v7696
    %v7698 = vcombine.high %v7690, 0.0
    %v7700 = vunpack.c.l.s4 1934713408
    %v7701 = vunpack.c.0.s8 %v7700
    %v7702 = vlaneseq
    %v7703 = vshrl.u32 %v7702, 7
    %v7704 = vsub.s32 %v7701, %v7703
    %v7705 = vrot.slane %v7690, %v7704
    %v7707 = vunpack.c.l.s4 1934713408
    %v7708 = vunpack.c.0.s8 %v7707
    %v7709 = vlaneseq
    %v7710 = vshrl.u32 %v7709, 7
    %v7711 = vsub.s32 %v7708, %v7710
    %v7712 = vrot.slane %v7698, %v7711
    %v7713 = vcombine.high %v7697, 0.0
    %v7715 = vunpack.c.l.s4 1934713408
    %v7716 = vunpack.c.0.s8 %v7715
    %v7717 = vlaneseq
    %v7718 = vshrl.u32 %v7717, 7
    %v7719 = vsub.s32 %v7716, %v7718
    %v7720 = vrot.slane %v7697, %v7719
    %v7722 = vunpack.c.l.s4 1934713408
    %v7723 = vunpack.c.0.s8 %v7722
    %v7724 = vlaneseq
    %v7725 = vshrl.u32 %v7724, 7
    %v7726 = vsub.s32 %v7723, %v7725
    %v7727 = vrot.slane %v7713, %v7726
    %v7728 = vcombine.high %v7705, 0.0
    %v7729 = vcombine.high %v7712, 0.0
    %v7730 = vcombine.high %v7720, 0.0
    %v7731 = vcombine.high %v7727, 0.0
    %v7733 = vunpack.c.l.s4 1983009808
    %v7734 = vunpack.c.0.s8 %v7733
    %v7735 = vlaneseq
    %v7736 = vshrl.u32 %v7735, 7
    %v7737 = vsub.s32 %v7734, %v7736
    %v7738 = vrot.slane %v7674, %v7737
    %v7739 = vcombine.high %v7738, 0.0
    %v7741 = vunpack.c.l.s4 1934713408
    %v7742 = vunpack.c.0.s8 %v7741
    %v7743 = vlaneseq
    %v7744 = vshrl.u32 %v7743, 7
    %v7745 = vsub.s32 %v7742, %v7744
    %v7746 = vrot.slane %v7738, %v7745
    %v7748 = vunpack.c.l.s4 1934713408
    %v7749 = vunpack.c.0.s8 %v7748
    %v7750 = vlaneseq
    %v7751 = vshrl.u32 %v7750, 7
    %v7752 = vsub.s32 %v7749, %v7751
    %v7753 = vrot.slane %v7739, %v7752
    %v7754 = vcombine.high %v7674, 0.0
    %v7756 = vunpack.c.l.s4 1934713408
    %v7757 = vunpack.c.0.s8 %v7756
    %v7758 = vlaneseq
    %v7759 = vshrl.u32 %v7758, 7
    %v7760 = vsub.s32 %v7757, %v7759
    %v7761 = vrot.slane %v7754, %v7760
    %v7762 = vcombine.high %v7746, 0.0
    %v7763 = vcombine.high %v7753, 0.0
    %v7764 = vcombine.high %v7761, 0.0
    %v7765 = vcombine.high %v7676, 0.0
    %v7767 = vunpack.c.l.s4 1983009808
    %v7768 = vunpack.c.0.s8 %v7767
    %v7769 = vlaneseq
    %v7770 = vshrl.u32 %v7769, 7
    %v7771 = vsub.s32 %v7768, %v7770
    %v7772 = vrot.slane %v7676, %v7771
    %v7774 = vunpack.c.l.s4 1983009808
    %v7775 = vunpack.c.0.s8 %v7774
    %v7776 = vlaneseq
    %v7777 = vshrl.u32 %v7776, 7
    %v7778 = vsub.s32 %v7775, %v7777
    %v7779 = vrot.slane %v7765, %v7778
    %v7780 = vcombine.high %v7772, 0.0
    %v7782 = vunpack.c.l.s4 1934713408
    %v7783 = vunpack.c.0.s8 %v7782
    %v7784 = vlaneseq
    %v7785 = vshrl.u32 %v7784, 7
    %v7786 = vsub.s32 %v7783, %v7785
    %v7787 = vrot.slane %v7772, %v7786
    %v7789 = vunpack.c.l.s4 1934713408
    %v7790 = vunpack.c.0.s8 %v7789
    %v7791 = vlaneseq
    %v7792 = vshrl.u32 %v7791, 7
    %v7793 = vsub.s32 %v7790, %v7792
    %v7794 = vrot.slane %v7780, %v7793
    %v7795 = vcombine.high %v7779, 0.0
    %v7797 = vunpack.c.l.s4 1934713408
    %v7798 = vunpack.c.0.s8 %v7797
    %v7799 = vlaneseq
    %v7800 = vshrl.u32 %v7799, 7
    %v7801 = vsub.s32 %v7798, %v7800
    %v7802 = vrot.slane %v7779, %v7801
    %v7804 = vunpack.c.l.s4 1934713408
    %v7805 = vunpack.c.0.s8 %v7804
    %v7806 = vlaneseq
    %v7807 = vshrl.u32 %v7806, 7
    %v7808 = vsub.s32 %v7805, %v7807
    %v7809 = vrot.slane %v7795, %v7808
    %v7810 = vcombine.high %v7787, 0.0
    %v7811 = vcombine.high %v7794, 0.0
    %v7812 = vcombine.high %v7802, 0.0
    %v7813 = vcombine.high %v7809, 0.0
    %v7815 = vunpack.c.l.s4 1983009808
    %v7816 = vunpack.c.0.s8 %v7815
    %v7817 = vlaneseq
    %v7818 = vshrl.u32 %v7817, 7
    %v7819 = vsub.s32 %v7816, %v7818
    %v7820 = vrot.slane %v7678, %v7819
    %v7821 = vcombine.high %v7820, 0.0
    %v7823 = vunpack.c.l.s4 1934713408
    %v7824 = vunpack.c.0.s8 %v7823
    %v7825 = vlaneseq
    %v7826 = vshrl.u32 %v7825, 7
    %v7827 = vsub.s32 %v7824, %v7826
    %v7828 = vrot.slane %v7820, %v7827
    %v7830 = vunpack.c.l.s4 1934713408
    %v7831 = vunpack.c.0.s8 %v7830
    %v7832 = vlaneseq
    %v7833 = vshrl.u32 %v7832, 7
    %v7834 = vsub.s32 %v7831, %v7833
    %v7835 = vrot.slane %v7821, %v7834
    %v7836 = vcombine.high %v7678, 0.0
    %v7838 = vunpack.c.l.s4 1934713408
    %v7839 = vunpack.c.0.s8 %v7838
    %v7840 = vlaneseq
    %v7841 = vshrl.u32 %v7840, 7
    %v7842 = vsub.s32 %v7839, %v7841
    %v7843 = vrot.slane %v7836, %v7842
    %v7844 = vcombine.high %v7828, 0.0
    %v7845 = vcombine.high %v7835, 0.0
    %v7846 = vcombine.high %v7843, 0.0
    %7849 = vrot.lane.b32.xlu0 %v7728, 14
    %v7850 = vpop.permute.xlu0 %7849
    %7851 = vrot.lane.b32.xlu0 %v7810, 14
    %v7852 = vpop.permute.xlu0 %7851
    %7857 = vrot.lane.b32.xlu0 %v7712, 28
    %v7858 = vpop.permute.xlu0 %7857
    %7859 = vrot.lane.b32.xlu0 %v7794, 28
    %v7860 = vpop.permute.xlu0 %7859
    %7865 = vrot.lane.b32.xlu0 %v7729, 42
    %v7866 = vpop.permute.xlu0 %7865
    %7867 = vrot.lane.b32.xlu0 %v7811, 42
    %v7868 = vpop.permute.xlu0 %7867
    %7873 = vrot.lane.b32.xlu0 %v7720, 56
    %v7874 = vpop.permute.xlu0 %7873
    %7875 = vrot.lane.b32.xlu0 %v7802, 56
    %v7876 = vpop.permute.xlu0 %7875
    %7881 = vrot.lane.b32.xlu0 %v7730, 70
    %v7882 = vpop.permute.xlu0 %7881
    %7883 = vrot.lane.b32.xlu0 %v7812, 70
    %v7884 = vpop.permute.xlu0 %7883
    %7889 = vrot.lane.b32.xlu0 %v7727, 84
    %v7890 = vpop.permute.xlu0 %7889
    %7891 = vrot.lane.b32.xlu0 %v7809, 84
    %v7892 = vpop.permute.xlu0 %7891
    %7897 = vrot.lane.b32.xlu0 %v7731, 98
    %v7898 = vpop.permute.xlu0 %7897
    %7899 = vrot.lane.b32.xlu0 %v7813, 98
    %v7900 = vpop.permute.xlu0 %7899
    %7905 = vrot.lane.b32.xlu0 %v7746, 112
    %v7906 = vpop.permute.xlu0 %7905
    %7907 = vrot.lane.b32.xlu0 %v7828, 112
    %v7908 = vpop.permute.xlu0 %7907
    %7913 = vrot.lane.b32.xlu0 %v7762, 126
    %v7914 = vpop.permute.xlu0 %7913
    %7915 = vrot.lane.b32.xlu0 %v7844, 126
    %v7916 = vpop.permute.xlu0 %7915
    %7921 = vrot.lane.b32.xlu0 %v7753, 12
    %v7922 = vpop.permute.xlu0 %7921
    %7923 = vrot.lane.b32.xlu0 %v7835, 12
    %v7924 = vpop.permute.xlu0 %7923
    %7929 = vrot.lane.b32.xlu0 %v7763, 26
    %v7930 = vpop.permute.xlu0 %7929
    %7931 = vrot.lane.b32.xlu0 %v7845, 26
    %v7932 = vpop.permute.xlu0 %7931
    %7937 = vrot.lane.b32.xlu0 %v7761, 40
    %v7938 = vpop.permute.xlu0 %7937
    %7939 = vrot.lane.b32.xlu0 %v7843, 40
    %v7940 = vpop.permute.xlu0 %7939
    %7945 = vrot.lane.b32.xlu0 %v7764, 54
    %v7946 = vpop.permute.xlu0 %7945
    %7947 = vrot.lane.b32.xlu0 %v7846, 54
    %v7948 = vpop.permute.xlu0 %7947
    %v7951 = vsel %vm310, %v7705, %v7850
    %v7952 = vsel %vm310, %v7787, %v7852
    %v7953 = vsel %vm313, %v7951, %v7858
    %v7954 = vsel %vm313, %v7952, %v7860
    %v7955 = vsel %vm316, %v7953, %v7866
    %v7956 = vsel %vm316, %v7954, %v7868
    %v7957 = vsel %vm319, %v7955, %v7874
    %v7958 = vsel %vm319, %v7956, %v7876
    %v7959 = vsel %vm322, %v7957, %v7882
    %v7960 = vsel %vm322, %v7958, %v7884
    %v7961 = vsel %vm325, %v7959, %v7890
    %v7962 = vsel %vm325, %v7960, %v7892
    %v7963 = vsel %vm328, %v7961, %v7898
    %v7964 = vsel %vm328, %v7962, %v7900
    %v7965 = vsel %vm331, %v7963, %v7906
    %v7966 = vsel %vm331, %v7964, %v7908
    %v7967 = vsel %vm334, %v7965, %v7914
    %v7968 = vsel %vm334, %v7966, %v7916
    %v7969 = vsel %vm337, %v7914, %v7922
    %v7970 = vsel %vm337, %v7916, %v7924
    %v7971 = vsel %vm340, %v7969, %v7930
    %v7972 = vsel %vm340, %v7970, %v7932
    %v7973 = vsel %vm343, %v7971, %v7938
    %v7974 = vsel %vm343, %v7972, %v7940
    %v7975 = vsel %vm346, %v7973, %v7946
    %v7976 = vsel %vm346, %v7974, %v7948
    %7977 = vrot.lane.b32.xlu0 %v7369, 126
    %v7978 = vpop.permute.xlu0 %7977
    %7979 = vrot.lane.b32.xlu0 %v7368, 126
    %v7980 = vpop.permute.xlu0 %7979
    %7981 = vrot.lane.b32.xlu0 %v7372, 126
    %v7982 = vpop.permute.xlu0 %7981
    %7983 = vrot.lane.b32.xlu0 %v7371, 126
    %v7984 = vpop.permute.xlu0 %7983
    %v7989 = vcombine.high %v7978, 0.0
    %v7991 = vunpack.c.l.s4 1983009808
    %v7992 = vunpack.c.0.s8 %v7991
    %v7993 = vlaneseq
    %v7994 = vshrl.u32 %v7993, 7
    %v7995 = vsub.s32 %v7992, %v7994
    %v7996 = vrot.slane %v7978, %v7995
    %v7998 = vunpack.c.l.s4 1983009808
    %v7999 = vunpack.c.0.s8 %v7998
    %v8000 = vlaneseq
    %v8001 = vshrl.u32 %v8000, 7
    %v8002 = vsub.s32 %v7999, %v8001
    %v8003 = vrot.slane %v7989, %v8002
    %v8004 = vcombine.high %v7996, 0.0
    %v8006 = vunpack.c.l.s4 1934713408
    %v8007 = vunpack.c.0.s8 %v8006
    %v8008 = vlaneseq
    %v8009 = vshrl.u32 %v8008, 7
    %v8010 = vsub.s32 %v8007, %v8009
    %v8011 = vrot.slane %v7996, %v8010
    %v8013 = vunpack.c.l.s4 1934713408
    %v8014 = vunpack.c.0.s8 %v8013
    %v8015 = vlaneseq
    %v8016 = vshrl.u32 %v8015, 7
    %v8017 = vsub.s32 %v8014, %v8016
    %v8018 = vrot.slane %v8004, %v8017
    %v8019 = vcombine.high %v8003, 0.0
    %v8021 = vunpack.c.l.s4 1934713408
    %v8022 = vunpack.c.0.s8 %v8021
    %v8023 = vlaneseq
    %v8024 = vshrl.u32 %v8023, 7
    %v8025 = vsub.s32 %v8022, %v8024
    %v8026 = vrot.slane %v8003, %v8025
    %v8028 = vunpack.c.l.s4 1934713408
    %v8029 = vunpack.c.0.s8 %v8028
    %v8030 = vlaneseq
    %v8031 = vshrl.u32 %v8030, 7
    %v8032 = vsub.s32 %v8029, %v8031
    %v8033 = vrot.slane %v8019, %v8032
    %v8034 = vcombine.high %v8011, 0.0
    %v8035 = vcombine.high %v8018, 0.0
    %v8036 = vcombine.high %v8026, 0.0
    %v8037 = vcombine.high %v8033, 0.0
    %v8039 = vunpack.c.l.s4 1983009808
    %v8040 = vunpack.c.0.s8 %v8039
    %v8041 = vlaneseq
    %v8042 = vshrl.u32 %v8041, 7
    %v8043 = vsub.s32 %v8040, %v8042
    %v8044 = vrot.slane %v7980, %v8043
    %v8045 = vcombine.high %v8044, 0.0
    %v8047 = vunpack.c.l.s4 1934713408
    %v8048 = vunpack.c.0.s8 %v8047
    %v8049 = vlaneseq
    %v8050 = vshrl.u32 %v8049, 7
    %v8051 = vsub.s32 %v8048, %v8050
    %v8052 = vrot.slane %v8044, %v8051
    %v8054 = vunpack.c.l.s4 1934713408
    %v8055 = vunpack.c.0.s8 %v8054
    %v8056 = vlaneseq
    %v8057 = vshrl.u32 %v8056, 7
    %v8058 = vsub.s32 %v8055, %v8057
    %v8059 = vrot.slane %v8045, %v8058
    %v8060 = vcombine.high %v7980, 0.0
    %v8062 = vunpack.c.l.s4 1934713408
    %v8063 = vunpack.c.0.s8 %v8062
    %v8064 = vlaneseq
    %v8065 = vshrl.u32 %v8064, 7
    %v8066 = vsub.s32 %v8063, %v8065
    %v8067 = vrot.slane %v8060, %v8066
    %v8068 = vcombine.high %v8052, 0.0
    %v8069 = vcombine.high %v8059, 0.0
    %v8070 = vcombine.high %v8067, 0.0
    %v8071 = vcombine.high %v7982, 0.0
    %v8073 = vunpack.c.l.s4 1983009808
    %v8074 = vunpack.c.0.s8 %v8073
    %v8075 = vlaneseq
    %v8076 = vshrl.u32 %v8075, 7
    %v8077 = vsub.s32 %v8074, %v8076
    %v8078 = vrot.slane %v7982, %v8077
    %v8080 = vunpack.c.l.s4 1983009808
    %v8081 = vunpack.c.0.s8 %v8080
    %v8082 = vlaneseq
    %v8083 = vshrl.u32 %v8082, 7
    %v8084 = vsub.s32 %v8081, %v8083
    %v8085 = vrot.slane %v8071, %v8084
    %v8086 = vcombine.high %v8078, 0.0
    %v8088 = vunpack.c.l.s4 1934713408
    %v8089 = vunpack.c.0.s8 %v8088
    %v8090 = vlaneseq
    %v8091 = vshrl.u32 %v8090, 7
    %v8092 = vsub.s32 %v8089, %v8091
    %v8093 = vrot.slane %v8078, %v8092
    %v8095 = vunpack.c.l.s4 1934713408
    %v8096 = vunpack.c.0.s8 %v8095
    %v8097 = vlaneseq
    %v8098 = vshrl.u32 %v8097, 7
    %v8099 = vsub.s32 %v8096, %v8098
    %v8100 = vrot.slane %v8086, %v8099
    %v8101 = vcombine.high %v8085, 0.0
    %v8103 = vunpack.c.l.s4 1934713408
    %v8104 = vunpack.c.0.s8 %v8103
    %v8105 = vlaneseq
    %v8106 = vshrl.u32 %v8105, 7
    %v8107 = vsub.s32 %v8104, %v8106
    %v8108 = vrot.slane %v8085, %v8107
    %v8110 = vunpack.c.l.s4 1934713408
    %v8111 = vunpack.c.0.s8 %v8110
    %v8112 = vlaneseq
    %v8113 = vshrl.u32 %v8112, 7
    %v8114 = vsub.s32 %v8111, %v8113
    %v8115 = vrot.slane %v8101, %v8114
    %v8116 = vcombine.high %v8093, 0.0
    %v8117 = vcombine.high %v8100, 0.0
    %v8118 = vcombine.high %v8108, 0.0
    %v8119 = vcombine.high %v8115, 0.0
    %v8121 = vunpack.c.l.s4 1983009808
    %v8122 = vunpack.c.0.s8 %v8121
    %v8123 = vlaneseq
    %v8124 = vshrl.u32 %v8123, 7
    %v8125 = vsub.s32 %v8122, %v8124
    %v8126 = vrot.slane %v7984, %v8125
    %v8127 = vcombine.high %v8126, 0.0
    %v8129 = vunpack.c.l.s4 1934713408
    %v8130 = vunpack.c.0.s8 %v8129
    %v8131 = vlaneseq
    %v8132 = vshrl.u32 %v8131, 7
    %v8133 = vsub.s32 %v8130, %v8132
    %v8134 = vrot.slane %v8126, %v8133
    %v8136 = vunpack.c.l.s4 1934713408
    %v8137 = vunpack.c.0.s8 %v8136
    %v8138 = vlaneseq
    %v8139 = vshrl.u32 %v8138, 7
    %v8140 = vsub.s32 %v8137, %v8139
    %v8141 = vrot.slane %v8127, %v8140
    %v8142 = vcombine.high %v7984, 0.0
    %v8144 = vunpack.c.l.s4 1934713408
    %v8145 = vunpack.c.0.s8 %v8144
    %v8146 = vlaneseq
    %v8147 = vshrl.u32 %v8146, 7
    %v8148 = vsub.s32 %v8145, %v8147
    %v8149 = vrot.slane %v8142, %v8148
    %v8150 = vcombine.high %v8134, 0.0
    %v8151 = vcombine.high %v8141, 0.0
    %v8152 = vcombine.high %v8149, 0.0
    %8155 = vrot.lane.b32.xlu0 %v8034, 14
    %v8156 = vpop.permute.xlu0 %8155
    %8157 = vrot.lane.b32.xlu0 %v8116, 14
    %v8158 = vpop.permute.xlu0 %8157
    %8163 = vrot.lane.b32.xlu0 %v8018, 28
    %v8164 = vpop.permute.xlu0 %8163
    %8165 = vrot.lane.b32.xlu0 %v8100, 28
    %v8166 = vpop.permute.xlu0 %8165
    %8171 = vrot.lane.b32.xlu0 %v8035, 42
    %v8172 = vpop.permute.xlu0 %8171
    %8173 = vrot.lane.b32.xlu0 %v8117, 42
    %v8174 = vpop.permute.xlu0 %8173
    %8179 = vrot.lane.b32.xlu0 %v8026, 56
    %v8180 = vpop.permute.xlu0 %8179
    %8181 = vrot.lane.b32.xlu0 %v8108, 56
    %v8182 = vpop.permute.xlu0 %8181
    %8187 = vrot.lane.b32.xlu0 %v8036, 70
    %v8188 = vpop.permute.xlu0 %8187
    %8189 = vrot.lane.b32.xlu0 %v8118, 70
    %v8190 = vpop.permute.xlu0 %8189
    %8195 = vrot.lane.b32.xlu0 %v8033, 84
    %v8196 = vpop.permute.xlu0 %8195
    %8197 = vrot.lane.b32.xlu0 %v8115, 84
    %v8198 = vpop.permute.xlu0 %8197
    %8203 = vrot.lane.b32.xlu0 %v8037, 98
    %v8204 = vpop.permute.xlu0 %8203
    %8205 = vrot.lane.b32.xlu0 %v8119, 98
    %v8206 = vpop.permute.xlu0 %8205
    %8211 = vrot.lane.b32.xlu0 %v8052, 112
    %v8212 = vpop.permute.xlu0 %8211
    %8213 = vrot.lane.b32.xlu0 %v8134, 112
    %v8214 = vpop.permute.xlu0 %8213
    %8219 = vrot.lane.b32.xlu0 %v8068, 126
    %v8220 = vpop.permute.xlu0 %8219
    %8221 = vrot.lane.b32.xlu0 %v8150, 126
    %v8222 = vpop.permute.xlu0 %8221
    %8227 = vrot.lane.b32.xlu0 %v8059, 12
    %v8228 = vpop.permute.xlu0 %8227
    %8229 = vrot.lane.b32.xlu0 %v8141, 12
    %v8230 = vpop.permute.xlu0 %8229
    %8235 = vrot.lane.b32.xlu0 %v8069, 26
    %v8236 = vpop.permute.xlu0 %8235
    %8237 = vrot.lane.b32.xlu0 %v8151, 26
    %v8238 = vpop.permute.xlu0 %8237
    %8243 = vrot.lane.b32.xlu0 %v8067, 40
    %v8244 = vpop.permute.xlu0 %8243
    %8245 = vrot.lane.b32.xlu0 %v8149, 40
    %v8246 = vpop.permute.xlu0 %8245
    %8251 = vrot.lane.b32.xlu0 %v8070, 54
    %v8252 = vpop.permute.xlu0 %8251
    %8253 = vrot.lane.b32.xlu0 %v8152, 54
    %v8254 = vpop.permute.xlu0 %8253
    %v8257 = vsel %vm310, %v8011, %v8156
    %v8258 = vsel %vm310, %v8093, %v8158
    %v8259 = vsel %vm313, %v8257, %v8164
    %v8260 = vsel %vm313, %v8258, %v8166
    %v8261 = vsel %vm316, %v8259, %v8172
    %v8262 = vsel %vm316, %v8260, %v8174
    %v8263 = vsel %vm319, %v8261, %v8180
    %v8264 = vsel %vm319, %v8262, %v8182
    %v8265 = vsel %vm322, %v8263, %v8188
    %v8266 = vsel %vm322, %v8264, %v8190
    %v8267 = vsel %vm325, %v8265, %v8196
    %v8268 = vsel %vm325, %v8266, %v8198
    %v8269 = vsel %vm328, %v8267, %v8204
    %v8270 = vsel %vm328, %v8268, %v8206
    %v8271 = vsel %vm331, %v8269, %v8212
    %v8272 = vsel %vm331, %v8270, %v8214
    %v8273 = vsel %vm334, %v8271, %v8220
    %v8274 = vsel %vm334, %v8272, %v8222
    %v8275 = vsel %vm337, %v8220, %v8228
    %v8276 = vsel %vm337, %v8222, %v8230
    %v8277 = vsel %vm340, %v8275, %v8236
    %v8278 = vsel %vm340, %v8276, %v8238
    %v8279 = vsel %vm343, %v8277, %v8244
    %v8280 = vsel %vm343, %v8278, %v8246
    %v8281 = vsel %vm346, %v8279, %v8252
    %v8282 = vsel %vm346, %v8280, %v8254
    %v8287 = vrot.slane %v649, 7
    %v8288 = vrot.slane %v657, 7
    %v8289 = vrot.slane %v650, 7
    %v8290 = vrot.slane %v658, 7
    %v8299 = vrot.slane %v955, 6
    %v8300 = vrot.slane %v963, 6
    %v8301 = vrot.slane %v956, 6
    %v8302 = vrot.slane %v964, 6
    %v8311 = vrot.slane %v1260, 5
    %v8312 = vrot.slane %v1268, 5
    %v8313 = vrot.slane %v1261, 5
    %v8314 = vrot.slane %v1269, 5
    %v8323 = vrot.slane %v1566, 4
    %v8324 = vrot.slane %v1574, 4
    %v8325 = vrot.slane %v1567, 4
    %v8326 = vrot.slane %v1575, 4
    %v8335 = vrot.slane %v1872, 3
    %v8336 = vrot.slane %v1880, 3
    %v8337 = vrot.slane %v1873, 3
    %v8338 = vrot.slane %v1881, 3
    %v8347 = vrot.slane %v2177, 2
    %v8348 = vrot.slane %v2185, 2
    %v8349 = vrot.slane %v2178, 2
    %v8350 = vrot.slane %v2186, 2
    %v8359 = vrot.slane %v2483, 1
    %v8360 = vrot.slane %v2491, 1
    %v8361 = vrot.slane %v2484, 1
    %v8362 = vrot.slane %v2492, 1
    %v8371 = vrot.slane %v3083, 7
    %v8372 = vrot.slane %v3091, 7
    %v8373 = vrot.slane %v3084, 7
    %v8374 = vrot.slane %v3092, 7
    %v8383 = vrot.slane %v3393, 6
    %v8384 = vrot.slane %v3401, 6
    %v8385 = vrot.slane %v3394, 6
    %v8386 = vrot.slane %v3402, 6
    %v8395 = vrot.slane %v3699, 5
    %v8396 = vrot.slane %v3707, 5
    %v8397 = vrot.slane %v3700, 5
    %v8398 = vrot.slane %v3708, 5
    %v8407 = vrot.slane %v4003, 4
    %v8408 = vrot.slane %v4011, 4
    %v8409 = vrot.slane %v4004, 4
    %v8410 = vrot.slane %v4012, 4
    %v8419 = vrot.slane %v4309, 3
    %v8420 = vrot.slane %v4317, 3
    %v8421 = vrot.slane %v4310, 3
    %v8422 = vrot.slane %v4318, 3
    %v8431 = vrot.slane %v4615, 2
    %v8432 = vrot.slane %v4623, 2
    %v8433 = vrot.slane %v4616, 2
    %v8434 = vrot.slane %v4624, 2
    %v8443 = vrot.slane %v4919, 1
    %v8444 = vrot.slane %v4927, 1
    %v8445 = vrot.slane %v4920, 1
    %v8446 = vrot.slane %v4928, 1
    %vm8451 = vcmask 1040384
    %v8452 = vsel %vm8451, %v335, %v8287
    %v8453 = vsel %vm8451, %v347, %v8288
    %v8454 = vsel %vm8451, %v336, %v8289
    %v8455 = vsel %vm8451, %v348, %v8290
    %vm8456 = vcmask 1041408
    %v8457 = vsel %vm8456, %v8452, %v8299
    %v8458 = vsel %vm8456, %v8453, %v8300
    %v8459 = vsel %vm8456, %v8454, %v8301
    %v8460 = vsel %vm8456, %v8455, %v8302
    %vm8461 = vcmask 1042432
    %v8462 = vsel %vm8461, %v8457, %v8311
    %v8463 = vsel %vm8461, %v8458, %v8312
    %v8464 = vsel %vm8461, %v8459, %v8313
    %v8465 = vsel %vm8461, %v8460, %v8314
    %vm8466 = vcmask 1043456
    %v8467 = vsel %vm8466, %v8462, %v8323
    %v8468 = vsel %vm8466, %v8463, %v8324
    %v8469 = vsel %vm8466, %v8464, %v8325
    %v8470 = vsel %vm8466, %v8465, %v8326
    %vm8471 = vcmask 1044480
    %v8472 = vsel %vm8471, %v8467, %v8335
    %v8473 = vsel %vm8471, %v8468, %v8336
    %v8474 = vsel %vm8471, %v8469, %v8337
    %v8475 = vsel %vm8471, %v8470, %v8338
    %v8476 = vsel %vm1882, %v8472, %v8347
    %v8477 = vsel %vm1882, %v8473, %v8348
    %v8478 = vsel %vm1882, %v8474, %v8349
    %v8479 = vsel %vm1882, %v8475, %v8350
    %v8480 = vsel %vm965, %v8476, %v8359
    %v8481 = vsel %vm965, %v8477, %v8360
    %v8482 = vsel %vm965, %v8478, %v8361
    %v8483 = vsel %vm965, %v8479, %v8362
    %v8484 = vsel %vm8451, %v2789, %v8371
    %v8485 = vsel %vm8451, %v2797, %v8372
    %v8486 = vsel %vm8451, %v2790, %v8373
    %v8487 = vsel %vm8451, %v2798, %v8374
    %v8488 = vsel %vm8456, %v8484, %v8383
    %v8489 = vsel %vm8456, %v8485, %v8384
    %v8490 = vsel %vm8456, %v8486, %v8385
    %v8491 = vsel %vm8456, %v8487, %v8386
    %v8492 = vsel %vm8461, %v8488, %v8395
    %v8493 = vsel %vm8461, %v8489, %v8396
    %v8494 = vsel %vm8461, %v8490, %v8397
    %v8495 = vsel %vm8461, %v8491, %v8398
    %v8496 = vsel %vm8466, %v8492, %v8407
    %v8497 = vsel %vm8466, %v8493, %v8408
    %v8498 = vsel %vm8466, %v8494, %v8409
    %v8499 = vsel %vm8466, %v8495, %v8410
    %v8500 = vsel %vm8471, %v8496, %v8419
    %v8501 = vsel %vm8471, %v8497, %v8420
    %v8502 = vsel %vm8471, %v8498, %v8421
    %v8503 = vsel %vm8471, %v8499, %v8422
    %v8504 = vsel %vm1882, %v8500, %v8431
    %v8505 = vsel %vm1882, %v8501, %v8432
    %v8506 = vsel %vm1882, %v8502, %v8433
    %v8507 = vsel %vm1882, %v8503, %v8434
    %v8508 = vsel %vm965, %v8504, %v8443
    %v8509 = vsel %vm965, %v8505, %v8444
    %v8510 = vsel %vm965, %v8506, %v8445
    %v8511 = vsel %vm965, %v8507, %v8446
    %v8516 = vrot.slane %v5531, 7
    %v8517 = vrot.slane %v5539, 7
    %v8518 = vrot.slane %v5532, 7
    %v8519 = vrot.slane %v5540, 7
    %v8528 = vrot.slane %v5825, 6
    %v8529 = vrot.slane %v5833, 6
    %v8530 = vrot.slane %v5826, 6
    %v8531 = vrot.slane %v5834, 6
    %v8540 = vrot.slane %v6135, 5
    %v8541 = vrot.slane %v6143, 5
    %v8542 = vrot.slane %v6136, 5
    %v8543 = vrot.slane %v6144, 5
    %v8552 = vrot.slane %v6441, 4
    %v8553 = vrot.slane %v6449, 4
    %v8554 = vrot.slane %v6442, 4
    %v8555 = vrot.slane %v6450, 4
    %v8564 = vrot.slane %v6745, 3
    %v8565 = vrot.slane %v6753, 3
    %v8566 = vrot.slane %v6746, 3
    %v8567 = vrot.slane %v6754, 3
    %v8576 = vrot.slane %v7051, 2
    %v8577 = vrot.slane %v7059, 2
    %v8578 = vrot.slane %v7052, 2
    %v8579 = vrot.slane %v7060, 2
    %v8588 = vrot.slane %v7357, 1
    %v8589 = vrot.slane %v7365, 1
    %v8590 = vrot.slane %v7358, 1
    %v8591 = vrot.slane %v7366, 1
    %v8600 = vrot.slane %v7967, 7
    %v8601 = vrot.slane %v7975, 7
    %v8602 = vrot.slane %v7968, 7
    %v8603 = vrot.slane %v7976, 7
    %v8612 = vrot.slane %v8273, 6
    %v8613 = vrot.slane %v8281, 6
    %v8614 = vrot.slane %v8274, 6
    %v8615 = vrot.slane %v8282, 6
    %v8620 = vsel %vm8451, %v5225, %v8516
    %v8621 = vsel %vm8451, %v5233, %v8517
    %v8622 = vsel %vm8451, %v5226, %v8518
    %v8623 = vsel %vm8451, %v5234, %v8519
    %v8624 = vsel %vm8456, %v8620, %v8528
    %v8625 = vsel %vm8456, %v8621, %v8529
    %v8626 = vsel %vm8456, %v8622, %v8530
    %v8627 = vsel %vm8456, %v8623, %v8531
    %v8628 = vsel %vm8461, %v8624, %v8540
    %v8629 = vsel %vm8461, %v8625, %v8541
    %v8630 = vsel %vm8461, %v8626, %v8542
    %v8631 = vsel %vm8461, %v8627, %v8543
    %v8632 = vsel %vm8466, %v8628, %v8552
    %v8633 = vsel %vm8466, %v8629, %v8553
    %v8634 = vsel %vm8466, %v8630, %v8554
    %v8635 = vsel %vm8466, %v8631, %v8555
    %v8636 = vsel %vm8471, %v8632, %v8564
    %v8637 = vsel %vm8471, %v8633, %v8565
    %v8638 = vsel %vm8471, %v8634, %v8566
    %v8639 = vsel %vm8471, %v8635, %v8567
    %v8640 = vsel %vm1882, %v8636, %v8576
    %v8641 = vsel %vm1882, %v8637, %v8577
    %v8642 = vsel %vm1882, %v8638, %v8578
    %v8643 = vsel %vm1882, %v8639, %v8579
    %v8644 = vsel %vm965, %v8640, %v8588
    %v8645 = vsel %vm965, %v8641, %v8589
    %v8646 = vsel %vm965, %v8642, %v8590
    %v8647 = vsel %vm965, %v8643, %v8591
    %v8648 = vsel %vm8451, %v7661, %v8600
    %v8649 = vsel %vm8451, %v7669, %v8601
    %v8650 = vsel %vm8451, %v7662, %v8602
    %v8651 = vsel %vm8451, %v7670, %v8603
    %v8652 = vsel %vm8456, %v8648, %v8612
    %v8653 = vsel %vm8456, %v8649, %v8613
    %v8654 = vsel %vm8456, %v8650, %v8614
    %v8655 = vsel %vm8456, %v8651, %v8615
    %8657 = vset.pattern.permute.xlu0 0
    %8658 = vperm.xlu0 %8657, %v41
    %v8659 = vpop.permute.xlu0 %8658
    %vm8661 = vcmask 220160
    %v8663 = vsel %vm8661, %v40, 0
    %v8666 = vsel %vm8461, %v8652, 0
    %v8669 = vsel %vm8461, %v8653, 0
    %8671 = vmatprep.subr.mxu0 0.0
    %8672 = vmatpush1.msra.mxu0 0.0
    %8673 = vmatprep.subr.mxu0 0.0
    %8674 = vmatpush1.msra.mxu0 0.0
    %8675 = vmatprep.subr.mxu0 0.0
    %8676 = vmatpush1.msra.mxu0 0.0
    %8677 = vmatprep.subr.mxu0 0.0
    %8678 = vmatpush1.msra.mxu0 0.0
    %8679 = vmatprep.subr.mxu0 0.0
    %8680 = vmatpush1.msra.mxu0 0.0
    %8681 = vmatprep.subr.mxu0 0.0
    %8682 = vmatpush1.msra.mxu0 0.0
    %8683 = vmatprep.subr.mxu0 0.0
    %8684 = vmatpush1.msra.mxu0 0.0
    %8685 = vmatprep.subr.mxu0 0.0
    %8686 = vmatpush1.msra.mxu0 0.0
    %8687 = vmatprep.subr.mxu0 0.0
    %8688 = vmatpush1.msra.mxu0 0.0
    %8689 = vmatprep.subr.mxu0 0.0
    %8690 = vmatpush1.msra.mxu0 0.0
    %8691 = vmatprep.subr.mxu0 0.0
    %8692 = vmatpush1.msra.mxu0 0.0
    %8693 = vmatprep.subr.mxu0 0.0
    %8694 = vmatpush1.msra.mxu0 0.0
    %8695 = vmatprep.subr.mxu0 %v8669
    %8696 = vmatpush1.msra.mxu0 %v8666
    %8697 = vmatprep.subr.mxu0 %v8645
    %8698 = vmatpush1.msra.mxu0 %v8644
    %8699 = vmatprep.subr.mxu0 %v8509
    %8700 = vmatpush1.msra.mxu0 %v8508
    %8701 = vmatprep.subr.mxu0 %v8481
    %8702 = vmatpush1.msra.mxu0 %v8480
    %8703 = vmatprep.subr.mxu0 0.0
    %8704 = vmatpush2.msra.mxu0 0.0
    %8705 = vmatprep.subr.mxu0 0.0
    %8706 = vmatpush2.msra.mxu0 0.0
    %8707 = vmatprep.subr.mxu0 0.0
    %8708 = vmatpush2.msra.mxu0 0.0
    %8709 = vmatprep.subr.mxu0 0.0
    %8710 = vmatpush2.msra.mxu0 0.0
    %8711 = vmatprep.subr.mxu0 0.0
    %8712 = vmatpush2.msra.mxu0 0.0
    %8713 = vmatprep.subr.mxu0 0.0
    %8714 = vmatpush2.msra.mxu0 0.0
    %8715 = vmatprep.subr.mxu0 0.0
    %8716 = vmatpush2.msra.mxu0 0.0
    %8717 = vmatprep.subr.mxu0 0.0
    %8718 = vmatpush2.msra.mxu0 0.0
    %8719 = vmatprep.subr.mxu0 0.0
    %8720 = vmatpush2.msra.mxu0 0.0
    %8721 = vmatprep.subr.mxu0 0.0
    %8722 = vmatpush2.msra.mxu0 0.0
    %8723 = vmatprep.subr.mxu0 0.0
    %8724 = vmatpush2.msra.mxu0 0.0
    %8725 = vmatprep.subr.mxu0 0.0
    %8726 = vmatpush2.msra.mxu0 0.0
    %8727 = vmatprep.subr.mxu0 0.0
    %8728 = vmatpush2.msra.mxu0 0.0
    %8729 = vmatprep.subr.mxu0 0.0
    %8730 = vmatpush2.msra.mxu0 0.0
    %8731 = vmatprep.subr.mxu0 0.0
    %8732 = vmatpush2.msra.mxu0 0.0
    %8733 = vmatprep.subr.mxu0 0.0
    %8734 = vmatpush2.msra.mxu0 0.0
    %8735 = vmatprep.mubr.f32.mxu0 0.0
    %8736 = vmatmul.mubr.f32.gmra.mxu0 %v8663
    %v8737 = vpop.f32.mrf.mxu0
    %v8738 = vadd.f32 %v8659, %v8737
    %v8739 = vpop.f32.mrf.mxu0
    %v8740 = vadd.f32 %v8659, %v8739
    %8741 = vdwg.mxu0
    %8742 = vst [vmem:[%s3] sm:$0x3f] %v8738
    %vm8743 = vcmask 553984
    %8744 = vst.msk [vmem:[%s3 + $0x8] sm:$0x3f] %vm8743, %v8740
    %v8746 = vsel %vm8461, %v8654, 0
    %v8749 = vsel %vm8461, %v8655, 0
    %8751 = vmatprep.subr.mxu0 0.0
    %8752 = vmatpush1.msra.mxu0 0.0
    %8753 = vmatprep.subr.mxu0 0.0
    %8754 = vmatpush1.msra.mxu0 0.0
    %8755 = vmatprep.subr.mxu0 0.0
    %8756 = vmatpush1.msra.mxu0 0.0
    %8757 = vmatprep.subr.mxu0 0.0
    %8758 = vmatpush1.msra.mxu0 0.0
    %8759 = vmatprep.subr.mxu0 0.0
    %8760 = vmatpush1.msra.mxu0 0.0
    %8761 = vmatprep.subr.mxu0 0.0
    %8762 = vmatpush1.msra.mxu0 0.0
    %8763 = vmatprep.subr.mxu0 0.0
    %8764 = vmatpush1.msra.mxu0 0.0
    %8765 = vmatprep.subr.mxu0 0.0
    %8766 = vmatpush1.msra.mxu0 0.0
    %8767 = vmatprep.subr.mxu0 0.0
    %8768 = vmatpush1.msra.mxu0 0.0
    %8769 = vmatprep.subr.mxu0 0.0
    %8770 = vmatpush1.msra.mxu0 0.0
    %8771 = vmatprep.subr.mxu0 0.0
    %8772 = vmatpush1.msra.mxu0 0.0
    %8773 = vmatprep.subr.mxu0 0.0
    %8774 = vmatpush1.msra.mxu0 0.0
    %8775 = vmatprep.subr.mxu0 %v8749
    %8776 = vmatpush1.msra.mxu0 %v8746
    %8777 = vmatprep.subr.mxu0 %v8647
    %8778 = vmatpush1.msra.mxu0 %v8646
    %8779 = vmatprep.subr.mxu0 %v8511
    %8780 = vmatpush1.msra.mxu0 %v8510
    %8781 = vmatprep.subr.mxu0 %v8483
    %8782 = vmatpush1.msra.mxu0 %v8482
    %8783 = vmatprep.subr.mxu0 0.0
    %8784 = vmatpush2.msra.mxu0 0.0
    %8785 = vmatprep.subr.mxu0 0.0
    %8786 = vmatpush2.msra.mxu0 0.0
    %8787 = vmatprep.subr.mxu0 0.0
    %8788 = vmatpush2.msra.mxu0 0.0
    %8789 = vmatprep.subr.mxu0 0.0
    %8790 = vmatpush2.msra.mxu0 0.0
    %8791 = vmatprep.subr.mxu0 0.0
    %8792 = vmatpush2.msra.mxu0 0.0
    %8793 = vmatprep.subr.mxu0 0.0
    %8794 = vmatpush2.msra.mxu0 0.0
    %8795 = vmatprep.subr.mxu0 0.0
    %8796 = vmatpush2.msra.mxu0 0.0
    %8797 = vmatprep.subr.mxu0 0.0
    %8798 = vmatpush2.msra.mxu0 0.0
    %8799 = vmatprep.subr.mxu0 0.0
    %8800 = vmatpush2.msra.mxu0 0.0
    %8801 = vmatprep.subr.mxu0 0.0
    %8802 = vmatpush2.msra.mxu0 0.0
    %8803 = vmatprep.subr.mxu0 0.0
    %8804 = vmatpush2.msra.mxu0 0.0
    %8805 = vmatprep.subr.mxu0 0.0
    %8806 = vmatpush2.msra.mxu0 0.0
    %8807 = vmatprep.subr.mxu0 0.0
    %8808 = vmatpush2.msra.mxu0 0.0
    %8809 = vmatprep.subr.mxu0 0.0
    %8810 = vmatpush2.msra.mxu0 0.0
    %8811 = vmatprep.subr.mxu0 0.0
    %8812 = vmatpush2.msra.mxu0 0.0
    %8813 = vmatprep.subr.mxu0 0.0
    %8814 = vmatpush2.msra.mxu0 0.0
    %8815 = vmatprep.mubr.f32.mxu0 0.0
    %8816 = vmatmul.mubr.f32.gmra.mxu0 %v8663
    %v8817 = vpop.f32.mrf.mxu0
    %v8818 = vadd.f32 %v8659, %v8817
    %v8819 = vpop.f32.mrf.mxu0
    %v8820 = vadd.f32 %v8659, %v8819
    %8821 = vdwg.mxu0
    %s8822 = scalar_lea.vmem %s3, 16
    %8823 = vst [vmem:[%s8822] sm:$0x3f] %v8818
    %8824 = vst.msk [vmem:[%s8822 + $0x8] sm:$0x3f] %vm8743, %v8820
    // Predicated region
    $region18: #{tpu_custom_call.1} parent=1 // pred_check
      _
    $region19: #{tpu_custom_call.1} parent=1 // pred_check_branch
      %8826 = sbr.rel (0) target = $region21
    $region20: #{tpu_custom_call.1} parent=1 // pred_region
      _
    $region21: #{tpu_custom_call.1} parent=1 // pred_fallthru
      _
    // Predicated region
    $region22: #{tpu_custom_call.1} parent=1 // pred_check
      _
    $region23: #{tpu_custom_call.1} parent=1 // pred_check_branch
      %8828 = sbr.rel (0) target = $region25
    $region24: #{tpu_custom_call.1} parent=1 // pred_region
      _
    $region25: #{tpu_custom_call.1} parent=1 // pred_fallthru
      _
    %8829 = vsyncpa [#allocation3], 1

</llo_original>
